<compile_context>
chip_gen: v7x
topology: tpu7x:2x2x1
jax: 0.10.0
libtpu: 0.0.40
codegen_flags: <defaults>
</compile_context>

<pallas_src>
import functools

import jax
import jax.numpy as jnp
from jax import lax
from jax.experimental import pallas as pl
from jax.experimental.pallas import tpu as pltpu

_VMEM_LIMIT_BYTES = 32 * 1024 * 1024      # explicit scoped-VMEM limit (safe on v5e/v6e/v7x)
_FUSE_BYTES_MAX = 12 * 1024 * 1024        # threshold for the fully-fused single-step path
_TILED_WORKSET_BYTES = 20 * 1024 * 1024   # double-buffered working-set budget (tiled path)


def _round_up(x, m):
    return ((x + m - 1) // m) * m


# ----------------------------------------------------------------------------
# Fused kernel: conv-as-matmul + batch-stats + BN affine + ReLU in one pass
# (whole problem resident in VMEM, lane-dense (Mp, Cp) output).
# ----------------------------------------------------------------------------
def _fused_conv_bn_relu_kernel(p_ref, w_ref, g_ref, b_ref, o_ref, *,
                               eps, m_valid, m_padded):
    acc = jnp.dot(p_ref[...], w_ref[...],
                  preferred_element_type=jnp.float32)          # (Mp, Cp) f32
    inv_m = 1.0 / m_valid
    if m_valid == m_padded:
        mean = jnp.sum(acc, axis=0, keepdims=True) * inv_m
        centered = acc - mean
        var = jnp.sum(centered * centered, axis=0, keepdims=True) * inv_m
    else:
        rows = lax.broadcasted_iota(jnp.int32, (m_padded, 1), 0)
        valid = rows < m_valid
        mean = jnp.sum(jnp.where(valid, acc, 0.0), axis=0, keepdims=True) * inv_m
        centered = acc - mean
        var = jnp.sum(jnp.where(valid, centered * centered, 0.0),
                      axis=0, keepdims=True) * inv_m
    scale = g_ref[...] * lax.rsqrt(var + eps)
    y = centered * scale + b_ref[...]
    o_ref[...] = jnp.maximum(y, 0.0).astype(o_ref.dtype)


# ----------------------------------------------------------------------------
# Tiled path, kernel 1: conv matmul + per-tile partial stats (parallel grid).
# ----------------------------------------------------------------------------
def _conv_stats_kernel(p_ref, w_ref, out_ref, sum_ref, ssd_ref, *, tm, m_valid):
    i = pl.program_id(0)
    acc = jnp.dot(p_ref[...], w_ref[...],
                  preferred_element_type=jnp.float32)          # (tm, Cp) f32
    out_ref[...] = acc
    rows = i * tm + lax.broadcasted_iota(jnp.int32, (tm, 1), 0)
    valid = rows < m_valid
    cnt = jnp.minimum(jnp.int32(tm), m_valid - i * tm).astype(jnp.float32)
    s = jnp.sum(jnp.where(valid, acc, 0.0), axis=0, keepdims=True)   # (1, Cp)
    mu = s / cnt
    d = jnp.where(valid, acc - mu, 0.0)
    ssd = jnp.sum(d * d, axis=0, keepdims=True)                      # (1, Cp)
    sum_ref[0] = s
    ssd_ref[0] = ssd


# ----------------------------------------------------------------------------
# Tiled path, kernel 2: BN affine + ReLU (aliases the conv buffer).
# ----------------------------------------------------------------------------
def _bn_relu_kernel(h_ref, scale_ref, shift_ref, o_ref):
    y = h_ref[...] * scale_ref[...] + shift_ref[...]
    o_ref[...] = jnp.maximum(y, 0.0).astype(o_ref.dtype)


# ----------------------------------------------------------------------------
# Final Linear layer (lane-padded classes).
# ----------------------------------------------------------------------------
def _linear_kernel(x_ref, w_ref, b_ref, o_ref):
    o_ref[...] = (jnp.dot(x_ref[...], w_ref[...],
                          preferred_element_type=jnp.float32)
                  + b_ref[...]).astype(o_ref.dtype)


def _pick_row_tile(m, k, cp, in_bytes, budget=_TILED_WORKSET_BYTES):
    fixed = 2 * k * cp * in_bytes + 8 * cp * 4          # resident weights + small rows
    per_row = 2 * (k * in_bytes + 2 * cp * 4)           # double-buffered patch + f32 out tiles
    avail = max(budget - fixed, per_row * 8)
    t = int(avail // per_row)
    t = max(8, min(t, m, 4096))
    t = (t // 256) * 256 if t >= 256 else (t // 8) * 8
    return max(t, 8)


def _conv_bn_relu_fused(patches, w_mat, g_row, b_row, *, m_valid, m_padded, k, cp, eps):
    kern = functools.partial(_fused_conv_bn_relu_kernel,
                             eps=eps, m_valid=m_valid, m_padded=m_padded)
    return pl.pallas_call(
        kern,
        out_shape=jax.ShapeDtypeStruct((m_padded, cp), jnp.float32),
        grid_spec=pltpu.PrefetchScalarGridSpec(
            num_scalar_prefetch=0,
            grid=(1,),
            in_specs=[pl.BlockSpec((m_padded, k), lambda i: (0, 0)),
                      pl.BlockSpec((k, cp), lambda i: (0, 0)),
                      pl.BlockSpec((1, cp), lambda i: (0, 0)),
                      pl.BlockSpec((1, cp), lambda i: (0, 0))],
            out_specs=pl.BlockSpec((m_padded, cp), lambda i: (0, 0)),
        ),
        compiler_params=pltpu.CompilerParams(
            dimension_semantics=("arbitrary",),
            vmem_limit_bytes=_VMEM_LIMIT_BYTES),
    )(patches, w_mat, g_row, b_row)


def _conv_bn_relu_tiled(patches, w_mat, g_row, b_row, *, m_valid, k, cp, eps,
                        in_bytes, row_tile):
    tm = row_tile if row_tile is not None else _pick_row_tile(m_valid, k, cp, in_bytes)
    nt = (m_valid + tm - 1) // tm
    mp = nt * tm
    if mp != m_valid:
        patches = jnp.pad(patches, ((0, mp - m_valid), (0, 0)))

    conv_out, sums, ssds = pl.pallas_call(
        functools.partial(_conv_stats_kernel, tm=tm, m_valid=m_valid),
        out_shape=(jax.ShapeDtypeStruct((mp, cp), jnp.float32),
                   jax.ShapeDtypeStruct((nt, 1, cp), jnp.float32),
                   jax.ShapeDtypeStruct((nt, 1, cp), jnp.float32)),
        grid_spec=pltpu.PrefetchScalarGridSpec(
            num_scalar_prefetch=0,
            grid=(nt,),
            in_specs=[pl.BlockSpec((tm, k), lambda i: (i, 0)),
                      pl.BlockSpec((k, cp), lambda i: (0, 0))],
            out_specs=[pl.BlockSpec((tm, cp), lambda i: (i, 0)),
                       pl.BlockSpec((1, 1, cp), lambda i: (i, 0, 0)),
                       pl.BlockSpec((1, 1, cp), lambda i: (i, 0, 0))],
        ),
        compiler_params=pltpu.CompilerParams(
            dimension_semantics=("parallel",),
            vmem_limit_bytes=_VMEM_LIMIT_BYTES),
    )(patches, w_mat)

    # Combine per-tile partials (Chan): total SSD = sum ssd_t + n_t*(mu_t - mu)^2.
    sums = sums.reshape(nt, cp)
    ssds = ssds.reshape(nt, cp)
    counts = jnp.minimum(tm, m_valid - jnp.arange(nt) * tm).astype(jnp.float32)
    mean = jnp.sum(sums, axis=0) / m_valid
    tile_mean = sums / counts[:, None]
    ssd_tot = jnp.sum(ssds, axis=0) + jnp.sum(
        counts[:, None] * (tile_mean - mean[None, :]) ** 2, axis=0)
    var = ssd_tot / m_valid
    inv_std = lax.rsqrt(var + eps)
    scale = (g_row[0] * inv_std).reshape(1, cp)
    shift = (b_row[0] - mean * g_row[0] * inv_std).reshape(1, cp)

    y = pl.pallas_call(
        _bn_relu_kernel,
        out_shape=jax.ShapeDtypeStruct((mp, cp), jnp.float32),
        grid_spec=pltpu.PrefetchScalarGridSpec(
            num_scalar_prefetch=0,
            grid=(nt,),
            in_specs=[pl.BlockSpec((tm, cp), lambda i: (i, 0)),
                      pl.BlockSpec((1, cp), lambda i: (0, 0)),
                      pl.BlockSpec((1, cp), lambda i: (0, 0))],
            out_specs=pl.BlockSpec((tm, cp), lambda i: (i, 0)),
        ),
        input_output_aliases={0: 0},
        compiler_params=pltpu.CompilerParams(
            dimension_semantics=("parallel",),
            vmem_limit_bytes=_VMEM_LIMIT_BYTES),
    )(conv_out, scale, shift)
    return y


def conv_bn_relu_nhwc(x_nhwc, weight, gamma, beta, *, stride=1, eps=1e-5,
                      use_bf16=True, force_tiled=False, row_tile=None):
    """ConvLayer forward (Conv2d [bias cancels under train-mode BN] -> BN -> ReLU).
    x_nhwc: (N, H, W, Cin) f32.  weight: (Cout, Cin, KH, KW).  Returns NHWC f32."""
    N, H, W, Cin = x_nhwc.shape
    Cout, Cin_w, KH, KW = weight.shape
    assert Cin == Cin_w
    OH = (H - KH) // stride + 1
    OW = (W - KW) // stride + 1
    M = N * OH * OW
    K = KH * KW * Cin
    Cp = _round_up(Cout, 128)
    in_dtype = jnp.bfloat16 if use_bf16 else jnp.float32
    in_bytes = 2 if use_bf16 else 4

    # im2col (layout plumbing in plain JAX; feature order (kh*KW+kw)*Cin+cin).
    slices = []
    for kh in range(KH):
        for kw in range(KW):
            sl = lax.slice(
                x_nhwc, (0, kh, kw, 0),
                (N, kh + (OH - 1) * stride + 1, kw + (OW - 1) * stride + 1, Cin),
                (1, stride, stride, 1))
            slices.append(sl)
    patches = jnp.concatenate(slices, axis=-1).reshape(M, K).astype(in_dtype)

    w_mat = jnp.transpose(weight, (2, 3, 1, 0)).reshape(K, Cout)
    w_mat = jnp.pad(w_mat, ((0, 0), (0, Cp - Cout))).astype(in_dtype)
    g_row = jnp.pad(gamma.reshape(1, Cout), ((0, 0), (0, Cp - Cout))).astype(jnp.float32)
    b_row = jnp.pad(beta.reshape(1, Cout), ((0, 0), (0, Cp - Cout))).astype(jnp.float32)

    m8 = _round_up(M, 8)
    fused_bytes = m8 * K * in_bytes + K * Cp * in_bytes + 2 * m8 * Cp * 4
    if (not force_tiled) and fused_bytes <= _FUSE_BYTES_MAX:
        p = jnp.pad(patches, ((0, m8 - M), (0, 0))) if m8 != M else patches
        y = _conv_bn_relu_fused(p, w_mat, g_row, b_row,
                                m_valid=M, m_padded=m8, k=K, cp=Cp, eps=eps)
    else:
        y = _conv_bn_relu_tiled(patches, w_mat, g_row, b_row,
                                m_valid=M, k=K, cp=Cp, eps=eps,
                                in_bytes=in_bytes, row_tile=row_tile)
    return y[:M, :Cout].reshape(N, OH, OW, Cout)


def linear_pallas(x, w, b):
    """PyTorch Linear: x @ w.T + b, with lane-padded (128) class dimension."""
    N, Din = x.shape
    C = w.shape[0]
    Np = _round_up(N, 8)
    Cp = _round_up(C, 128)
    xp = jnp.pad(x.astype(jnp.float32), ((0, Np - N), (0, 0)))
    wp = jnp.pad(jnp.transpose(w).astype(jnp.float32), ((0, 0), (0, Cp - C)))
    bp = jnp.pad(b.reshape(1, C).astype(jnp.float32), ((0, 0), (0, Cp - C)))
    out = pl.pallas_call(
        _linear_kernel,
        out_shape=jax.ShapeDtypeStruct((Np, Cp), jnp.float32),
        grid_spec=pltpu.PrefetchScalarGridSpec(
            num_scalar_prefetch=0,
            grid=(1,),
            in_specs=[pl.BlockSpec((Np, Din), lambda i: (0, 0)),
                      pl.BlockSpec((Din, Cp), lambda i: (0, 0)),
                      pl.BlockSpec((1, Cp), lambda i: (0, 0))],
            out_specs=pl.BlockSpec((Np, Cp), lambda i: (0, 0)),
        ),
        compiler_params=pltpu.CompilerParams(
            dimension_semantics=("arbitrary",),
            vmem_limit_bytes=_VMEM_LIMIT_BYTES),
    )(xp, wp, bp)
    return out[:N, :C]


@functools.partial(jax.jit, static_argnames=("eps", "use_bf16"))
def nano_model_forward(x_nchw, params, *, eps=1e-5, use_bf16=True):
    """Full NanoModel forward.  x_nchw: (N, Cin, H, W) f32 -> (N, num_classes)."""
    x = jnp.transpose(x_nchw, (0, 2, 3, 1))                      # NHWC internally
    h = conv_bn_relu_nhwc(x, params["w1"], params["g1"], params["be1"],
                          eps=eps, use_bf16=use_bf16)
    h = conv_bn_relu_nhwc(h, params["w2"], params["g2"], params["be2"],
                          eps=eps, use_bf16=use_bf16)
    # TODO(synk): MaxPool2d(3,3) + spatial mean left as tiny XLA reductions.
    N, OH, OW, C = h.shape
    ph, pw = OH // 3, OW // 3
    hp = h[:, :ph * 3, :pw * 3, :].reshape(N, ph, 3, pw, 3, C).max(axis=(2, 4))
    feat = hp.mean(axis=(1, 2))                                  # (N, 128)
    return linear_pallas(feat, params["wfc"], params["bfc"])


@functools.partial(jax.jit, static_argnames=("stride", "eps", "use_bf16",
                                             "force_tiled", "row_tile"))
def conv_layer_forward(x_nchw, weight, bias, gamma, beta, *, stride=1, eps=1e-5,
                       use_bf16=False, force_tiled=False, row_tile=None):
    """Single ConvLayer forward (NCHW in/out).  `bias` accepted for API parity but
    cancels exactly under train-mode BatchNorm, so it is unused (perf feedback)."""
    del bias
    x = jnp.transpose(x_nchw, (0, 2, 3, 1))
    y = conv_bn_relu_nhwc(x, weight, gamma, beta, stride=stride, eps=eps,
                          use_bf16=use_bf16, force_tiled=force_tiled,
                          row_tile=row_tile)
    return jnp.transpose(y, (0, 3, 1, 2))


# ----------------------------------------------------------------------------
# Pure-JAX references for validation.
# ----------------------------------------------------------------------------
def _ref_conv_bn_relu(x_nchw, w, b, g, be, *, stride=1, eps=1e-5):
    h = lax.conv_general_dilated(x_nchw, w, (stride, stride), "VALID",
                                 dimension_numbers=("NCHW", "OIHW", "NCHW"))
    h = h + b.reshape(1, -1, 1, 1)
    mean = jnp.mean(h, axis=(0, 2, 3), keepdims=True)
    var = jnp.mean((h - mean) ** 2, axis=(0, 2, 3), keepdims=True)
    hn = (h - mean) * lax.rsqrt(var + eps) * g.reshape(1, -1, 1, 1) + be.reshape(1, -1, 1, 1)
    return jnp.maximum(hn, 0.0)


def _ref_nano_forward(x, p, *, eps=1e-5):
    h = _ref_conv_bn_relu(x, p["w1"], p["b1"], p["g1"], p["be1"], eps=eps)
    h = _ref_conv_bn_relu(h, p["w2"], p["b2"], p["g2"], p["be2"], eps=eps)
    N, C, H, W = h.shape
    ph, pw = H // 3, W // 3
    hp = h[:, :, :ph * 3, :pw * 3].reshape(N, C, ph, 3, pw, 3).max(axis=(3, 5))
    feat = hp.mean(axis=(-1, -2))
    return feat @ p["wfc"].T + p["bfc"]


if __name__ == "__main__":
    # Small shapes consistent with the module: NanoModel(num_classes=10,
    # n_input_features=16); internal channels are fixed at 128 by the module.
    N, Cin, H, W = 2, 16, 16, 16
    num_classes = 10

    key = jax.random.PRNGKey(0)
    keys = jax.random.split(key, 6)
    x = jax.random.normal(keys[0], (N, Cin, H, W), dtype=jnp.float32)

    def conv_init(k, cout, cin, ksz):
        k1, k2 = jax.random.split(k)
        bound = 1.0 / jnp.sqrt(jnp.float32(cin * ksz * ksz))
        w = jax.random.uniform(k1, (cout, cin, ksz, ksz), jnp.float32, -bound, bound)
        b = jax.random.uniform(k2, (cout,), jnp.float32, -bound, bound)
        return w, b

    w1, b1 = conv_init(keys[1], 128, Cin, 3)
    w2, b2 = conv_init(keys[2], 128, 128, 3)
    bound_fc = 1.0 / jnp.sqrt(jnp.float32(128))
    wfc = jax.random.uniform(keys[3], (num_classes, 128), jnp.float32, -bound_fc, bound_fc)
    bfc = jax.random.uniform(keys[4], (num_classes,), jnp.float32, -bound_fc, bound_fc)

    params = dict(w1=w1, b1=b1, g1=jnp.ones((128,), jnp.float32), be1=jnp.zeros((128,), jnp.float32),
                  w2=w2, b2=b2, g2=jnp.ones((128,), jnp.float32), be2=jnp.zeros((128,), jnp.float32),
                  wfc=wfc, bfc=bfc)

    ref = _ref_nano_forward(x, params)

    # Full model, f32 MXU path (fused per-layer kernels).
    out_f32 = jax.block_until_ready(nano_model_forward(x, params, use_bf16=False))
    assert out_f32.shape == (N, num_classes)
    assert jnp.allclose(out_f32, ref, atol=5e-2, rtol=5e-2), "f32 path mismatch vs reference"

    # Full model, default bf16 MXU path.
    out_bf16 = jax.block_until_ready(nano_model_forward(x, params, use_bf16=True))
    assert jnp.allclose(out_bf16, ref, atol=5e-2, rtol=5e-2), "bf16 path mismatch vs reference"

    # Exercise the tiled (large-M, megacore-friendly) ConvLayer path.
    y_tiled = jax.block_until_ready(
        conv_layer_forward(x, w1, b1, params["g1"], params["be1"],
                           use_bf16=False, force_tiled=True, row_tile=64))
    y_ref = _ref_conv_bn_relu(x, w1, b1, params["g1"], params["be1"])
    assert y_tiled.shape == y_ref.shape
    assert jnp.allclose(y_tiled, y_ref, atol=5e-2, rtol=5e-2), "tiled path mismatch vs reference"

    print("KERNEL_OK")
</pallas_src>

<mosaic_0001>
module attributes {stable_mosaic.version = 11 : i64} {
  func.func @_fused_conv_bn_relu_kernel(%arg0: i32, %arg1: memref<392x144xf32, #tpu.memory_space<vmem>>, %arg2: memref<144x128xf32, #tpu.memory_space<vmem>>, %arg3: memref<1x128xf32, #tpu.memory_space<vmem>>, %arg4: memref<1x128xf32, #tpu.memory_space<vmem>>, %arg5: memref<392x128xf32, #tpu.memory_space<vmem>>) attributes {dimension_semantics = [#tpu.dimension_semantics<arbitrary>], iteration_bounds = array<i64: 1>, scalar_prefetch = 0 : i64, scratch_operands = 0 : i64, tpu.core_type = #tpu.core_type<tc>, window_params = [{pipeline_mode = #tpu.pipeline_mode<synchronous>, transform_indices = @transform_0, window_bounds = array<i64: 392, 144>}, {pipeline_mode = #tpu.pipeline_mode<synchronous>, transform_indices = @transform_1, window_bounds = array<i64: 144, 128>}, {pipeline_mode = #tpu.pipeline_mode<synchronous>, transform_indices = @transform_2, window_bounds = array<i64: 1, 128>}, {pipeline_mode = #tpu.pipeline_mode<synchronous>, transform_indices = @transform_3, window_bounds = array<i64: 1, 128>}, {pipeline_mode = #tpu.pipeline_mode<synchronous>, transform_indices = @transform_4, window_bounds = array<i64: 392, 128>}]} {
    %c0 = arith.constant 0 : index
    %c0_0 = arith.constant 0 : index
    %0 = vector.load %arg1[%c0, %c0_0] : memref<392x144xf32, #tpu.memory_space<vmem>>, vector<392x144xf32>
    %c0_1 = arith.constant 0 : index
    %c0_2 = arith.constant 0 : index
    %1 = vector.load %arg2[%c0_1, %c0_2] : memref<144x128xf32, #tpu.memory_space<vmem>>, vector<144x128xf32>
    %cst = arith.constant dense<0.000000e+00> : vector<392x128xf32>
    %2 = tpu.matmul %0, %1, %cst {dimension_numbers = #tpu.dot_dimension_numbers<[1], [0], [0], [1], [0, 0, 1, 1], [], []>} : vector<392x144xf32>, vector<144x128xf32>, vector<392x128xf32> -> vector<392x128xf32>
    %cst_3 = arith.constant dense<0.000000e+00> : vector<128xf32>
    %3 = vector.multi_reduction <add>, %2, %cst_3 [0] : vector<392x128xf32> to vector<128xf32>
    %4 = vector.shape_cast %3 : vector<128xf32> to vector<1x128xf32>
    %cst_4 = arith.constant 0.00255102036 : f32
    %5 = vector.broadcast %cst_4 : f32 to vector<1x128xf32>
    %6 = arith.mulf %4, %5 : vector<1x128xf32>
    %7 = vector.broadcast %6 : vector<1x128xf32> to vector<392x128xf32>
    %8 = arith.subf %2, %7 : vector<392x128xf32>
    %9 = arith.mulf %8, %8 : vector<392x128xf32>
    %cst_5 = arith.constant dense<0.000000e+00> : vector<128xf32>
    %10 = vector.multi_reduction <add>, %9, %cst_5 [0] : vector<392x128xf32> to vector<128xf32>
    %11 = vector.shape_cast %10 : vector<128xf32> to vector<1x128xf32>
    %cst_6 = arith.constant 0.00255102036 : f32
    %12 = vector.broadcast %cst_6 : f32 to vector<1x128xf32>
    %13 = arith.mulf %11, %12 : vector<1x128xf32>
    %c0_7 = arith.constant 0 : index
    %c0_8 = arith.constant 0 : index
    %14 = vector.load %arg3[%c0_7, %c0_8] : memref<1x128xf32, #tpu.memory_space<vmem>>, vector<1x128xf32>
    %cst_9 = arith.constant 9.99999974E-6 : f32
    %15 = vector.broadcast %cst_9 : f32 to vector<1x128xf32>
    %16 = arith.addf %13, %15 : vector<1x128xf32>
    %17 = math.rsqrt %16 : vector<1x128xf32>
    %18 = arith.mulf %14, %17 : vector<1x128xf32>
    %19 = vector.broadcast %18 : vector<1x128xf32> to vector<392x128xf32>
    %20 = arith.mulf %8, %19 : vector<392x128xf32>
    %c0_10 = arith.constant 0 : index
    %c0_11 = arith.constant 0 : index
    %21 = vector.load %arg4[%c0_10, %c0_11] : memref<1x128xf32, #tpu.memory_space<vmem>>, vector<1x128xf32>
    %22 = vector.broadcast %21 : vector<1x128xf32> to vector<392x128xf32>
    %23 = arith.addf %20, %22 : vector<392x128xf32>
    %cst_12 = arith.constant 0.000000e+00 : f32
    %24 = vector.broadcast %cst_12 : f32 to vector<392x128xf32>
    %25 = arith.maximumf %23, %24 : vector<392x128xf32>
    %c0_13 = arith.constant 0 : index
    %c0_14 = arith.constant 0 : index
    %26 = vector.load %arg5[%c0_13, %c0_14] : memref<392x128xf32, #tpu.memory_space<vmem>>, vector<392x128xf32>
    tpu.vector_store %arg5[%c0_13, %c0_14], %25 {strides = array<i32>} : memref<392x128xf32, #tpu.memory_space<vmem>>, vector<392x128xf32>,
    return
  }
  func.func @transform_0(%arg0: i32) -> (i32, i32) {
    %c0_i32 = arith.constant 0 : i32
    %c0_i32_0 = arith.constant 0 : i32
    %c0_i32_1 = arith.constant 0 : i32
    return %c0_i32, %c0_i32_0 : i32, i32
  }
  func.func @transform_1(%arg0: i32) -> (i32, i32) {
    %c0_i32 = arith.constant 0 : i32
    %c0_i32_0 = arith.constant 0 : i32
    %c0_i32_1 = arith.constant 0 : i32
    return %c0_i32, %c0_i32_0 : i32, i32
  }
  func.func @transform_2(%arg0: i32) -> (i32, i32) {
    %c0_i32 = arith.constant 0 : i32
    %c0_i32_0 = arith.constant 0 : i32
    %c0_i32_1 = arith.constant 0 : i32
    return %c0_i32, %c0_i32_0 : i32, i32
  }
  func.func @transform_3(%arg0: i32) -> (i32, i32) {
    %c0_i32 = arith.constant 0 : i32
    %c0_i32_0 = arith.constant 0 : i32
    %c0_i32_1 = arith.constant 0 : i32
    return %c0_i32, %c0_i32_0 : i32, i32
  }
  func.func @transform_4(%arg0: i32) -> (i32, i32) {
    %c0_i32 = arith.constant 0 : i32
    %c0_i32_0 = arith.constant 0 : i32
    %c0_i32_1 = arith.constant 0 : i32
    return %c0_i32, %c0_i32_0 : i32, i32
  }
}

module attributes {stable_mosaic.version = 11 : i64} {
  func.func @_fused_conv_bn_relu_kernel(%arg0: i32, %arg1: memref<288x1152xf32, #tpu.memory_space<vmem>>, %arg2: memref<1152x128xf32, #tpu.memory_space<vmem>>, %arg3: memref<1x128xf32, #tpu.memory_space<vmem>>, %arg4: memref<1x128xf32, #tpu.memory_space<vmem>>, %arg5: memref<288x128xf32, #tpu.memory_space<vmem>>) attributes {dimension_semantics = [#tpu.dimension_semantics<arbitrary>], iteration_bounds = array<i64: 1>, scalar_prefetch = 0 : i64, scratch_operands = 0 : i64, tpu.core_type = #tpu.core_type<tc>, window_params = [{pipeline_mode = #tpu.pipeline_mode<synchronous>, transform_indices = @transform_0, window_bounds = array<i64: 288, 1152>}, {pipeline_mode = #tpu.pipeline_mode<synchronous>, transform_indices = @transform_1, window_bounds = array<i64: 1152, 128>}, {pipeline_mode = #tpu.pipeline_mode<synchronous>, transform_indices = @transform_2, window_bounds = array<i64: 1, 128>}, {pipeline_mode = #tpu.pipeline_mode<synchronous>, transform_indices = @transform_3, window_bounds = array<i64: 1, 128>}, {pipeline_mode = #tpu.pipeline_mode<synchronous>, transform_indices = @transform_4, window_bounds = array<i64: 288, 128>}]} {
    %c0 = arith.constant 0 : index
    %c0_0 = arith.constant 0 : index
    %0 = vector.load %arg1[%c0, %c0_0] : memref<288x1152xf32, #tpu.memory_space<vmem>>, vector<288x1152xf32>
    %c0_1 = arith.constant 0 : index
    %c0_2 = arith.constant 0 : index
    %1 = vector.load %arg2[%c0_1, %c0_2] : memref<1152x128xf32, #tpu.memory_space<vmem>>, vector<1152x128xf32>
    %cst = arith.constant dense<0.000000e+00> : vector<288x128xf32>
    %2 = tpu.matmul %0, %1, %cst {dimension_numbers = #tpu.dot_dimension_numbers<[1], [0], [0], [1], [0, 0, 1, 1], [], []>} : vector<288x1152xf32>, vector<1152x128xf32>, vector<288x128xf32> -> vector<288x128xf32>
    %cst_3 = arith.constant dense<0.000000e+00> : vector<128xf32>
    %3 = vector.multi_reduction <add>, %2, %cst_3 [0] : vector<288x128xf32> to vector<128xf32>
    %4 = vector.shape_cast %3 : vector<128xf32> to vector<1x128xf32>
    %cst_4 = arith.constant 0.00347222225 : f32
    %5 = vector.broadcast %cst_4 : f32 to vector<1x128xf32>
    %6 = arith.mulf %4, %5 : vector<1x128xf32>
    %7 = vector.broadcast %6 : vector<1x128xf32> to vector<288x128xf32>
    %8 = arith.subf %2, %7 : vector<288x128xf32>
    %9 = arith.mulf %8, %8 : vector<288x128xf32>
    %cst_5 = arith.constant dense<0.000000e+00> : vector<128xf32>
    %10 = vector.multi_reduction <add>, %9, %cst_5 [0] : vector<288x128xf32> to vector<128xf32>
    %11 = vector.shape_cast %10 : vector<128xf32> to vector<1x128xf32>
    %cst_6 = arith.constant 0.00347222225 : f32
    %12 = vector.broadcast %cst_6 : f32 to vector<1x128xf32>
    %13 = arith.mulf %11, %12 : vector<1x128xf32>
    %c0_7 = arith.constant 0 : index
    %c0_8 = arith.constant 0 : index
    %14 = vector.load %arg3[%c0_7, %c0_8] : memref<1x128xf32, #tpu.memory_space<vmem>>, vector<1x128xf32>
    %cst_9 = arith.constant 9.99999974E-6 : f32
    %15 = vector.broadcast %cst_9 : f32 to vector<1x128xf32>
    %16 = arith.addf %13, %15 : vector<1x128xf32>
    %17 = math.rsqrt %16 : vector<1x128xf32>
    %18 = arith.mulf %14, %17 : vector<1x128xf32>
    %19 = vector.broadcast %18 : vector<1x128xf32> to vector<288x128xf32>
    %20 = arith.mulf %8, %19 : vector<288x128xf32>
    %c0_10 = arith.constant 0 : index
    %c0_11 = arith.constant 0 : index
    %21 = vector.load %arg4[%c0_10, %c0_11] : memref<1x128xf32, #tpu.memory_space<vmem>>, vector<1x128xf32>
    %22 = vector.broadcast %21 : vector<1x128xf32> to vector<288x128xf32>
    %23 = arith.addf %20, %22 : vector<288x128xf32>
    %cst_12 = arith.constant 0.000000e+00 : f32
    %24 = vector.broadcast %cst_12 : f32 to vector<288x128xf32>
    %25 = arith.maximumf %23, %24 : vector<288x128xf32>
    %c0_13 = arith.constant 0 : index
    %c0_14 = arith.constant 0 : index
    %26 = vector.load %arg5[%c0_13, %c0_14] : memref<288x128xf32, #tpu.memory_space<vmem>>, vector<288x128xf32>
    tpu.vector_store %arg5[%c0_13, %c0_14], %25 {strides = array<i32>} : memref<288x128xf32, #tpu.memory_space<vmem>>, vector<288x128xf32>,
    return
  }
  func.func @transform_0(%arg0: i32) -> (i32, i32) {
    %c0_i32 = arith.constant 0 : i32
    %c0_i32_0 = arith.constant 0 : i32
    %c0_i32_1 = arith.constant 0 : i32
    return %c0_i32, %c0_i32_0 : i32, i32
  }
  func.func @transform_1(%arg0: i32) -> (i32, i32) {
    %c0_i32 = arith.constant 0 : i32
    %c0_i32_0 = arith.constant 0 : i32
    %c0_i32_1 = arith.constant 0 : i32
    return %c0_i32, %c0_i32_0 : i32, i32
  }
  func.func @transform_2(%arg0: i32) -> (i32, i32) {
    %c0_i32 = arith.constant 0 : i32
    %c0_i32_0 = arith.constant 0 : i32
    %c0_i32_1 = arith.constant 0 : i32
    return %c0_i32, %c0_i32_0 : i32, i32
  }
  func.func @transform_3(%arg0: i32) -> (i32, i32) {
    %c0_i32 = arith.constant 0 : i32
    %c0_i32_0 = arith.constant 0 : i32
    %c0_i32_1 = arith.constant 0 : i32
    return %c0_i32, %c0_i32_0 : i32, i32
  }
  func.func @transform_4(%arg0: i32) -> (i32, i32) {
    %c0_i32 = arith.constant 0 : i32
    %c0_i32_0 = arith.constant 0 : i32
    %c0_i32_1 = arith.constant 0 : i32
    return %c0_i32, %c0_i32_0 : i32, i32
  }
}

module attributes {stable_mosaic.version = 11 : i64} {
  func.func @_linear_kernel(%arg0: i32, %arg1: memref<8x128xf32, #tpu.memory_space<vmem>>, %arg2: memref<128x128xf32, #tpu.memory_space<vmem>>, %arg3: memref<1x128xf32, #tpu.memory_space<vmem>>, %arg4: memref<8x128xf32, #tpu.memory_space<vmem>>) attributes {dimension_semantics = [#tpu.dimension_semantics<arbitrary>], iteration_bounds = array<i64: 1>, scalar_prefetch = 0 : i64, scratch_operands = 0 : i64, tpu.core_type = #tpu.core_type<tc>, window_params = [{pipeline_mode = #tpu.pipeline_mode<synchronous>, transform_indices = @transform_0, window_bounds = array<i64: 8, 128>}, {pipeline_mode = #tpu.pipeline_mode<synchronous>, transform_indices = @transform_1, window_bounds = array<i64: 128, 128>}, {pipeline_mode = #tpu.pipeline_mode<synchronous>, transform_indices = @transform_2, window_bounds = array<i64: 1, 128>}, {pipeline_mode = #tpu.pipeline_mode<synchronous>, transform_indices = @transform_3, window_bounds = array<i64: 8, 128>}]} {
    %c0 = arith.constant 0 : index
    %c0_0 = arith.constant 0 : index
    %0 = vector.load %arg1[%c0, %c0_0] : memref<8x128xf32, #tpu.memory_space<vmem>>, vector<8x128xf32>
    %c0_1 = arith.constant 0 : index
    %c0_2 = arith.constant 0 : index
    %1 = vector.load %arg2[%c0_1, %c0_2] : memref<128x128xf32, #tpu.memory_space<vmem>>, vector<128x128xf32>
    %cst = arith.constant dense<0.000000e+00> : vector<8x128xf32>
    %2 = tpu.matmul %0, %1, %cst {dimension_numbers = #tpu.dot_dimension_numbers<[1], [0], [0], [1], [0, 0, 1, 1], [], []>} : vector<8x128xf32>, vector<128x128xf32>, vector<8x128xf32> -> vector<8x128xf32>
    %c0_3 = arith.constant 0 : index
    %c0_4 = arith.constant 0 : index
    %3 = vector.load %arg3[%c0_3, %c0_4] : memref<1x128xf32, #tpu.memory_space<vmem>>, vector<1x128xf32>
    %4 = vector.broadcast %3 : vector<1x128xf32> to vector<8x128xf32>
    %5 = arith.addf %2, %4 : vector<8x128xf32>
    %c0_5 = arith.constant 0 : index
    %c0_6 = arith.constant 0 : index
    %6 = vector.load %arg4[%c0_5, %c0_6] : memref<8x128xf32, #tpu.memory_space<vmem>>, vector<8x128xf32>
    tpu.vector_store %arg4[%c0_5, %c0_6], %5 {strides = array<i32>} : memref<8x128xf32, #tpu.memory_space<vmem>>, vector<8x128xf32>,
    return
  }
  func.func @transform_0(%arg0: i32) -> (i32, i32) {
    %c0_i32 = arith.constant 0 : i32
    %c0_i32_0 = arith.constant 0 : i32
    %c0_i32_1 = arith.constant 0 : i32
    return %c0_i32, %c0_i32_0 : i32, i32
  }
  func.func @transform_1(%arg0: i32) -> (i32, i32) {
    %c0_i32 = arith.constant 0 : i32
    %c0_i32_0 = arith.constant 0 : i32
    %c0_i32_1 = arith.constant 0 : i32
    return %c0_i32, %c0_i32_0 : i32, i32
  }
  func.func @transform_2(%arg0: i32) -> (i32, i32) {
    %c0_i32 = arith.constant 0 : i32
    %c0_i32_0 = arith.constant 0 : i32
    %c0_i32_1 = arith.constant 0 : i32
    return %c0_i32, %c0_i32_0 : i32, i32
  }
  func.func @transform_3(%arg0: i32) -> (i32, i32) {
    %c0_i32 = arith.constant 0 : i32
    %c0_i32_0 = arith.constant 0 : i32
    %c0_i32_1 = arith.constant 0 : i32
    return %c0_i32, %c0_i32_0 : i32, i32
  }
}

</mosaic_0001>

<llo_original>
// kernel: nano_model_forward.3
$region0: #{nano_model_forward.3}
  #allocation0 [shape = 'u32[]', space=smem, size = 0x4, offset = 0x4, fixed_abs, tag = 'smem constant byte address 0x4 - core index']
  #allocation1 [shape = 'u32[144,128]{1,0:T(1,128)}', space=vmem, size = 0x12000, scoped, tag = 'internal scratch']
  %s0 = inlined_call_operand.vmem [shape: f32[392,144], index: 0, kind: input, shape index: {}]
  %s1 = inlined_call_operand.vmem [shape: f32[144,128], index: 1, kind: input, shape index: {}]
  %s2 = inlined_call_operand.vmem [shape: f32[1,128], index: 2, kind: input, shape index: {}]
  %s3 = inlined_call_operand.vmem [shape: f32[1,128], index: 3, kind: input, shape index: {}]
  %s4 = inlined_call_operand.vmem [shape: f32[392,128], index: 4, kind: output, shape index: {}]
  %s5 = sld [smem:[#allocation0]]
  $region26: #{nano_model_forward.3} parent=0
    _
  %s7 = ssub.s32 1, %s5
  %s8 = scalar_select 0, %s7, %s5
  // Predicated region
  $region2: #{nano_model_forward.3} parent=0 // pred_check
    _
  $region3: #{nano_model_forward.3} parent=0 // pred_check_branch
    %10 = sbr.rel (0) target = $region5
  $region4: #{nano_model_forward.3} parent=0 // pred_region
    _
  $region5: #{nano_model_forward.3} parent=0 // pred_fallthru
    _
  // Predicated region
  $region6: #{nano_model_forward.3} parent=0 // pred_check
    _
  $region7: #{nano_model_forward.3} parent=0 // pred_check_branch
    %12 = sbr.rel (0) target = $region9
  $region8: #{nano_model_forward.3} parent=0 // pred_region
    _
  $region9: #{nano_model_forward.3} parent=0 // pred_fallthru
    _
  // Predicated region
  $region10: #{nano_model_forward.3} parent=0 // pred_check
    _
  $region11: #{nano_model_forward.3} parent=0 // pred_check_branch
    %14 = sbr.rel (0) target = $region13
  $region12: #{nano_model_forward.3} parent=0 // pred_region
    _
  $region13: #{nano_model_forward.3} parent=0 // pred_fallthru
    _
  // Predicated region
  $region14: #{nano_model_forward.3} parent=0 // pred_check
    _
  $region15: #{nano_model_forward.3} parent=0 // pred_check_branch
    %16 = sbr.rel (0) target = $region17
  $region16: #{nano_model_forward.3} parent=0 // pred_region
    _
  $region17: #{nano_model_forward.3} parent=0 // pred_fallthru
    _
  %v17 = vld [vmem:[%s0] sm:$0xff]
  %v18 = vld [vmem:[%s0 + $0x8] sm:$0xff]
  %v19 = vld [vmem:[%s0 + $0x10] sm:$0xff]
  %v20 = vld [vmem:[%s0 + $0x18] sm:$0xff]
  %v21 = vld [vmem:[%s0 + $0x20] sm:$0xff]
  %v22 = vld [vmem:[%s0 + $0x28] sm:$0xff]
  %v23 = vld [vmem:[%s0 + $0x30] sm:$0xff]
  %v24 = vld [vmem:[%s0 + $0x38] sm:$0xff]
  %v25 = vld [vmem:[%s0 + $0x40] sm:$0xff]
  %v26 = vld [vmem:[%s0 + $0x48] sm:$0xff]
  %v27 = vld [vmem:[%s0 + $0x50] sm:$0xff]
  %v28 = vld [vmem:[%s0 + $0x58] sm:$0xff]
  %v29 = vld [vmem:[%s0 + $0x60] sm:$0xff]
  %v30 = vld [vmem:[%s0 + $0x68] sm:$0xff]
  %v31 = vld [vmem:[%s0 + $0x70] sm:$0xff]
  %v32 = vld [vmem:[%s0 + $0x78] sm:$0xff]
  %v33 = vld [vmem:[%s0 + $0x80] sm:$0xff]
  %v34 = vld [vmem:[%s0 + $0x88] sm:$0xff]
  %v35 = vld [vmem:[%s0 + $0x90] sm:$0xff]
  %v36 = vld [vmem:[%s0 + $0x98] sm:$0xff]
  %v37 = vld [vmem:[%s0 + $0xa0] sm:$0xff]
  %v38 = vld [vmem:[%s0 + $0xa8] sm:$0xff]
  %v39 = vld [vmem:[%s0 + $0xb0] sm:$0xff]
  %v40 = vld [vmem:[%s0 + $0xb8] sm:$0xff]
  %v41 = vld [vmem:[%s0 + $0xc0] sm:$0xff]
  %v42 = vld [vmem:[%s0 + $0xc8] sm:$0xff]
  %v43 = vld [vmem:[%s0 + $0xd0] sm:$0xff]
  %v44 = vld [vmem:[%s0 + $0xd8] sm:$0xff]
  %v45 = vld [vmem:[%s0 + $0xe0] sm:$0xff]
  %v46 = vld [vmem:[%s0 + $0xe8] sm:$0xff]
  %v47 = vld [vmem:[%s0 + $0xf0] sm:$0xff]
  %v48 = vld [vmem:[%s0 + $0xf8] sm:$0xff]
  %v49 = vld [vmem:[%s0 + $0x100] sm:$0xff]
  %v50 = vld [vmem:[%s0 + $0x108] sm:$0xff]
  %v51 = vld [vmem:[%s0 + $0x110] sm:$0xff]
  %v52 = vld [vmem:[%s0 + $0x118] sm:$0xff]
  %v53 = vld [vmem:[%s0 + $0x120] sm:$0xff]
  %v54 = vld [vmem:[%s0 + $0x128] sm:$0xff]
  %v55 = vld [vmem:[%s0 + $0x130] sm:$0xff]
  %v56 = vld [vmem:[%s0 + $0x138] sm:$0xff]
  %v57 = vld [vmem:[%s0 + $0x140] sm:$0xff]
  %v58 = vld [vmem:[%s0 + $0x148] sm:$0xff]
  %v59 = vld [vmem:[%s0 + $0x150] sm:$0xff]
  %v60 = vld [vmem:[%s0 + $0x158] sm:$0xff]
  %v61 = vld [vmem:[%s0 + $0x160] sm:$0xff]
  %v62 = vld [vmem:[%s0 + $0x168] sm:$0xff]
  %v63 = vld [vmem:[%s0 + $0x170] sm:$0xff]
  %v64 = vld [vmem:[%s0 + $0x178] sm:$0xff]
  %v65 = vld [vmem:[%s0 + $0x180] sm:$0xff]
  %v66 = vld [vmem:[%s0 + $0x188] sm:$0xff]
  %v67 = vld [vmem:[%s0 + $0x190] sm:$0xff]
  %v68 = vld [vmem:[%s0 + $0x198] sm:$0xff]
  %v69 = vld [vmem:[%s0 + $0x1a0] sm:$0xff]
  %v70 = vld [vmem:[%s0 + $0x1a8] sm:$0xff]
  %v71 = vld [vmem:[%s0 + $0x1b0] sm:$0xff]
  %v72 = vld [vmem:[%s0 + $0x1b8] sm:$0xff]
  %v73 = vld [vmem:[%s0 + $0x1c0] sm:$0xff]
  %v74 = vld [vmem:[%s0 + $0x1c8] sm:$0xff]
  %v75 = vld [vmem:[%s0 + $0x1d0] sm:$0xff]
  %v76 = vld [vmem:[%s0 + $0x1d8] sm:$0xff]
  %v77 = vld [vmem:[%s0 + $0x1e0] sm:$0xff]
  %v78 = vld [vmem:[%s0 + $0x1e8] sm:$0xff]
  %v79 = vld [vmem:[%s0 + $0x1f0] sm:$0xff]
  %v80 = vld [vmem:[%s0 + $0x1f8] sm:$0xff]
  %v81 = vld [vmem:[%s0 + $0x200] sm:$0xff]
  %v82 = vld [vmem:[%s0 + $0x208] sm:$0xff]
  %v83 = vld [vmem:[%s0 + $0x210] sm:$0xff]
  %v84 = vld [vmem:[%s0 + $0x218] sm:$0xff]
  %v85 = vld [vmem:[%s0 + $0x220] sm:$0xff]
  %v86 = vld [vmem:[%s0 + $0x228] sm:$0xff]
  %v87 = vld [vmem:[%s0 + $0x230] sm:$0xff]
  %v88 = vld [vmem:[%s0 + $0x238] sm:$0xff]
  %v89 = vld [vmem:[%s0 + $0x240] sm:$0xff]
  %v90 = vld [vmem:[%s0 + $0x248] sm:$0xff]
  %v91 = vld [vmem:[%s0 + $0x250] sm:$0xff]
  %v92 = vld [vmem:[%s0 + $0x258] sm:$0xff]
  %v93 = vld [vmem:[%s0 + $0x260] sm:$0xff]
  %v94 = vld [vmem:[%s0 + $0x268] sm:$0xff]
  %v95 = vld [vmem:[%s0 + $0x270] sm:$0xff]
  %v96 = vld [vmem:[%s0 + $0x278] sm:$0xff]
  %v97 = vld [vmem:[%s0 + $0x280] sm:$0xff]
  %v98 = vld [vmem:[%s0 + $0x288] sm:$0xff]
  %v99 = vld [vmem:[%s0 + $0x290] sm:$0xff]
  %v100 = vld [vmem:[%s0 + $0x298] sm:$0xff]
  %v101 = vld [vmem:[%s0 + $0x2a0] sm:$0xff]
  %v102 = vld [vmem:[%s0 + $0x2a8] sm:$0xff]
  %v103 = vld [vmem:[%s0 + $0x2b0] sm:$0xff]
  %v104 = vld [vmem:[%s0 + $0x2b8] sm:$0xff]
  %v105 = vld [vmem:[%s0 + $0x2c0] sm:$0xff]
  %v106 = vld [vmem:[%s0 + $0x2c8] sm:$0xff]
  %v107 = vld [vmem:[%s0 + $0x2d0] sm:$0xff]
  %v108 = vld [vmem:[%s0 + $0x2d8] sm:$0xff]
  %v109 = vld [vmem:[%s0 + $0x2e0] sm:$0xff]
  %v110 = vld [vmem:[%s0 + $0x2e8] sm:$0xff]
  %v111 = vld [vmem:[%s0 + $0x2f0] sm:$0xff]
  %v112 = vld [vmem:[%s0 + $0x2f8] sm:$0xff]
  %v113 = vld [vmem:[%s0 + $0x300] sm:$0xff]
  %v114 = vld [vmem:[%s0 + $0x308] sm:$0xff]
  %v115 = vld [vmem:[%s1] sm:$0xff]
  %v116 = vld [vmem:[%s1 + $0x8] sm:$0xff]
  %v117 = vld [vmem:[%s1 + $0x10] sm:$0xff]
  %v118 = vld [vmem:[%s1 + $0x18] sm:$0xff]
  %v119 = vld [vmem:[%s1 + $0x20] sm:$0xff]
  %v120 = vld [vmem:[%s1 + $0x28] sm:$0xff]
  %v121 = vld [vmem:[%s1 + $0x30] sm:$0xff]
  %v122 = vld [vmem:[%s1 + $0x38] sm:$0xff]
  %v123 = vld [vmem:[%s1 + $0x40] sm:$0xff]
  %v124 = vld [vmem:[%s1 + $0x48] sm:$0xff]
  %v125 = vld [vmem:[%s1 + $0x50] sm:$0xff]
  %v126 = vld [vmem:[%s1 + $0x58] sm:$0xff]
  %v127 = vld [vmem:[%s1 + $0x60] sm:$0xff]
  %v128 = vld [vmem:[%s1 + $0x68] sm:$0xff]
  %v129 = vld [vmem:[%s1 + $0x70] sm:$0xff]
  %v130 = vld [vmem:[%s1 + $0x78] sm:$0xff]
  %v131 = vld [vmem:[%s1 + $0x80] sm:$0xff]
  %v132 = vld [vmem:[%s1 + $0x88] sm:$0xff]
  %vm133 = vcmask 130048
  %v135 = vsel %vm133, %v18, 0
  %v138 = vsel %vm133, %v20, 0
  %v141 = vsel %vm133, %v22, 0
  %v144 = vsel %vm133, %v24, 0
  %v147 = vsel %vm133, %v26, 0
  %v150 = vsel %vm133, %v28, 0
  %v153 = vsel %vm133, %v30, 0
  %v156 = vsel %vm133, %v32, 0
  %v159 = vsel %vm133, %v34, 0
  %v162 = vsel %vm133, %v36, 0
  %v165 = vsel %vm133, %v38, 0
  %v168 = vsel %vm133, %v40, 0
  %v171 = vsel %vm133, %v42, 0
  %v174 = vsel %vm133, %v44, 0
  %v177 = vsel %vm133, %v46, 0
  %v180 = vsel %vm133, %v48, 0
  %v183 = vsel %vm133, %v50, 0
  %v186 = vsel %vm133, %v52, 0
  %v189 = vsel %vm133, %v54, 0
  %v192 = vsel %vm133, %v56, 0
  %v195 = vsel %vm133, %v58, 0
  %v198 = vsel %vm133, %v60, 0
  %v201 = vsel %vm133, %v62, 0
  %v204 = vsel %vm133, %v64, 0
  %v207 = vsel %vm133, %v66, 0
  %v210 = vsel %vm133, %v68, 0
  %v213 = vsel %vm133, %v70, 0
  %v216 = vsel %vm133, %v72, 0
  %v219 = vsel %vm133, %v74, 0
  %v222 = vsel %vm133, %v76, 0
  %v225 = vsel %vm133, %v78, 0
  %v228 = vsel %vm133, %v80, 0
  %v231 = vsel %vm133, %v82, 0
  %v234 = vsel %vm133, %v84, 0
  %v237 = vsel %vm133, %v86, 0
  %v240 = vsel %vm133, %v88, 0
  %v243 = vsel %vm133, %v90, 0
  %v246 = vsel %vm133, %v92, 0
  %v249 = vsel %vm133, %v94, 0
  %v252 = vsel %vm133, %v96, 0
  %v255 = vsel %vm133, %v98, 0
  %v258 = vsel %vm133, %v100, 0
  %v261 = vsel %vm133, %v102, 0
  %v264 = vsel %vm133, %v104, 0
  %v267 = vsel %vm133, %v106, 0
  %v270 = vsel %vm133, %v108, 0
  %v273 = vsel %vm133, %v110, 0
  %v276 = vsel %vm133, %v112, 0
  %v279 = vsel %vm133, %v114, 0
  %281 = vmatprep.subr.mxu0 0.0
  %282 = vmatpush1.msra.mxu0 %v115
  %283 = vmatprep.subr.mxu0 0.0
  %284 = vmatpush1.msra.mxu0 %v116
  %285 = vmatprep.subr.mxu0 0.0
  %286 = vmatpush1.msra.mxu0 %v117
  %287 = vmatprep.subr.mxu0 0.0
  %288 = vmatpush1.msra.mxu0 %v118
  %289 = vmatprep.subr.mxu0 0.0
  %290 = vmatpush1.msra.mxu0 %v119
  %291 = vmatprep.subr.mxu0 0.0
  %292 = vmatpush1.msra.mxu0 %v120
  %293 = vmatprep.subr.mxu0 0.0
  %294 = vmatpush1.msra.mxu0 %v121
  %295 = vmatprep.subr.mxu0 0.0
  %296 = vmatpush1.msra.mxu0 %v122
  %297 = vmatprep.subr.mxu0 0.0
  %298 = vmatpush1.msra.mxu0 %v123
  %299 = vmatprep.subr.mxu0 0.0
  %300 = vmatpush1.msra.mxu0 %v124
  %301 = vmatprep.subr.mxu0 0.0
  %302 = vmatpush1.msra.mxu0 %v125
  %303 = vmatprep.subr.mxu0 0.0
  %304 = vmatpush1.msra.mxu0 %v126
  %305 = vmatprep.subr.mxu0 0.0
  %306 = vmatpush1.msra.mxu0 %v127
  %307 = vmatprep.subr.mxu0 0.0
  %308 = vmatpush1.msra.mxu0 %v128
  %309 = vmatprep.subr.mxu0 0.0
  %310 = vmatpush1.msra.mxu0 %v129
  %311 = vmatprep.subr.mxu0 0.0
  %312 = vmatpush1.msra.mxu0 %v130
  %313 = vmatprep.subr.mxu0 0.0
  %314 = vmatpush1.msra.mxu0 %v131
  %315 = vmatprep.subr.mxu0 0.0
  %316 = vmatpush1.msra.mxu0 %v132
  %317 = vmatprep.subr.mxu0 0.0
  %318 = vmatpush1.msra.mxu0 0.0
  %319 = vmatprep.subr.mxu0 0.0
  %320 = vmatpush1.msra.mxu0 0.0
  %321 = vmatprep.subr.mxu0 0.0
  %322 = vmatpush1.msra.mxu0 0.0
  %323 = vmatprep.subr.mxu0 0.0
  %324 = vmatpush1.msra.mxu0 0.0
  %325 = vmatprep.subr.mxu0 0.0
  %326 = vmatpush1.msra.mxu0 0.0
  %327 = vmatprep.subr.mxu0 0.0
  %328 = vmatpush1.msra.mxu0 0.0
  %329 = vmatprep.subr.mxu0 0.0
  %330 = vmatpush1.msra.mxu0 0.0
  %331 = vmatprep.subr.mxu0 0.0
  %332 = vmatpush1.msra.mxu0 0.0
  %333 = vmatprep.subr.mxu0 0.0
  %334 = vmatpush1.msra.mxu0 0.0
  %335 = vmatprep.subr.mxu0 0.0
  %336 = vmatpush1.msra.mxu0 0.0
  %337 = vmatprep.subr.mxu0 0.0
  %338 = vmatpush1.msra.mxu0 0.0
  %339 = vmatprep.subr.mxu0 0.0
  %340 = vmatpush1.msra.mxu0 0.0
  %341 = vmatprep.subr.mxu0 0.0
  %342 = vmatpush1.msra.mxu0 0.0
  %343 = vmatprep.subr.mxu0 0.0
  %344 = vmatpush1.msra.mxu0 0.0
  %345 = vmatprep.mubr.f32.mxu0 %v135
  %346 = vmatmul.mubr.f32.gmra.mrb[0].mxu0 %v17
  %v347 = vpop.f32.mrb[0].mxu0
  %v348 = vadd.f32 0.0, %v347
  %v349 = vpop.f32.mrb[0].mxu0
  %350 = vmatprep.mubr.f32.mxu0 %v138
  %351 = vmatmul.mubr.f32.gmra.mrb[0].mxu0 %v19
  %v352 = vpop.f32.mrb[0].mxu0
  %v353 = vadd.f32 0.0, %v352
  %v354 = vpop.f32.mrb[0].mxu0
  %355 = vmatprep.mubr.f32.mxu0 %v141
  %356 = vmatmul.mubr.f32.gmra.mrb[0].mxu0 %v21
  %v357 = vpop.f32.mrb[0].mxu0
  %v358 = vadd.f32 0.0, %v357
  %v359 = vpop.f32.mrb[0].mxu0
  %360 = vmatprep.mubr.f32.mxu0 %v144
  %361 = vmatmul.mubr.f32.gmra.mrb[0].mxu0 %v23
  %v362 = vpop.f32.mrb[0].mxu0
  %v363 = vadd.f32 0.0, %v362
  %v364 = vpop.f32.mrb[0].mxu0
  %365 = vmatprep.mubr.f32.mxu0 %v147
  %366 = vmatmul.mubr.f32.gmra.mrb[0].mxu0 %v25
  %v367 = vpop.f32.mrb[0].mxu0
  %v368 = vadd.f32 0.0, %v367
  %v369 = vpop.f32.mrb[0].mxu0
  %370 = vmatprep.mubr.f32.mxu0 %v150
  %371 = vmatmul.mubr.f32.gmra.mrb[0].mxu0 %v27
  %v372 = vpop.f32.mrb[0].mxu0
  %v373 = vadd.f32 0.0, %v372
  %v374 = vpop.f32.mrb[0].mxu0
  %375 = vmatprep.mubr.f32.mxu0 %v153
  %376 = vmatmul.mubr.f32.gmra.mrb[0].mxu0 %v29
  %v377 = vpop.f32.mrb[0].mxu0
  %v378 = vadd.f32 0.0, %v377
  %v379 = vpop.f32.mrb[0].mxu0
  %380 = vmatprep.mubr.f32.mxu0 %v156
  %381 = vmatmul.mubr.f32.gmra.mrb[0].mxu0 %v31
  %v382 = vpop.f32.mrb[0].mxu0
  %v383 = vadd.f32 0.0, %v382
  %v384 = vpop.f32.mrb[0].mxu0
  %385 = vmatprep.mubr.f32.mxu0 %v159
  %386 = vmatmul.mubr.f32.gmra.mrb[0].mxu0 %v33
  %v387 = vpop.f32.mrb[0].mxu0
  %v388 = vadd.f32 0.0, %v387
  %v389 = vpop.f32.mrb[0].mxu0
  %390 = vmatprep.mubr.f32.mxu0 %v162
  %391 = vmatmul.mubr.f32.gmra.mrb[0].mxu0 %v35
  %v392 = vpop.f32.mrb[0].mxu0
  %v393 = vadd.f32 0.0, %v392
  %v394 = vpop.f32.mrb[0].mxu0
  %395 = vmatprep.mubr.f32.mxu0 %v165
  %396 = vmatmul.mubr.f32.gmra.mrb[0].mxu0 %v37
  %v397 = vpop.f32.mrb[0].mxu0
  %v398 = vadd.f32 0.0, %v397
  %v399 = vpop.f32.mrb[0].mxu0
  %400 = vmatprep.mubr.f32.mxu0 %v168
  %401 = vmatmul.mubr.f32.gmra.mrb[0].mxu0 %v39
  %v402 = vpop.f32.mrb[0].mxu0
  %v403 = vadd.f32 0.0, %v402
  %v404 = vpop.f32.mrb[0].mxu0
  %405 = vmatprep.mubr.f32.mxu0 %v171
  %406 = vmatmul.mubr.f32.gmra.mrb[0].mxu0 %v41
  %v407 = vpop.f32.mrb[0].mxu0
  %v408 = vadd.f32 0.0, %v407
  %v409 = vpop.f32.mrb[0].mxu0
  %410 = vmatprep.mubr.f32.mxu0 %v174
  %411 = vmatmul.mubr.f32.gmra.mrb[0].mxu0 %v43
  %v412 = vpop.f32.mrb[0].mxu0
  %v413 = vadd.f32 0.0, %v412
  %v414 = vpop.f32.mrb[0].mxu0
  %415 = vmatprep.mubr.f32.mxu0 %v177
  %416 = vmatmul.mubr.f32.gmra.mrb[0].mxu0 %v45
  %v417 = vpop.f32.mrb[0].mxu0
  %v418 = vadd.f32 0.0, %v417
  %v419 = vpop.f32.mrb[0].mxu0
  %420 = vmatprep.mubr.f32.mxu0 %v180
  %421 = vmatmul.mubr.f32.gmra.mrb[0].mxu0 %v47
  %v422 = vpop.f32.mrb[0].mxu0
  %v423 = vadd.f32 0.0, %v422
  %v424 = vpop.f32.mrb[0].mxu0
  %425 = vmatprep.mubr.f32.mxu0 %v183
  %426 = vmatmul.mubr.f32.gmra.mrb[0].mxu0 %v49
  %v427 = vpop.f32.mrb[0].mxu0
  %v428 = vadd.f32 0.0, %v427
  %v429 = vpop.f32.mrb[0].mxu0
  %430 = vmatprep.mubr.f32.mxu0 %v186
  %431 = vmatmul.mubr.f32.gmra.mrb[0].mxu0 %v51
  %v432 = vpop.f32.mrb[0].mxu0
  %v433 = vadd.f32 0.0, %v432
  %v434 = vpop.f32.mrb[0].mxu0
  %435 = vmatprep.mubr.f32.mxu0 %v189
  %436 = vmatmul.mubr.f32.gmra.mrb[0].mxu0 %v53
  %v437 = vpop.f32.mrb[0].mxu0
  %v438 = vadd.f32 0.0, %v437
  %v439 = vpop.f32.mrb[0].mxu0
  %440 = vmatprep.mubr.f32.mxu0 %v192
  %441 = vmatmul.mubr.f32.gmra.mrb[0].mxu0 %v55
  %v442 = vpop.f32.mrb[0].mxu0
  %v443 = vadd.f32 0.0, %v442
  %v444 = vpop.f32.mrb[0].mxu0
  %445 = vmatprep.mubr.f32.mxu0 %v195
  %446 = vmatmul.mubr.f32.gmra.mrb[0].mxu0 %v57
  %v447 = vpop.f32.mrb[0].mxu0
  %v448 = vadd.f32 0.0, %v447
  %v449 = vpop.f32.mrb[0].mxu0
  %450 = vmatprep.mubr.f32.mxu0 %v198
  %451 = vmatmul.mubr.f32.gmra.mrb[0].mxu0 %v59
  %v452 = vpop.f32.mrb[0].mxu0
  %v453 = vadd.f32 0.0, %v452
  %v454 = vpop.f32.mrb[0].mxu0
  %455 = vmatprep.mubr.f32.mxu0 %v201
  %456 = vmatmul.mubr.f32.gmra.mrb[0].mxu0 %v61
  %v457 = vpop.f32.mrb[0].mxu0
  %v458 = vadd.f32 0.0, %v457
  %v459 = vpop.f32.mrb[0].mxu0
  %460 = vmatprep.mubr.f32.mxu0 %v204
  %461 = vmatmul.mubr.f32.gmra.mrb[0].mxu0 %v63
  %v462 = vpop.f32.mrb[0].mxu0
  %v463 = vadd.f32 0.0, %v462
  %v464 = vpop.f32.mrb[0].mxu0
  %465 = vmatprep.mubr.f32.mxu0 %v207
  %466 = vmatmul.mubr.f32.gmra.mrb[0].mxu0 %v65
  %v467 = vpop.f32.mrb[0].mxu0
  %v468 = vadd.f32 0.0, %v467
  %v469 = vpop.f32.mrb[0].mxu0
  %470 = vmatprep.mubr.f32.mxu0 %v210
  %471 = vmatmul.mubr.f32.gmra.mrb[0].mxu0 %v67
  %v472 = vpop.f32.mrb[0].mxu0
  %v473 = vadd.f32 0.0, %v472
  %v474 = vpop.f32.mrb[0].mxu0
  %475 = vmatprep.mubr.f32.mxu0 %v213
  %476 = vmatmul.mubr.f32.gmra.mrb[0].mxu0 %v69
  %v477 = vpop.f32.mrb[0].mxu0
  %v478 = vadd.f32 0.0, %v477
  %v479 = vpop.f32.mrb[0].mxu0
  %480 = vmatprep.mubr.f32.mxu0 %v216
  %481 = vmatmul.mubr.f32.gmra.mrb[0].mxu0 %v71
  %v482 = vpop.f32.mrb[0].mxu0
  %v483 = vadd.f32 0.0, %v482
  %v484 = vpop.f32.mrb[0].mxu0
  %485 = vmatprep.mubr.f32.mxu0 %v219
  %486 = vmatmul.mubr.f32.gmra.mrb[0].mxu0 %v73
  %v487 = vpop.f32.mrb[0].mxu0
  %v488 = vadd.f32 0.0, %v487
  %v489 = vpop.f32.mrb[0].mxu0
  %490 = vmatprep.mubr.f32.mxu0 %v222
  %491 = vmatmul.mubr.f32.gmra.mrb[0].mxu0 %v75
  %v492 = vpop.f32.mrb[0].mxu0
  %v493 = vadd.f32 0.0, %v492
  %v494 = vpop.f32.mrb[0].mxu0
  %495 = vmatprep.mubr.f32.mxu0 %v225
  %496 = vmatmul.mubr.f32.gmra.mrb[0].mxu0 %v77
  %v497 = vpop.f32.mrb[0].mxu0
  %v498 = vadd.f32 0.0, %v497
  %v499 = vpop.f32.mrb[0].mxu0
  %500 = vmatprep.mubr.f32.mxu0 %v228
  %501 = vmatmul.mubr.f32.gmra.mrb[0].mxu0 %v79
  %v502 = vpop.f32.mrb[0].mxu0
  %v503 = vadd.f32 0.0, %v502
  %v504 = vpop.f32.mrb[0].mxu0
  %505 = vmatprep.mubr.f32.mxu0 %v231
  %506 = vmatmul.mubr.f32.gmra.mrb[0].mxu0 %v81
  %v507 = vpop.f32.mrb[0].mxu0
  %v508 = vadd.f32 0.0, %v507
  %v509 = vpop.f32.mrb[0].mxu0
  %510 = vmatprep.mubr.f32.mxu0 %v234
  %511 = vmatmul.mubr.f32.gmra.mrb[0].mxu0 %v83
  %v512 = vpop.f32.mrb[0].mxu0
  %v513 = vadd.f32 0.0, %v512
  %v514 = vpop.f32.mrb[0].mxu0
  %515 = vmatprep.mubr.f32.mxu0 %v237
  %516 = vmatmul.mubr.f32.gmra.mrb[0].mxu0 %v85
  %v517 = vpop.f32.mrb[0].mxu0
  %v518 = vadd.f32 0.0, %v517
  %v519 = vpop.f32.mrb[0].mxu0
  %520 = vmatprep.mubr.f32.mxu0 %v240
  %521 = vmatmul.mubr.f32.gmra.mrb[0].mxu0 %v87
  %v522 = vpop.f32.mrb[0].mxu0
  %v523 = vadd.f32 0.0, %v522
  %v524 = vpop.f32.mrb[0].mxu0
  %525 = vmatprep.mubr.f32.mxu0 %v243
  %526 = vmatmul.mubr.f32.gmra.mrb[0].mxu0 %v89
  %v527 = vpop.f32.mrb[0].mxu0
  %v528 = vadd.f32 0.0, %v527
  %v529 = vpop.f32.mrb[0].mxu0
  %530 = vmatprep.mubr.f32.mxu0 %v246
  %531 = vmatmul.mubr.f32.gmra.mrb[0].mxu0 %v91
  %v532 = vpop.f32.mrb[0].mxu0
  %v533 = vadd.f32 0.0, %v532
  %v534 = vpop.f32.mrb[0].mxu0
  %535 = vmatprep.mubr.f32.mxu0 %v249
  %536 = vmatmul.mubr.f32.gmra.mrb[0].mxu0 %v93
  %v537 = vpop.f32.mrb[0].mxu0
  %v538 = vadd.f32 0.0, %v537
  %v539 = vpop.f32.mrb[0].mxu0
  %540 = vmatprep.mubr.f32.mxu0 %v252
  %541 = vmatmul.mubr.f32.gmra.mrb[0].mxu0 %v95
  %v542 = vpop.f32.mrb[0].mxu0
  %v543 = vadd.f32 0.0, %v542
  %v544 = vpop.f32.mrb[0].mxu0
  %545 = vmatprep.mubr.f32.mxu0 %v255
  %546 = vmatmul.mubr.f32.gmra.mrb[0].mxu0 %v97
  %v547 = vpop.f32.mrb[0].mxu0
  %v548 = vadd.f32 0.0, %v547
  %v549 = vpop.f32.mrb[0].mxu0
  %550 = vmatprep.mubr.f32.mxu0 %v258
  %551 = vmatmul.mubr.f32.gmra.mrb[0].mxu0 %v99
  %v552 = vpop.f32.mrb[0].mxu0
  %v553 = vadd.f32 0.0, %v552
  %v554 = vpop.f32.mrb[0].mxu0
  %555 = vmatprep.mubr.f32.mxu0 %v261
  %556 = vmatmul.mubr.f32.gmra.mrb[0].mxu0 %v101
  %v557 = vpop.f32.mrb[0].mxu0
  %v558 = vadd.f32 0.0, %v557
  %v559 = vpop.f32.mrb[0].mxu0
  %560 = vmatprep.mubr.f32.mxu0 %v264
  %561 = vmatmul.mubr.f32.gmra.mrb[0].mxu0 %v103
  %v562 = vpop.f32.mrb[0].mxu0
  %v563 = vadd.f32 0.0, %v562
  %v564 = vpop.f32.mrb[0].mxu0
  %565 = vmatprep.mubr.f32.mxu0 %v267
  %566 = vmatmul.mubr.f32.gmra.mrb[0].mxu0 %v105
  %v567 = vpop.f32.mrb[0].mxu0
  %v568 = vadd.f32 0.0, %v567
  %v569 = vpop.f32.mrb[0].mxu0
  %570 = vmatprep.mubr.f32.mxu0 %v270
  %571 = vmatmul.mubr.f32.gmra.mrb[0].mxu0 %v107
  %v572 = vpop.f32.mrb[0].mxu0
  %v573 = vadd.f32 0.0, %v572
  %v574 = vpop.f32.mrb[0].mxu0
  %575 = vmatprep.mubr.f32.mxu0 %v273
  %576 = vmatmul.mubr.f32.gmra.mrb[0].mxu0 %v109
  %v577 = vpop.f32.mrb[0].mxu0
  %v578 = vadd.f32 0.0, %v577
  %v579 = vpop.f32.mrb[0].mxu0
  %580 = vmatprep.mubr.f32.mxu0 %v276
  %581 = vmatmul.mubr.f32.gmra.mrb[0].mxu0 %v111
  %v582 = vpop.f32.mrb[0].mxu0
  %v583 = vadd.f32 0.0, %v582
  %v584 = vpop.f32.mrb[0].mxu0
  %585 = vmatprep.mubr.f32.mxu0 %v279
  %586 = vmatmul.mubr.f32.gmra.mrb[0].mxu0 %v113
  %v587 = vpop.f32.mrb[0].mxu0
  %v588 = vadd.f32 0.0, %v587
  %v589 = vpop.f32.mrb[0].mxu0
  %590 = vdwg.mxu0
  %v591 = vadd.f32 %v348, %v353
  %v592 = vadd.f32 %v591, %v358
  %v593 = vadd.f32 %v592, %v363
  %v594 = vadd.f32 %v593, %v368
  %v595 = vadd.f32 %v594, %v373
  %v596 = vadd.f32 %v595, %v378
  %v597 = vadd.f32 %v596, %v383
  %v598 = vadd.f32 %v597, %v388
  %v599 = vadd.f32 %v598, %v393
  %v600 = vadd.f32 %v599, %v398
  %v601 = vadd.f32 %v600, %v403
  %v602 = vadd.f32 %v601, %v408
  %v603 = vadd.f32 %v602, %v413
  %v604 = vadd.f32 %v603, %v418
  %v605 = vadd.f32 %v604, %v423
  %v606 = vadd.f32 %v605, %v428
  %v607 = vadd.f32 %v606, %v433
  %v608 = vadd.f32 %v607, %v438
  %v609 = vadd.f32 %v608, %v443
  %v610 = vadd.f32 %v609, %v448
  %v611 = vadd.f32 %v610, %v453
  %v612 = vadd.f32 %v611, %v458
  %v613 = vadd.f32 %v612, %v463
  %v614 = vadd.f32 %v613, %v468
  %v615 = vadd.f32 %v614, %v473
  %v616 = vadd.f32 %v615, %v478
  %v617 = vadd.f32 %v616, %v483
  %v618 = vadd.f32 %v617, %v488
  %v619 = vadd.f32 %v618, %v493
  %v620 = vadd.f32 %v619, %v498
  %v621 = vadd.f32 %v620, %v503
  %v622 = vadd.f32 %v621, %v508
  %v623 = vadd.f32 %v622, %v513
  %v624 = vadd.f32 %v623, %v518
  %v625 = vadd.f32 %v624, %v523
  %v626 = vadd.f32 %v625, %v528
  %v627 = vadd.f32 %v626, %v533
  %v628 = vadd.f32 %v627, %v538
  %v629 = vadd.f32 %v628, %v543
  %v630 = vadd.f32 %v629, %v548
  %v631 = vadd.f32 %v630, %v553
  %v632 = vadd.f32 %v631, %v558
  %v633 = vadd.f32 %v632, %v563
  %v634 = vadd.f32 %v633, %v568
  %v635 = vadd.f32 %v634, %v573
  %v636 = vadd.f32 %v635, %v578
  %v637 = vadd.f32 %v636, %v583
  %v638 = vadd.f32 %v637, %v588
  %v639 = vrot.slane %v638, 4
  %v640 = vadd.f32 %v638, %v639
  %v641 = vrot.slane %v640, 2
  %v642 = vadd.f32 %v640, %v641
  %v643 = vrot.slane %v642, 1
  %v644 = vadd.f32 %v642, %v643
  %v645 = vmul.f32 %v644, 0.0025510204
  %v646 = vsub.f32 %v348, %v645
  %v647 = vsub.f32 %v353, %v645
  %v648 = vsub.f32 %v358, %v645
  %v649 = vsub.f32 %v363, %v645
  %v650 = vsub.f32 %v368, %v645
  %v651 = vsub.f32 %v373, %v645
  %v652 = vsub.f32 %v378, %v645
  %v653 = vsub.f32 %v383, %v645
  %v654 = vsub.f32 %v388, %v645
  %v655 = vsub.f32 %v393, %v645
  %v656 = vsub.f32 %v398, %v645
  %v657 = vsub.f32 %v403, %v645
  %v658 = vsub.f32 %v408, %v645
  %v659 = vsub.f32 %v413, %v645
  %v660 = vsub.f32 %v418, %v645
  %v661 = vsub.f32 %v423, %v645
  %v662 = vsub.f32 %v428, %v645
  %v663 = vsub.f32 %v433, %v645
  %v664 = vsub.f32 %v438, %v645
  %v665 = vsub.f32 %v443, %v645
  %v666 = vsub.f32 %v448, %v645
  %v667 = vsub.f32 %v453, %v645
  %v668 = vsub.f32 %v458, %v645
  %v669 = vsub.f32 %v463, %v645
  %v670 = vsub.f32 %v468, %v645
  %v671 = vsub.f32 %v473, %v645
  %v672 = vsub.f32 %v478, %v645
  %v673 = vsub.f32 %v483, %v645
  %v674 = vsub.f32 %v488, %v645
  %v675 = vsub.f32 %v493, %v645
  %v676 = vsub.f32 %v498, %v645
  %v677 = vsub.f32 %v503, %v645
  %v678 = vsub.f32 %v508, %v645
  %v679 = vsub.f32 %v513, %v645
  %v680 = vsub.f32 %v518, %v645
  %v681 = vsub.f32 %v523, %v645
  %v682 = vsub.f32 %v528, %v645
  %v683 = vsub.f32 %v533, %v645
  %v684 = vsub.f32 %v538, %v645
  %v685 = vsub.f32 %v543, %v645
  %v686 = vsub.f32 %v548, %v645
  %v687 = vsub.f32 %v553, %v645
  %v688 = vsub.f32 %v558, %v645
  %v689 = vsub.f32 %v563, %v645
  %v690 = vsub.f32 %v568, %v645
  %v691 = vsub.f32 %v573, %v645
  %v692 = vsub.f32 %v578, %v645
  %v693 = vsub.f32 %v583, %v645
  %v694 = vsub.f32 %v588, %v645
  %v695 = vmul.f32 %v646, %v646
  %v696 = vmul.f32 %v647, %v647
  %v697 = vmul.f32 %v648, %v648
  %v698 = vmul.f32 %v649, %v649
  %v699 = vmul.f32 %v650, %v650
  %v700 = vmul.f32 %v651, %v651
  %v701 = vmul.f32 %v652, %v652
  %v702 = vmul.f32 %v653, %v653
  %v703 = vmul.f32 %v654, %v654
  %v704 = vmul.f32 %v655, %v655
  %v705 = vmul.f32 %v656, %v656
  %v706 = vmul.f32 %v657, %v657
  %v707 = vmul.f32 %v658, %v658
  %v708 = vmul.f32 %v659, %v659
  %v709 = vmul.f32 %v660, %v660
  %v710 = vmul.f32 %v661, %v661
  %v711 = vmul.f32 %v662, %v662
  %v712 = vmul.f32 %v663, %v663
  %v713 = vmul.f32 %v664, %v664
  %v714 = vmul.f32 %v665, %v665
  %v715 = vmul.f32 %v666, %v666
  %v716 = vmul.f32 %v667, %v667
  %v717 = vmul.f32 %v668, %v668
  %v718 = vmul.f32 %v669, %v669
  %v719 = vmul.f32 %v670, %v670
  %v720 = vmul.f32 %v671, %v671
  %v721 = vmul.f32 %v672, %v672
  %v722 = vmul.f32 %v673, %v673
  %v723 = vmul.f32 %v674, %v674
  %v724 = vmul.f32 %v675, %v675
  %v725 = vmul.f32 %v676, %v676
  %v726 = vmul.f32 %v677, %v677
  %v727 = vmul.f32 %v678, %v678
  %v728 = vmul.f32 %v679, %v679
  %v729 = vmul.f32 %v680, %v680
  %v730 = vmul.f32 %v681, %v681
  %v731 = vmul.f32 %v682, %v682
  %v732 = vmul.f32 %v683, %v683
  %v733 = vmul.f32 %v684, %v684
  %v734 = vmul.f32 %v685, %v685
  %v735 = vmul.f32 %v686, %v686
  %v736 = vmul.f32 %v687, %v687
  %v737 = vmul.f32 %v688, %v688
  %v738 = vmul.f32 %v689, %v689
  %v739 = vmul.f32 %v690, %v690
  %v740 = vmul.f32 %v691, %v691
  %v741 = vmul.f32 %v692, %v692
  %v742 = vmul.f32 %v693, %v693
  %v743 = vmul.f32 %v694, %v694
  %v744 = vadd.f32 %v695, %v696
  %v745 = vadd.f32 %v744, %v697
  %v746 = vadd.f32 %v745, %v698
  %v747 = vadd.f32 %v746, %v699
  %v748 = vadd.f32 %v747, %v700
  %v749 = vadd.f32 %v748, %v701
  %v750 = vadd.f32 %v749, %v702
  %v751 = vadd.f32 %v750, %v703
  %v752 = vadd.f32 %v751, %v704
  %v753 = vadd.f32 %v752, %v705
  %v754 = vadd.f32 %v753, %v706
  %v755 = vadd.f32 %v754, %v707
  %v756 = vadd.f32 %v755, %v708
  %v757 = vadd.f32 %v756, %v709
  %v758 = vadd.f32 %v757, %v710
  %v759 = vadd.f32 %v758, %v711
  %v760 = vadd.f32 %v759, %v712
  %v761 = vadd.f32 %v760, %v713
  %v762 = vadd.f32 %v761, %v714
  %v763 = vadd.f32 %v762, %v715
  %v764 = vadd.f32 %v763, %v716
  %v765 = vadd.f32 %v764, %v717
  %v766 = vadd.f32 %v765, %v718
  %v767 = vadd.f32 %v766, %v719
  %v768 = vadd.f32 %v767, %v720
  %v769 = vadd.f32 %v768, %v721
  %v770 = vadd.f32 %v769, %v722
  %v771 = vadd.f32 %v770, %v723
  %v772 = vadd.f32 %v771, %v724
  %v773 = vadd.f32 %v772, %v725
  %v774 = vadd.f32 %v773, %v726
  %v775 = vadd.f32 %v774, %v727
  %v776 = vadd.f32 %v775, %v728
  %v777 = vadd.f32 %v776, %v729
  %v778 = vadd.f32 %v777, %v730
  %v779 = vadd.f32 %v778, %v731
  %v780 = vadd.f32 %v779, %v732
  %v781 = vadd.f32 %v780, %v733
  %v782 = vadd.f32 %v781, %v734
  %v783 = vadd.f32 %v782, %v735
  %v784 = vadd.f32 %v783, %v736
  %v785 = vadd.f32 %v784, %v737
  %v786 = vadd.f32 %v785, %v738
  %v787 = vadd.f32 %v786, %v739
  %v788 = vadd.f32 %v787, %v740
  %v789 = vadd.f32 %v788, %v741
  %v790 = vadd.f32 %v789, %v742
  %v791 = vadd.f32 %v790, %v743
  %v792 = vrot.slane %v791, 4
  %v793 = vadd.f32 %v791, %v792
  %v794 = vrot.slane %v793, 2
  %v795 = vadd.f32 %v793, %v794
  %v796 = vrot.slane %v795, 1
  %v797 = vadd.f32 %v795, %v796
  %v798 = vmul.f32 %v797, 0.0025510204
  %v799 = vld [vmem:[%s2] sm:$0x1]
  %v800 = vadd.f32 %v798, 1e-05
  %v801 = vrsqrt.pop %v800
  %v802 = vmul.f32 %v799, %v801
  %v804 = vlaneseq
  %v805 = vshrl.u32 %v804, 7
  %v806 = vsub.s32 0, %v805
  %v807 = vrot.slane %v802, %v806
  %v809 = vmul.f32 %v646, %v807
  %v810 = vmul.f32 %v647, %v807
  %v811 = vmul.f32 %v648, %v807
  %v812 = vmul.f32 %v649, %v807
  %v813 = vmul.f32 %v650, %v807
  %v814 = vmul.f32 %v651, %v807
  %v815 = vmul.f32 %v652, %v807
  %v816 = vmul.f32 %v653, %v807
  %v817 = vmul.f32 %v654, %v807
  %v818 = vmul.f32 %v655, %v807
  %v819 = vmul.f32 %v656, %v807
  %v820 = vmul.f32 %v657, %v807
  %v821 = vmul.f32 %v658, %v807
  %v822 = vmul.f32 %v659, %v807
  %v823 = vmul.f32 %v660, %v807
  %v824 = vmul.f32 %v661, %v807
  %v825 = vmul.f32 %v662, %v807
  %v826 = vmul.f32 %v663, %v807
  %v827 = vmul.f32 %v664, %v807
  %v828 = vmul.f32 %v665, %v807
  %v829 = vmul.f32 %v666, %v807
  %v830 = vmul.f32 %v667, %v807
  %v831 = vmul.f32 %v668, %v807
  %v832 = vmul.f32 %v669, %v807
  %v833 = vmul.f32 %v670, %v807
  %v834 = vmul.f32 %v671, %v807
  %v835 = vmul.f32 %v672, %v807
  %v836 = vmul.f32 %v673, %v807
  %v837 = vmul.f32 %v674, %v807
  %v838 = vmul.f32 %v675, %v807
  %v839 = vmul.f32 %v676, %v807
  %v840 = vmul.f32 %v677, %v807
  %v841 = vmul.f32 %v678, %v807
  %v842 = vmul.f32 %v679, %v807
  %v843 = vmul.f32 %v680, %v807
  %v844 = vmul.f32 %v681, %v807
  %v845 = vmul.f32 %v682, %v807
  %v846 = vmul.f32 %v683, %v807
  %v847 = vmul.f32 %v684, %v807
  %v848 = vmul.f32 %v685, %v807
  %v849 = vmul.f32 %v686, %v807
  %v850 = vmul.f32 %v687, %v807
  %v851 = vmul.f32 %v688, %v807
  %v852 = vmul.f32 %v689, %v807
  %v853 = vmul.f32 %v690, %v807
  %v854 = vmul.f32 %v691, %v807
  %v855 = vmul.f32 %v692, %v807
  %v856 = vmul.f32 %v693, %v807
  %v857 = vmul.f32 %v694, %v807
  %v858 = vld [vmem:[%s3] sm:$0x1]
  %v860 = vlaneseq
  %v861 = vshrl.u32 %v860, 7
  %v862 = vsub.s32 0, %v861
  %v863 = vrot.slane %v858, %v862
  %v865 = vadd.f32 %v809, %v863
  %v866 = vadd.f32 %v810, %v863
  %v867 = vadd.f32 %v811, %v863
  %v868 = vadd.f32 %v812, %v863
  %v869 = vadd.f32 %v813, %v863
  %v870 = vadd.f32 %v814, %v863
  %v871 = vadd.f32 %v815, %v863
  %v872 = vadd.f32 %v816, %v863
  %v873 = vadd.f32 %v817, %v863
  %v874 = vadd.f32 %v818, %v863
  %v875 = vadd.f32 %v819, %v863
  %v876 = vadd.f32 %v820, %v863
  %v877 = vadd.f32 %v821, %v863
  %v878 = vadd.f32 %v822, %v863
  %v879 = vadd.f32 %v823, %v863
  %v880 = vadd.f32 %v824, %v863
  %v881 = vadd.f32 %v825, %v863
  %v882 = vadd.f32 %v826, %v863
  %v883 = vadd.f32 %v827, %v863
  %v884 = vadd.f32 %v828, %v863
  %v885 = vadd.f32 %v829, %v863
  %v886 = vadd.f32 %v830, %v863
  %v887 = vadd.f32 %v831, %v863
  %v888 = vadd.f32 %v832, %v863
  %v889 = vadd.f32 %v833, %v863
  %v890 = vadd.f32 %v834, %v863
  %v891 = vadd.f32 %v835, %v863
  %v892 = vadd.f32 %v836, %v863
  %v893 = vadd.f32 %v837, %v863
  %v894 = vadd.f32 %v838, %v863
  %v895 = vadd.f32 %v839, %v863
  %v896 = vadd.f32 %v840, %v863
  %v897 = vadd.f32 %v841, %v863
  %v898 = vadd.f32 %v842, %v863
  %v899 = vadd.f32 %v843, %v863
  %v900 = vadd.f32 %v844, %v863
  %v901 = vadd.f32 %v845, %v863
  %v902 = vadd.f32 %v846, %v863
  %v903 = vadd.f32 %v847, %v863
  %v904 = vadd.f32 %v848, %v863
  %v905 = vadd.f32 %v849, %v863
  %v906 = vadd.f32 %v850, %v863
  %v907 = vadd.f32 %v851, %v863
  %v908 = vadd.f32 %v852, %v863
  %v909 = vadd.f32 %v853, %v863
  %v910 = vadd.f32 %v854, %v863
  %v911 = vadd.f32 %v855, %v863
  %v912 = vadd.f32 %v856, %v863
  %v913 = vadd.f32 %v857, %v863
  %v914 = vmax.f32 %v865, 0.0
  %v915 = vmax.f32 %v866, 0.0
  %v916 = vmax.f32 %v867, 0.0
  %v917 = vmax.f32 %v868, 0.0
  %v918 = vmax.f32 %v869, 0.0
  %v919 = vmax.f32 %v870, 0.0
  %v920 = vmax.f32 %v871, 0.0
  %v921 = vmax.f32 %v872, 0.0
  %v922 = vmax.f32 %v873, 0.0
  %v923 = vmax.f32 %v874, 0.0
  %v924 = vmax.f32 %v875, 0.0
  %v925 = vmax.f32 %v876, 0.0
  %v926 = vmax.f32 %v877, 0.0
  %v927 = vmax.f32 %v878, 0.0
  %v928 = vmax.f32 %v879, 0.0
  %v929 = vmax.f32 %v880, 0.0
  %v930 = vmax.f32 %v881, 0.0
  %v931 = vmax.f32 %v882, 0.0
  %v932 = vmax.f32 %v883, 0.0
  %v933 = vmax.f32 %v884, 0.0
  %v934 = vmax.f32 %v885, 0.0
  %v935 = vmax.f32 %v886, 0.0
  %v936 = vmax.f32 %v887, 0.0
  %v937 = vmax.f32 %v888, 0.0
  %v938 = vmax.f32 %v889, 0.0
  %v939 = vmax.f32 %v890, 0.0
  %v940 = vmax.f32 %v891, 0.0
  %v941 = vmax.f32 %v892, 0.0
  %v942 = vmax.f32 %v893, 0.0
  %v943 = vmax.f32 %v894, 0.0
  %v944 = vmax.f32 %v895, 0.0
  %v945 = vmax.f32 %v896, 0.0
  %v946 = vmax.f32 %v897, 0.0
  %v947 = vmax.f32 %v898, 0.0
  %v948 = vmax.f32 %v899, 0.0
  %v949 = vmax.f32 %v900, 0.0
  %v950 = vmax.f32 %v901, 0.0
  %v951 = vmax.f32 %v902, 0.0
  %v952 = vmax.f32 %v903, 0.0
  %v953 = vmax.f32 %v904, 0.0
  %v954 = vmax.f32 %v905, 0.0
  %v955 = vmax.f32 %v906, 0.0
  %v956 = vmax.f32 %v907, 0.0
  %v957 = vmax.f32 %v908, 0.0
  %v958 = vmax.f32 %v909, 0.0
  %v959 = vmax.f32 %v910, 0.0
  %v960 = vmax.f32 %v911, 0.0
  %v961 = vmax.f32 %v912, 0.0
  %v962 = vmax.f32 %v913, 0.0
  %963 = vst [vmem:[%s4] sm:$0xff] %v914
  %964 = vst [vmem:[%s4 + $0x8] sm:$0xff] %v915
  %965 = vst [vmem:[%s4 + $0x10] sm:$0xff] %v916
  %966 = vst [vmem:[%s4 + $0x18] sm:$0xff] %v917
  %967 = vst [vmem:[%s4 + $0x20] sm:$0xff] %v918
  %968 = vst [vmem:[%s4 + $0x28] sm:$0xff] %v919
  %969 = vst [vmem:[%s4 + $0x30] sm:$0xff] %v920
  %970 = vst [vmem:[%s4 + $0x38] sm:$0xff] %v921
  %971 = vst [vmem:[%s4 + $0x40] sm:$0xff] %v922
  %972 = vst [vmem:[%s4 + $0x48] sm:$0xff] %v923
  %973 = vst [vmem:[%s4 + $0x50] sm:$0xff] %v924
  %974 = vst [vmem:[%s4 + $0x58] sm:$0xff] %v925
  %975 = vst [vmem:[%s4 + $0x60] sm:$0xff] %v926
  %976 = vst [vmem:[%s4 + $0x68] sm:$0xff] %v927
  %977 = vst [vmem:[%s4 + $0x70] sm:$0xff] %v928
  %978 = vst [vmem:[%s4 + $0x78] sm:$0xff] %v929
  %979 = vst [vmem:[%s4 + $0x80] sm:$0xff] %v930
  %980 = vst [vmem:[%s4 + $0x88] sm:$0xff] %v931
  %981 = vst [vmem:[%s4 + $0x90] sm:$0xff] %v932
  %982 = vst [vmem:[%s4 + $0x98] sm:$0xff] %v933
  %983 = vst [vmem:[%s4 + $0xa0] sm:$0xff] %v934
  %984 = vst [vmem:[%s4 + $0xa8] sm:$0xff] %v935
  %985 = vst [vmem:[%s4 + $0xb0] sm:$0xff] %v936
  %986 = vst [vmem:[%s4 + $0xb8] sm:$0xff] %v937
  %987 = vst [vmem:[%s4 + $0xc0] sm:$0xff] %v938
  %988 = vst [vmem:[%s4 + $0xc8] sm:$0xff] %v939
  %989 = vst [vmem:[%s4 + $0xd0] sm:$0xff] %v940
  %990 = vst [vmem:[%s4 + $0xd8] sm:$0xff] %v941
  %991 = vst [vmem:[%s4 + $0xe0] sm:$0xff] %v942
  %992 = vst [vmem:[%s4 + $0xe8] sm:$0xff] %v943
  %993 = vst [vmem:[%s4 + $0xf0] sm:$0xff] %v944
  %994 = vst [vmem:[%s4 + $0xf8] sm:$0xff] %v945
  %995 = vst [vmem:[%s4 + $0x100] sm:$0xff] %v946
  %996 = vst [vmem:[%s4 + $0x108] sm:$0xff] %v947
  %997 = vst [vmem:[%s4 + $0x110] sm:$0xff] %v948
  %998 = vst [vmem:[%s4 + $0x118] sm:$0xff] %v949
  %999 = vst [vmem:[%s4 + $0x120] sm:$0xff] %v950
  %1000 = vst [vmem:[%s4 + $0x128] sm:$0xff] %v951
  %1001 = vst [vmem:[%s4 + $0x130] sm:$0xff] %v952
  %1002 = vst [vmem:[%s4 + $0x138] sm:$0xff] %v953
  %1003 = vst [vmem:[%s4 + $0x140] sm:$0xff] %v954
  %1004 = vst [vmem:[%s4 + $0x148] sm:$0xff] %v955
  %1005 = vst [vmem:[%s4 + $0x150] sm:$0xff] %v956
  %1006 = vst [vmem:[%s4 + $0x158] sm:$0xff] %v957
  %1007 = vst [vmem:[%s4 + $0x160] sm:$0xff] %v958
  %1008 = vst [vmem:[%s4 + $0x168] sm:$0xff] %v959
  %1009 = vst [vmem:[%s4 + $0x170] sm:$0xff] %v960
  %1010 = vst [vmem:[%s4 + $0x178] sm:$0xff] %v961
  %1011 = vst [vmem:[%s4 + $0x180] sm:$0xff] %v962
  // Predicated region
  $region18: #{nano_model_forward.3} parent=0 // pred_check
    _
  $region19: #{nano_model_forward.3} parent=0 // pred_check_branch
    %1013 = sbr.rel (0) target = $region21
  $region20: #{nano_model_forward.3} parent=0 // pred_region
    _
  $region21: #{nano_model_forward.3} parent=0 // pred_fallthru
    _
  // Predicated region
  $region22: #{nano_model_forward.3} parent=0 // pred_check
    _
  $region23: #{nano_model_forward.3} parent=0 // pred_check_branch
    %1015 = sbr.rel (0) target = $region25
  $region24: #{nano_model_forward.3} parent=0 // pred_region
    _
  $region25: #{nano_model_forward.3} parent=0 // pred_fallthru
    _

// kernel: nano_model_forward.5
$region0: #{nano_model_forward.5}
  #allocation0 [shape = 'u32[]', space=smem, size = 0x4, offset = 0x4, fixed_abs, tag = 'smem constant byte address 0x4 - core index']
  #allocation1 [shape = 'u32[144,128]{1,0:T(1,128)}', space=vmem, size = 0x12000, scoped, tag = 'internal scratch']
  %s0 = inlined_call_operand.vmem [shape: f32[8,128], index: 0, kind: input, shape index: {}]
  %s1 = inlined_call_operand.vmem [shape: f32[128,128], index: 1, kind: input, shape index: {}]
  %s2 = inlined_call_operand.vmem [shape: f32[1,128], index: 2, kind: input, shape index: {}]
  %s3 = inlined_call_operand.vmem [shape: f32[8,128], index: 3, kind: output, shape index: {}]
  %s4 = sld [smem:[#allocation0]]
  $region22: #{nano_model_forward.5} parent=0
    _
  %s6 = ssub.s32 1, %s4
  %s7 = scalar_select 0, %s6, %s4
  // Predicated region
  $region2: #{nano_model_forward.5} parent=0 // pred_check
    _
  $region3: #{nano_model_forward.5} parent=0 // pred_check_branch
    %9 = sbr.rel (0) target = $region5
  $region4: #{nano_model_forward.5} parent=0 // pred_region
    _
  $region5: #{nano_model_forward.5} parent=0 // pred_fallthru
    _
  // Predicated region
  $region6: #{nano_model_forward.5} parent=0 // pred_check
    _
  $region7: #{nano_model_forward.5} parent=0 // pred_check_branch
    %11 = sbr.rel (0) target = $region9
  $region8: #{nano_model_forward.5} parent=0 // pred_region
    _
  $region9: #{nano_model_forward.5} parent=0 // pred_fallthru
    _
  // Predicated region
  $region10: #{nano_model_forward.5} parent=0 // pred_check
    _
  $region11: #{nano_model_forward.5} parent=0 // pred_check_branch
    %13 = sbr.rel (0) target = $region13
  $region12: #{nano_model_forward.5} parent=0 // pred_region
    _
  $region13: #{nano_model_forward.5} parent=0 // pred_fallthru
    _
  %v14 = vld [vmem:[%s0] sm:$0xff]
  %v15 = vld [vmem:[%s1] sm:$0xff]
  %v16 = vld [vmem:[%s1 + $0x8] sm:$0xff]
  %v17 = vld [vmem:[%s1 + $0x10] sm:$0xff]
  %v18 = vld [vmem:[%s1 + $0x18] sm:$0xff]
  %v19 = vld [vmem:[%s1 + $0x20] sm:$0xff]
  %v20 = vld [vmem:[%s1 + $0x28] sm:$0xff]
  %v21 = vld [vmem:[%s1 + $0x30] sm:$0xff]
  %v22 = vld [vmem:[%s1 + $0x38] sm:$0xff]
  %v23 = vld [vmem:[%s1 + $0x40] sm:$0xff]
  %v24 = vld [vmem:[%s1 + $0x48] sm:$0xff]
  %v25 = vld [vmem:[%s1 + $0x50] sm:$0xff]
  %v26 = vld [vmem:[%s1 + $0x58] sm:$0xff]
  %v27 = vld [vmem:[%s1 + $0x60] sm:$0xff]
  %v28 = vld [vmem:[%s1 + $0x68] sm:$0xff]
  %v29 = vld [vmem:[%s1 + $0x70] sm:$0xff]
  %v30 = vld [vmem:[%s1 + $0x78] sm:$0xff]
  %v31 = vld [vmem:[%s2] sm:$0x1]
  %v33 = vlaneseq
  %v34 = vshrl.u32 %v33, 7
  %v35 = vsub.s32 0, %v34
  %v36 = vrot.slane %v31, %v35
  %38 = vmatprep.subr.mxu0 0.0
  %39 = vmatpush1.msra.mxu0 %v15
  %40 = vmatprep.subr.mxu0 0.0
  %41 = vmatpush1.msra.mxu0 %v16
  %42 = vmatprep.subr.mxu0 0.0
  %43 = vmatpush1.msra.mxu0 %v17
  %44 = vmatprep.subr.mxu0 0.0
  %45 = vmatpush1.msra.mxu0 %v18
  %46 = vmatprep.subr.mxu0 0.0
  %47 = vmatpush1.msra.mxu0 %v19
  %48 = vmatprep.subr.mxu0 0.0
  %49 = vmatpush1.msra.mxu0 %v20
  %50 = vmatprep.subr.mxu0 0.0
  %51 = vmatpush1.msra.mxu0 %v21
  %52 = vmatprep.subr.mxu0 0.0
  %53 = vmatpush1.msra.mxu0 %v22
  %54 = vmatprep.subr.mxu0 0.0
  %55 = vmatpush1.msra.mxu0 %v23
  %56 = vmatprep.subr.mxu0 0.0
  %57 = vmatpush1.msra.mxu0 %v24
  %58 = vmatprep.subr.mxu0 0.0
  %59 = vmatpush1.msra.mxu0 %v25
  %60 = vmatprep.subr.mxu0 0.0
  %61 = vmatpush1.msra.mxu0 %v26
  %62 = vmatprep.subr.mxu0 0.0
  %63 = vmatpush1.msra.mxu0 %v27
  %64 = vmatprep.subr.mxu0 0.0
  %65 = vmatpush1.msra.mxu0 %v28
  %66 = vmatprep.subr.mxu0 0.0
  %67 = vmatpush1.msra.mxu0 %v29
  %68 = vmatprep.subr.mxu0 0.0
  %69 = vmatpush1.msra.mxu0 %v30
  %70 = vmatprep.subr.mxu0 0.0
  %71 = vmatpush1.msra.mxu0 0.0
  %72 = vmatprep.subr.mxu0 0.0
  %73 = vmatpush1.msra.mxu0 0.0
  %74 = vmatprep.subr.mxu0 0.0
  %75 = vmatpush1.msra.mxu0 0.0
  %76 = vmatprep.subr.mxu0 0.0
  %77 = vmatpush1.msra.mxu0 0.0
  %78 = vmatprep.subr.mxu0 0.0
  %79 = vmatpush1.msra.mxu0 0.0
  %80 = vmatprep.subr.mxu0 0.0
  %81 = vmatpush1.msra.mxu0 0.0
  %82 = vmatprep.subr.mxu0 0.0
  %83 = vmatpush1.msra.mxu0 0.0
  %84 = vmatprep.subr.mxu0 0.0
  %85 = vmatpush1.msra.mxu0 0.0
  %86 = vmatprep.subr.mxu0 0.0
  %87 = vmatpush1.msra.mxu0 0.0
  %88 = vmatprep.subr.mxu0 0.0
  %89 = vmatpush1.msra.mxu0 0.0
  %90 = vmatprep.subr.mxu0 0.0
  %91 = vmatpush1.msra.mxu0 0.0
  %92 = vmatprep.subr.mxu0 0.0
  %93 = vmatpush1.msra.mxu0 0.0
  %94 = vmatprep.subr.mxu0 0.0
  %95 = vmatpush1.msra.mxu0 0.0
  %96 = vmatprep.subr.mxu0 0.0
  %97 = vmatpush1.msra.mxu0 0.0
  %98 = vmatprep.subr.mxu0 0.0
  %99 = vmatpush1.msra.mxu0 0.0
  %100 = vmatprep.subr.mxu0 0.0
  %101 = vmatpush1.msra.mxu0 0.0
  %102 = vmatprep.mubr.f32.mxu0 0.0
  %103 = vmatmul.mubr.f32.gmra.mrb[0].mxu0 %v14
  %v104 = vpop.f32.mrb[0].mxu0
  %v105 = vadd.f32 %v36, %v104
  %v106 = vpop.f32.mrb[0].mxu0
  %107 = vdwg.mxu0
  %108 = vst [vmem:[%s3] sm:$0xff] %v105
  // Predicated region
  $region14: #{nano_model_forward.5} parent=0 // pred_check
    _
  $region15: #{nano_model_forward.5} parent=0 // pred_check_branch
    %110 = sbr.rel (0) target = $region17
  $region16: #{nano_model_forward.5} parent=0 // pred_region
    _
  $region17: #{nano_model_forward.5} parent=0 // pred_fallthru
    _
  // Predicated region
  $region18: #{nano_model_forward.5} parent=0 // pred_check
    _
  $region19: #{nano_model_forward.5} parent=0 // pred_check_branch
    %112 = sbr.rel (0) target = $region21
  $region20: #{nano_model_forward.5} parent=0 // pred_region
    _
  $region21: #{nano_model_forward.5} parent=0 // pred_fallthru
    _

// kernel: nano_model_forward.4
$region0: #{nano_model_forward.4}
  #allocation0 [shape = 'u32[]', space=smem, size = 0x4, offset = 0x4, fixed_abs, tag = 'smem constant byte address 0x4 - core index']
  #allocation1 [shape = 'u32[144,128]{1,0:T(1,128)}', space=vmem, size = 0x12000, scoped, tag = 'internal scratch']
  %s0 = inlined_call_operand.vmem [shape: f32[288,1152], index: 0, kind: input, shape index: {}]
  %s1 = inlined_call_operand.vmem [shape: f32[1152,128], index: 1, kind: input, shape index: {}]
  %s2 = inlined_call_operand.vmem [shape: f32[1,128], index: 2, kind: input, shape index: {}]
  %s3 = inlined_call_operand.vmem [shape: f32[1,128], index: 3, kind: input, shape index: {}]
  %s4 = inlined_call_operand.vmem [shape: f32[288,128], index: 4, kind: output, shape index: {}]
  %s5 = sld [smem:[#allocation0]]
  $region26: #{nano_model_forward.4} parent=0
    _
  %s7 = ssub.s32 1, %s5
  %s8 = scalar_select 0, %s7, %s5
  // Predicated region
  $region2: #{nano_model_forward.4} parent=0 // pred_check
    _
  $region3: #{nano_model_forward.4} parent=0 // pred_check_branch
    %10 = sbr.rel (0) target = $region5
  $region4: #{nano_model_forward.4} parent=0 // pred_region
    _
  $region5: #{nano_model_forward.4} parent=0 // pred_fallthru
    _
  // Predicated region
  $region6: #{nano_model_forward.4} parent=0 // pred_check
    _
  $region7: #{nano_model_forward.4} parent=0 // pred_check_branch
    %12 = sbr.rel (0) target = $region9
  $region8: #{nano_model_forward.4} parent=0 // pred_region
    _
  $region9: #{nano_model_forward.4} parent=0 // pred_fallthru
    _
  // Predicated region
  $region10: #{nano_model_forward.4} parent=0 // pred_check
    _
  $region11: #{nano_model_forward.4} parent=0 // pred_check_branch
    %14 = sbr.rel (0) target = $region13
  $region12: #{nano_model_forward.4} parent=0 // pred_region
    _
  $region13: #{nano_model_forward.4} parent=0 // pred_fallthru
    _
  // Predicated region
  $region14: #{nano_model_forward.4} parent=0 // pred_check
    _
  $region15: #{nano_model_forward.4} parent=0 // pred_check_branch
    %16 = sbr.rel (0) target = $region17
  $region16: #{nano_model_forward.4} parent=0 // pred_region
    _
  $region17: #{nano_model_forward.4} parent=0 // pred_fallthru
    _
  %v17 = vld [vmem:[%s0] sm:$0xff]
  %v18 = vld [vmem:[%s0 + $0x8] sm:$0xff]
  %v19 = vld [vmem:[%s0 + $0x10] sm:$0xff]
  %v20 = vld [vmem:[%s0 + $0x18] sm:$0xff]
  %v21 = vld [vmem:[%s0 + $0x20] sm:$0xff]
  %v22 = vld [vmem:[%s0 + $0x28] sm:$0xff]
  %v23 = vld [vmem:[%s0 + $0x30] sm:$0xff]
  %v24 = vld [vmem:[%s0 + $0x38] sm:$0xff]
  %v25 = vld [vmem:[%s0 + $0x40] sm:$0xff]
  %v26 = vld [vmem:[%s0 + $0x48] sm:$0xff]
  %v27 = vld [vmem:[%s0 + $0x50] sm:$0xff]
  %v28 = vld [vmem:[%s0 + $0x58] sm:$0xff]
  %v29 = vld [vmem:[%s0 + $0x60] sm:$0xff]
  %v30 = vld [vmem:[%s0 + $0x68] sm:$0xff]
  %v31 = vld [vmem:[%s0 + $0x70] sm:$0xff]
  %v32 = vld [vmem:[%s0 + $0x78] sm:$0xff]
  %v33 = vld [vmem:[%s0 + $0x80] sm:$0xff]
  %v34 = vld [vmem:[%s0 + $0x88] sm:$0xff]
  %v35 = vld [vmem:[%s0 + $0x90] sm:$0xff]
  %v36 = vld [vmem:[%s0 + $0x98] sm:$0xff]
  %v37 = vld [vmem:[%s0 + $0xa0] sm:$0xff]
  %v38 = vld [vmem:[%s0 + $0xa8] sm:$0xff]
  %v39 = vld [vmem:[%s0 + $0xb0] sm:$0xff]
  %v40 = vld [vmem:[%s0 + $0xb8] sm:$0xff]
  %v41 = vld [vmem:[%s0 + $0xc0] sm:$0xff]
  %v42 = vld [vmem:[%s0 + $0xc8] sm:$0xff]
  %v43 = vld [vmem:[%s0 + $0xd0] sm:$0xff]
  %v44 = vld [vmem:[%s0 + $0xd8] sm:$0xff]
  %v45 = vld [vmem:[%s0 + $0xe0] sm:$0xff]
  %v46 = vld [vmem:[%s0 + $0xe8] sm:$0xff]
  %v47 = vld [vmem:[%s0 + $0xf0] sm:$0xff]
  %v48 = vld [vmem:[%s0 + $0xf8] sm:$0xff]
  %v49 = vld [vmem:[%s0 + $0x100] sm:$0xff]
  %v50 = vld [vmem:[%s0 + $0x108] sm:$0xff]
  %v51 = vld [vmem:[%s0 + $0x110] sm:$0xff]
  %v52 = vld [vmem:[%s0 + $0x118] sm:$0xff]
  %v53 = vld [vmem:[%s0 + $0x120] sm:$0xff]
  %v54 = vld [vmem:[%s0 + $0x128] sm:$0xff]
  %v55 = vld [vmem:[%s0 + $0x130] sm:$0xff]
  %v56 = vld [vmem:[%s0 + $0x138] sm:$0xff]
  %v57 = vld [vmem:[%s0 + $0x140] sm:$0xff]
  %v58 = vld [vmem:[%s0 + $0x148] sm:$0xff]
  %v59 = vld [vmem:[%s0 + $0x150] sm:$0xff]
  %v60 = vld [vmem:[%s0 + $0x158] sm:$0xff]
  %v61 = vld [vmem:[%s0 + $0x160] sm:$0xff]
  %v62 = vld [vmem:[%s0 + $0x168] sm:$0xff]
  %v63 = vld [vmem:[%s0 + $0x170] sm:$0xff]
  %v64 = vld [vmem:[%s0 + $0x178] sm:$0xff]
  %v65 = vld [vmem:[%s0 + $0x180] sm:$0xff]
  %v66 = vld [vmem:[%s0 + $0x188] sm:$0xff]
  %v67 = vld [vmem:[%s0 + $0x190] sm:$0xff]
  %v68 = vld [vmem:[%s0 + $0x198] sm:$0xff]
  %v69 = vld [vmem:[%s0 + $0x1a0] sm:$0xff]
  %v70 = vld [vmem:[%s0 + $0x1a8] sm:$0xff]
  %v71 = vld [vmem:[%s0 + $0x1b0] sm:$0xff]
  %v72 = vld [vmem:[%s0 + $0x1b8] sm:$0xff]
  %v73 = vld [vmem:[%s0 + $0x1c0] sm:$0xff]
  %v74 = vld [vmem:[%s0 + $0x1c8] sm:$0xff]
  %v75 = vld [vmem:[%s0 + $0x1d0] sm:$0xff]
  %v76 = vld [vmem:[%s0 + $0x1d8] sm:$0xff]
  %v77 = vld [vmem:[%s0 + $0x1e0] sm:$0xff]
  %v78 = vld [vmem:[%s0 + $0x1e8] sm:$0xff]
  %v79 = vld [vmem:[%s0 + $0x1f0] sm:$0xff]
  %v80 = vld [vmem:[%s0 + $0x1f8] sm:$0xff]
  %v81 = vld [vmem:[%s0 + $0x200] sm:$0xff]
  %v82 = vld [vmem:[%s0 + $0x208] sm:$0xff]
  %v83 = vld [vmem:[%s0 + $0x210] sm:$0xff]
  %v84 = vld [vmem:[%s0 + $0x218] sm:$0xff]
  %v85 = vld [vmem:[%s0 + $0x220] sm:$0xff]
  %v86 = vld [vmem:[%s0 + $0x228] sm:$0xff]
  %v87 = vld [vmem:[%s0 + $0x230] sm:$0xff]
  %v88 = vld [vmem:[%s0 + $0x238] sm:$0xff]
  %v89 = vld [vmem:[%s0 + $0x240] sm:$0xff]
  %v90 = vld [vmem:[%s0 + $0x248] sm:$0xff]
  %v91 = vld [vmem:[%s0 + $0x250] sm:$0xff]
  %v92 = vld [vmem:[%s0 + $0x258] sm:$0xff]
  %v93 = vld [vmem:[%s0 + $0x260] sm:$0xff]
  %v94 = vld [vmem:[%s0 + $0x268] sm:$0xff]
  %v95 = vld [vmem:[%s0 + $0x270] sm:$0xff]
  %v96 = vld [vmem:[%s0 + $0x278] sm:$0xff]
  %v97 = vld [vmem:[%s0 + $0x280] sm:$0xff]
  %v98 = vld [vmem:[%s0 + $0x288] sm:$0xff]
  %v99 = vld [vmem:[%s0 + $0x290] sm:$0xff]
  %v100 = vld [vmem:[%s0 + $0x298] sm:$0xff]
  %v101 = vld [vmem:[%s0 + $0x2a0] sm:$0xff]
  %v102 = vld [vmem:[%s0 + $0x2a8] sm:$0xff]
  %v103 = vld [vmem:[%s0 + $0x2b0] sm:$0xff]
  %v104 = vld [vmem:[%s0 + $0x2b8] sm:$0xff]
  %v105 = vld [vmem:[%s0 + $0x2c0] sm:$0xff]
  %v106 = vld [vmem:[%s0 + $0x2c8] sm:$0xff]
  %v107 = vld [vmem:[%s0 + $0x2d0] sm:$0xff]
  %v108 = vld [vmem:[%s0 + $0x2d8] sm:$0xff]
  %v109 = vld [vmem:[%s0 + $0x2e0] sm:$0xff]
  %v110 = vld [vmem:[%s0 + $0x2e8] sm:$0xff]
  %v111 = vld [vmem:[%s0 + $0x2f0] sm:$0xff]
  %v112 = vld [vmem:[%s0 + $0x2f8] sm:$0xff]
  %v113 = vld [vmem:[%s0 + $0x300] sm:$0xff]
  %v114 = vld [vmem:[%s0 + $0x308] sm:$0xff]
  %v115 = vld [vmem:[%s0 + $0x310] sm:$0xff]
  %v116 = vld [vmem:[%s0 + $0x318] sm:$0xff]
  %v117 = vld [vmem:[%s0 + $0x320] sm:$0xff]
  %v118 = vld [vmem:[%s0 + $0x328] sm:$0xff]
  %v119 = vld [vmem:[%s0 + $0x330] sm:$0xff]
  %v120 = vld [vmem:[%s0 + $0x338] sm:$0xff]
  %v121 = vld [vmem:[%s0 + $0x340] sm:$0xff]
  %v122 = vld [vmem:[%s0 + $0x348] sm:$0xff]
  %v123 = vld [vmem:[%s0 + $0x350] sm:$0xff]
  %v124 = vld [vmem:[%s0 + $0x358] sm:$0xff]
  %v125 = vld [vmem:[%s0 + $0x360] sm:$0xff]
  %v126 = vld [vmem:[%s0 + $0x368] sm:$0xff]
  %v127 = vld [vmem:[%s0 + $0x370] sm:$0xff]
  %v128 = vld [vmem:[%s0 + $0x378] sm:$0xff]
  %v129 = vld [vmem:[%s0 + $0x380] sm:$0xff]
  %v130 = vld [vmem:[%s0 + $0x388] sm:$0xff]
  %v131 = vld [vmem:[%s0 + $0x390] sm:$0xff]
  %v132 = vld [vmem:[%s0 + $0x398] sm:$0xff]
  %v133 = vld [vmem:[%s0 + $0x3a0] sm:$0xff]
  %v134 = vld [vmem:[%s0 + $0x3a8] sm:$0xff]
  %v135 = vld [vmem:[%s0 + $0x3b0] sm:$0xff]
  %v136 = vld [vmem:[%s0 + $0x3b8] sm:$0xff]
  %v137 = vld [vmem:[%s0 + $0x3c0] sm:$0xff]
  %v138 = vld [vmem:[%s0 + $0x3c8] sm:$0xff]
  %v139 = vld [vmem:[%s0 + $0x3d0] sm:$0xff]
  %v140 = vld [vmem:[%s0 + $0x3d8] sm:$0xff]
  %v141 = vld [vmem:[%s0 + $0x3e0] sm:$0xff]
  %v142 = vld [vmem:[%s0 + $0x3e8] sm:$0xff]
  %v143 = vld [vmem:[%s0 + $0x3f0] sm:$0xff]
  %v144 = vld [vmem:[%s0 + $0x3f8] sm:$0xff]
  %v145 = vld [vmem:[%s0 + $0x400] sm:$0xff]
  %v146 = vld [vmem:[%s0 + $0x408] sm:$0xff]
  %v147 = vld [vmem:[%s0 + $0x410] sm:$0xff]
  %v148 = vld [vmem:[%s0 + $0x418] sm:$0xff]
  %v149 = vld [vmem:[%s0 + $0x420] sm:$0xff]
  %v150 = vld [vmem:[%s0 + $0x428] sm:$0xff]
  %v151 = vld [vmem:[%s0 + $0x430] sm:$0xff]
  %v152 = vld [vmem:[%s0 + $0x438] sm:$0xff]
  %v153 = vld [vmem:[%s0 + $0x440] sm:$0xff]
  %v154 = vld [vmem:[%s0 + $0x448] sm:$0xff]
  %v155 = vld [vmem:[%s0 + $0x450] sm:$0xff]
  %v156 = vld [vmem:[%s0 + $0x458] sm:$0xff]
  %v157 = vld [vmem:[%s0 + $0x460] sm:$0xff]
  %v158 = vld [vmem:[%s0 + $0x468] sm:$0xff]
  %v159 = vld [vmem:[%s0 + $0x470] sm:$0xff]
  %v160 = vld [vmem:[%s0 + $0x478] sm:$0xff]
  %v161 = vld [vmem:[%s0 + $0x480] sm:$0xff]
  %v162 = vld [vmem:[%s0 + $0x488] sm:$0xff]
  %v163 = vld [vmem:[%s0 + $0x490] sm:$0xff]
  %v164 = vld [vmem:[%s0 + $0x498] sm:$0xff]
  %v165 = vld [vmem:[%s0 + $0x4a0] sm:$0xff]
  %v166 = vld [vmem:[%s0 + $0x4a8] sm:$0xff]
  %v167 = vld [vmem:[%s0 + $0x4b0] sm:$0xff]
  %v168 = vld [vmem:[%s0 + $0x4b8] sm:$0xff]
  %v169 = vld [vmem:[%s0 + $0x4c0] sm:$0xff]
  %v170 = vld [vmem:[%s0 + $0x4c8] sm:$0xff]
  %v171 = vld [vmem:[%s0 + $0x4d0] sm:$0xff]
  %v172 = vld [vmem:[%s0 + $0x4d8] sm:$0xff]
  %v173 = vld [vmem:[%s0 + $0x4e0] sm:$0xff]
  %v174 = vld [vmem:[%s0 + $0x4e8] sm:$0xff]
  %v175 = vld [vmem:[%s0 + $0x4f0] sm:$0xff]
  %v176 = vld [vmem:[%s0 + $0x4f8] sm:$0xff]
  %v177 = vld [vmem:[%s0 + $0x500] sm:$0xff]
  %v178 = vld [vmem:[%s0 + $0x508] sm:$0xff]
  %v179 = vld [vmem:[%s0 + $0x510] sm:$0xff]
  %v180 = vld [vmem:[%s0 + $0x518] sm:$0xff]
  %v181 = vld [vmem:[%s0 + $0x520] sm:$0xff]
  %v182 = vld [vmem:[%s0 + $0x528] sm:$0xff]
  %v183 = vld [vmem:[%s0 + $0x530] sm:$0xff]
  %v184 = vld [vmem:[%s0 + $0x538] sm:$0xff]
  %v185 = vld [vmem:[%s0 + $0x540] sm:$0xff]
  %v186 = vld [vmem:[%s0 + $0x548] sm:$0xff]
  %v187 = vld [vmem:[%s0 + $0x550] sm:$0xff]
  %v188 = vld [vmem:[%s0 + $0x558] sm:$0xff]
  %v189 = vld [vmem:[%s0 + $0x560] sm:$0xff]
  %v190 = vld [vmem:[%s0 + $0x568] sm:$0xff]
  %v191 = vld [vmem:[%s0 + $0x570] sm:$0xff]
  %v192 = vld [vmem:[%s0 + $0x578] sm:$0xff]
  %v193 = vld [vmem:[%s0 + $0x580] sm:$0xff]
  %v194 = vld [vmem:[%s0 + $0x588] sm:$0xff]
  %v195 = vld [vmem:[%s0 + $0x590] sm:$0xff]
  %v196 = vld [vmem:[%s0 + $0x598] sm:$0xff]
  %v197 = vld [vmem:[%s0 + $0x5a0] sm:$0xff]
  %v198 = vld [vmem:[%s0 + $0x5a8] sm:$0xff]
  %v199 = vld [vmem:[%s0 + $0x5b0] sm:$0xff]
  %v200 = vld [vmem:[%s0 + $0x5b8] sm:$0xff]
  %v201 = vld [vmem:[%s0 + $0x5c0] sm:$0xff]
  %v202 = vld [vmem:[%s0 + $0x5c8] sm:$0xff]
  %v203 = vld [vmem:[%s0 + $0x5d0] sm:$0xff]
  %v204 = vld [vmem:[%s0 + $0x5d8] sm:$0xff]
  %v205 = vld [vmem:[%s0 + $0x5e0] sm:$0xff]
  %v206 = vld [vmem:[%s0 + $0x5e8] sm:$0xff]
  %v207 = vld [vmem:[%s0 + $0x5f0] sm:$0xff]
  %v208 = vld [vmem:[%s0 + $0x5f8] sm:$0xff]
  %v209 = vld [vmem:[%s0 + $0x600] sm:$0xff]
  %v210 = vld [vmem:[%s0 + $0x608] sm:$0xff]
  %v211 = vld [vmem:[%s0 + $0x610] sm:$0xff]
  %v212 = vld [vmem:[%s0 + $0x618] sm:$0xff]
  %v213 = vld [vmem:[%s0 + $0x620] sm:$0xff]
  %v214 = vld [vmem:[%s0 + $0x628] sm:$0xff]
  %v215 = vld [vmem:[%s0 + $0x630] sm:$0xff]
  %v216 = vld [vmem:[%s0 + $0x638] sm:$0xff]
  %v217 = vld [vmem:[%s0 + $0x640] sm:$0xff]
  %v218 = vld [vmem:[%s0 + $0x648] sm:$0xff]
  %v219 = vld [vmem:[%s0 + $0x650] sm:$0xff]
  %v220 = vld [vmem:[%s0 + $0x658] sm:$0xff]
  %v221 = vld [vmem:[%s0 + $0x660] sm:$0xff]
  %v222 = vld [vmem:[%s0 + $0x668] sm:$0xff]
  %v223 = vld [vmem:[%s0 + $0x670] sm:$0xff]
  %v224 = vld [vmem:[%s0 + $0x678] sm:$0xff]
  %v225 = vld [vmem:[%s0 + $0x680] sm:$0xff]
  %v226 = vld [vmem:[%s0 + $0x688] sm:$0xff]
  %v227 = vld [vmem:[%s0 + $0x690] sm:$0xff]
  %v228 = vld [vmem:[%s0 + $0x698] sm:$0xff]
  %v229 = vld [vmem:[%s0 + $0x6a0] sm:$0xff]
  %v230 = vld [vmem:[%s0 + $0x6a8] sm:$0xff]
  %v231 = vld [vmem:[%s0 + $0x6b0] sm:$0xff]
  %v232 = vld [vmem:[%s0 + $0x6b8] sm:$0xff]
  %v233 = vld [vmem:[%s0 + $0x6c0] sm:$0xff]
  %v234 = vld [vmem:[%s0 + $0x6c8] sm:$0xff]
  %v235 = vld [vmem:[%s0 + $0x6d0] sm:$0xff]
  %v236 = vld [vmem:[%s0 + $0x6d8] sm:$0xff]
  %v237 = vld [vmem:[%s0 + $0x6e0] sm:$0xff]
  %v238 = vld [vmem:[%s0 + $0x6e8] sm:$0xff]
  %v239 = vld [vmem:[%s0 + $0x6f0] sm:$0xff]
  %v240 = vld [vmem:[%s0 + $0x6f8] sm:$0xff]
  %v241 = vld [vmem:[%s0 + $0x700] sm:$0xff]
  %v242 = vld [vmem:[%s0 + $0x708] sm:$0xff]
  %v243 = vld [vmem:[%s0 + $0x710] sm:$0xff]
  %v244 = vld [vmem:[%s0 + $0x718] sm:$0xff]
  %v245 = vld [vmem:[%s0 + $0x720] sm:$0xff]
  %v246 = vld [vmem:[%s0 + $0x728] sm:$0xff]
  %v247 = vld [vmem:[%s0 + $0x730] sm:$0xff]
  %v248 = vld [vmem:[%s0 + $0x738] sm:$0xff]
  %v249 = vld [vmem:[%s0 + $0x740] sm:$0xff]
  %v250 = vld [vmem:[%s0 + $0x748] sm:$0xff]
  %v251 = vld [vmem:[%s0 + $0x750] sm:$0xff]
  %v252 = vld [vmem:[%s0 + $0x758] sm:$0xff]
  %v253 = vld [vmem:[%s0 + $0x760] sm:$0xff]
  %v254 = vld [vmem:[%s0 + $0x768] sm:$0xff]
  %v255 = vld [vmem:[%s0 + $0x770] sm:$0xff]
  %v256 = vld [vmem:[%s0 + $0x778] sm:$0xff]
  %v257 = vld [vmem:[%s0 + $0x780] sm:$0xff]
  %v258 = vld [vmem:[%s0 + $0x788] sm:$0xff]
  %v259 = vld [vmem:[%s0 + $0x790] sm:$0xff]
  %v260 = vld [vmem:[%s0 + $0x798] sm:$0xff]
  %v261 = vld [vmem:[%s0 + $0x7a0] sm:$0xff]
  %v262 = vld [vmem:[%s0 + $0x7a8] sm:$0xff]
  %v263 = vld [vmem:[%s0 + $0x7b0] sm:$0xff]
  %v264 = vld [vmem:[%s0 + $0x7b8] sm:$0xff]
  %v265 = vld [vmem:[%s0 + $0x7c0] sm:$0xff]
  %v266 = vld [vmem:[%s0 + $0x7c8] sm:$0xff]
  %v267 = vld [vmem:[%s0 + $0x7d0] sm:$0xff]
  %v268 = vld [vmem:[%s0 + $0x7d8] sm:$0xff]
  %v269 = vld [vmem:[%s0 + $0x7e0] sm:$0xff]
  %v270 = vld [vmem:[%s0 + $0x7e8] sm:$0xff]
  %v271 = vld [vmem:[%s0 + $0x7f0] sm:$0xff]
  %v272 = vld [vmem:[%s0 + $0x7f8] sm:$0xff]
  %v273 = vld [vmem:[%s0 + $0x800] sm:$0xff]
  %v274 = vld [vmem:[%s0 + $0x808] sm:$0xff]
  %v275 = vld [vmem:[%s0 + $0x810] sm:$0xff]
  %v276 = vld [vmem:[%s0 + $0x818] sm:$0xff]
  %v277 = vld [vmem:[%s0 + $0x820] sm:$0xff]
  %v278 = vld [vmem:[%s0 + $0x828] sm:$0xff]
  %v279 = vld [vmem:[%s0 + $0x830] sm:$0xff]
  %v280 = vld [vmem:[%s0 + $0x838] sm:$0xff]
  %v281 = vld [vmem:[%s0 + $0x840] sm:$0xff]
  %v282 = vld [vmem:[%s0 + $0x848] sm:$0xff]
  %v283 = vld [vmem:[%s0 + $0x850] sm:$0xff]
  %v284 = vld [vmem:[%s0 + $0x858] sm:$0xff]
  %v285 = vld [vmem:[%s0 + $0x860] sm:$0xff]
  %v286 = vld [vmem:[%s0 + $0x868] sm:$0xff]
  %v287 = vld [vmem:[%s0 + $0x870] sm:$0xff]
  %v288 = vld [vmem:[%s0 + $0x878] sm:$0xff]
  %v289 = vld [vmem:[%s0 + $0x880] sm:$0xff]
  %v290 = vld [vmem:[%s0 + $0x888] sm:$0xff]
  %v291 = vld [vmem:[%s0 + $0x890] sm:$0xff]
  %v292 = vld [vmem:[%s0 + $0x898] sm:$0xff]
  %v293 = vld [vmem:[%s0 + $0x8a0] sm:$0xff]
  %v294 = vld [vmem:[%s0 + $0x8a8] sm:$0xff]
  %v295 = vld [vmem:[%s0 + $0x8b0] sm:$0xff]
  %v296 = vld [vmem:[%s0 + $0x8b8] sm:$0xff]
  %v297 = vld [vmem:[%s0 + $0x8c0] sm:$0xff]
  %v298 = vld [vmem:[%s0 + $0x8c8] sm:$0xff]
  %v299 = vld [vmem:[%s0 + $0x8d0] sm:$0xff]
  %v300 = vld [vmem:[%s0 + $0x8d8] sm:$0xff]
  %v301 = vld [vmem:[%s0 + $0x8e0] sm:$0xff]
  %v302 = vld [vmem:[%s0 + $0x8e8] sm:$0xff]
  %v303 = vld [vmem:[%s0 + $0x8f0] sm:$0xff]
  %v304 = vld [vmem:[%s0 + $0x8f8] sm:$0xff]
  %v305 = vld [vmem:[%s0 + $0x900] sm:$0xff]
  %v306 = vld [vmem:[%s0 + $0x908] sm:$0xff]
  %v307 = vld [vmem:[%s0 + $0x910] sm:$0xff]
  %v308 = vld [vmem:[%s0 + $0x918] sm:$0xff]
  %v309 = vld [vmem:[%s0 + $0x920] sm:$0xff]
  %v310 = vld [vmem:[%s0 + $0x928] sm:$0xff]
  %v311 = vld [vmem:[%s0 + $0x930] sm:$0xff]
  %v312 = vld [vmem:[%s0 + $0x938] sm:$0xff]
  %v313 = vld [vmem:[%s0 + $0x940] sm:$0xff]
  %v314 = vld [vmem:[%s0 + $0x948] sm:$0xff]
  %v315 = vld [vmem:[%s0 + $0x950] sm:$0xff]
  %v316 = vld [vmem:[%s0 + $0x958] sm:$0xff]
  %v317 = vld [vmem:[%s0 + $0x960] sm:$0xff]
  %v318 = vld [vmem:[%s0 + $0x968] sm:$0xff]
  %v319 = vld [vmem:[%s0 + $0x970] sm:$0xff]
  %v320 = vld [vmem:[%s0 + $0x978] sm:$0xff]
  %v321 = vld [vmem:[%s0 + $0x980] sm:$0xff]
  %v322 = vld [vmem:[%s0 + $0x988] sm:$0xff]
  %v323 = vld [vmem:[%s0 + $0x990] sm:$0xff]
  %v324 = vld [vmem:[%s0 + $0x998] sm:$0xff]
  %v325 = vld [vmem:[%s0 + $0x9a0] sm:$0xff]
  %v326 = vld [vmem:[%s0 + $0x9a8] sm:$0xff]
  %v327 = vld [vmem:[%s0 + $0x9b0] sm:$0xff]
  %v328 = vld [vmem:[%s0 + $0x9b8] sm:$0xff]
  %v329 = vld [vmem:[%s0 + $0x9c0] sm:$0xff]
  %v330 = vld [vmem:[%s0 + $0x9c8] sm:$0xff]
  %v331 = vld [vmem:[%s0 + $0x9d0] sm:$0xff]
  %v332 = vld [vmem:[%s0 + $0x9d8] sm:$0xff]
  %v333 = vld [vmem:[%s0 + $0x9e0] sm:$0xff]
  %v334 = vld [vmem:[%s0 + $0x9e8] sm:$0xff]
  %v335 = vld [vmem:[%s0 + $0x9f0] sm:$0xff]
  %v336 = vld [vmem:[%s0 + $0x9f8] sm:$0xff]
  %v337 = vld [vmem:[%s0 + $0xa00] sm:$0xff]
  %v338 = vld [vmem:[%s0 + $0xa08] sm:$0xff]
  %v339 = vld [vmem:[%s0 + $0xa10] sm:$0xff]
  %v340 = vld [vmem:[%s0 + $0xa18] sm:$0xff]
  %v341 = vld [vmem:[%s1] sm:$0xff]
  %v342 = vld [vmem:[%s1 + $0x8] sm:$0xff]
  %v343 = vld [vmem:[%s1 + $0x10] sm:$0xff]
  %v344 = vld [vmem:[%s1 + $0x18] sm:$0xff]
  %v345 = vld [vmem:[%s1 + $0x20] sm:$0xff]
  %v346 = vld [vmem:[%s1 + $0x28] sm:$0xff]
  %v347 = vld [vmem:[%s1 + $0x30] sm:$0xff]
  %v348 = vld [vmem:[%s1 + $0x38] sm:$0xff]
  %v349 = vld [vmem:[%s1 + $0x40] sm:$0xff]
  %v350 = vld [vmem:[%s1 + $0x48] sm:$0xff]
  %v351 = vld [vmem:[%s1 + $0x50] sm:$0xff]
  %v352 = vld [vmem:[%s1 + $0x58] sm:$0xff]
  %v353 = vld [vmem:[%s1 + $0x60] sm:$0xff]
  %v354 = vld [vmem:[%s1 + $0x68] sm:$0xff]
  %v355 = vld [vmem:[%s1 + $0x70] sm:$0xff]
  %v356 = vld [vmem:[%s1 + $0x78] sm:$0xff]
  %v357 = vld [vmem:[%s1 + $0x80] sm:$0xff]
  %v358 = vld [vmem:[%s1 + $0x88] sm:$0xff]
  %v359 = vld [vmem:[%s1 + $0x90] sm:$0xff]
  %v360 = vld [vmem:[%s1 + $0x98] sm:$0xff]
  %v361 = vld [vmem:[%s1 + $0xa0] sm:$0xff]
  %v362 = vld [vmem:[%s1 + $0xa8] sm:$0xff]
  %v363 = vld [vmem:[%s1 + $0xb0] sm:$0xff]
  %v364 = vld [vmem:[%s1 + $0xb8] sm:$0xff]
  %v365 = vld [vmem:[%s1 + $0xc0] sm:$0xff]
  %v366 = vld [vmem:[%s1 + $0xc8] sm:$0xff]
  %v367 = vld [vmem:[%s1 + $0xd0] sm:$0xff]
  %v368 = vld [vmem:[%s1 + $0xd8] sm:$0xff]
  %v369 = vld [vmem:[%s1 + $0xe0] sm:$0xff]
  %v370 = vld [vmem:[%s1 + $0xe8] sm:$0xff]
  %v371 = vld [vmem:[%s1 + $0xf0] sm:$0xff]
  %v372 = vld [vmem:[%s1 + $0xf8] sm:$0xff]
  %v373 = vld [vmem:[%s1 + $0x100] sm:$0xff]
  %v374 = vld [vmem:[%s1 + $0x108] sm:$0xff]
  %v375 = vld [vmem:[%s1 + $0x110] sm:$0xff]
  %v376 = vld [vmem:[%s1 + $0x118] sm:$0xff]
  %v377 = vld [vmem:[%s1 + $0x120] sm:$0xff]
  %v378 = vld [vmem:[%s1 + $0x128] sm:$0xff]
  %v379 = vld [vmem:[%s1 + $0x130] sm:$0xff]
  %v380 = vld [vmem:[%s1 + $0x138] sm:$0xff]
  %v381 = vld [vmem:[%s1 + $0x140] sm:$0xff]
  %v382 = vld [vmem:[%s1 + $0x148] sm:$0xff]
  %v383 = vld [vmem:[%s1 + $0x150] sm:$0xff]
  %v384 = vld [vmem:[%s1 + $0x158] sm:$0xff]
  %v385 = vld [vmem:[%s1 + $0x160] sm:$0xff]
  %v386 = vld [vmem:[%s1 + $0x168] sm:$0xff]
  %v387 = vld [vmem:[%s1 + $0x170] sm:$0xff]
  %v388 = vld [vmem:[%s1 + $0x178] sm:$0xff]
  %v389 = vld [vmem:[%s1 + $0x180] sm:$0xff]
  %v390 = vld [vmem:[%s1 + $0x188] sm:$0xff]
  %v391 = vld [vmem:[%s1 + $0x190] sm:$0xff]
  %v392 = vld [vmem:[%s1 + $0x198] sm:$0xff]
  %v393 = vld [vmem:[%s1 + $0x1a0] sm:$0xff]
  %v394 = vld [vmem:[%s1 + $0x1a8] sm:$0xff]
  %v395 = vld [vmem:[%s1 + $0x1b0] sm:$0xff]
  %v396 = vld [vmem:[%s1 + $0x1b8] sm:$0xff]
  %v397 = vld [vmem:[%s1 + $0x1c0] sm:$0xff]
  %v398 = vld [vmem:[%s1 + $0x1c8] sm:$0xff]
  %v399 = vld [vmem:[%s1 + $0x1d0] sm:$0xff]
  %v400 = vld [vmem:[%s1 + $0x1d8] sm:$0xff]
  %v401 = vld [vmem:[%s1 + $0x1e0] sm:$0xff]
  %v402 = vld [vmem:[%s1 + $0x1e8] sm:$0xff]
  %v403 = vld [vmem:[%s1 + $0x1f0] sm:$0xff]
  %v404 = vld [vmem:[%s1 + $0x1f8] sm:$0xff]
  %v405 = vld [vmem:[%s1 + $0x200] sm:$0xff]
  %v406 = vld [vmem:[%s1 + $0x208] sm:$0xff]
  %v407 = vld [vmem:[%s1 + $0x210] sm:$0xff]
  %v408 = vld [vmem:[%s1 + $0x218] sm:$0xff]
  %v409 = vld [vmem:[%s1 + $0x220] sm:$0xff]
  %v410 = vld [vmem:[%s1 + $0x228] sm:$0xff]
  %v411 = vld [vmem:[%s1 + $0x230] sm:$0xff]
  %v412 = vld [vmem:[%s1 + $0x238] sm:$0xff]
  %v413 = vld [vmem:[%s1 + $0x240] sm:$0xff]
  %v414 = vld [vmem:[%s1 + $0x248] sm:$0xff]
  %v415 = vld [vmem:[%s1 + $0x250] sm:$0xff]
  %v416 = vld [vmem:[%s1 + $0x258] sm:$0xff]
  %v417 = vld [vmem:[%s1 + $0x260] sm:$0xff]
  %v418 = vld [vmem:[%s1 + $0x268] sm:$0xff]
  %v419 = vld [vmem:[%s1 + $0x270] sm:$0xff]
  %v420 = vld [vmem:[%s1 + $0x278] sm:$0xff]
  %v421 = vld [vmem:[%s1 + $0x280] sm:$0xff]
  %v422 = vld [vmem:[%s1 + $0x288] sm:$0xff]
  %v423 = vld [vmem:[%s1 + $0x290] sm:$0xff]
  %v424 = vld [vmem:[%s1 + $0x298] sm:$0xff]
  %v425 = vld [vmem:[%s1 + $0x2a0] sm:$0xff]
  %v426 = vld [vmem:[%s1 + $0x2a8] sm:$0xff]
  %v427 = vld [vmem:[%s1 + $0x2b0] sm:$0xff]
  %v428 = vld [vmem:[%s1 + $0x2b8] sm:$0xff]
  %v429 = vld [vmem:[%s1 + $0x2c0] sm:$0xff]
  %v430 = vld [vmem:[%s1 + $0x2c8] sm:$0xff]
  %v431 = vld [vmem:[%s1 + $0x2d0] sm:$0xff]
  %v432 = vld [vmem:[%s1 + $0x2d8] sm:$0xff]
  %v433 = vld [vmem:[%s1 + $0x2e0] sm:$0xff]
  %v434 = vld [vmem:[%s1 + $0x2e8] sm:$0xff]
  %v435 = vld [vmem:[%s1 + $0x2f0] sm:$0xff]
  %v436 = vld [vmem:[%s1 + $0x2f8] sm:$0xff]
  %v437 = vld [vmem:[%s1 + $0x300] sm:$0xff]
  %v438 = vld [vmem:[%s1 + $0x308] sm:$0xff]
  %v439 = vld [vmem:[%s1 + $0x310] sm:$0xff]
  %v440 = vld [vmem:[%s1 + $0x318] sm:$0xff]
  %v441 = vld [vmem:[%s1 + $0x320] sm:$0xff]
  %v442 = vld [vmem:[%s1 + $0x328] sm:$0xff]
  %v443 = vld [vmem:[%s1 + $0x330] sm:$0xff]
  %v444 = vld [vmem:[%s1 + $0x338] sm:$0xff]
  %v445 = vld [vmem:[%s1 + $0x340] sm:$0xff]
  %v446 = vld [vmem:[%s1 + $0x348] sm:$0xff]
  %v447 = vld [vmem:[%s1 + $0x350] sm:$0xff]
  %v448 = vld [vmem:[%s1 + $0x358] sm:$0xff]
  %v449 = vld [vmem:[%s1 + $0x360] sm:$0xff]
  %v450 = vld [vmem:[%s1 + $0x368] sm:$0xff]
  %v451 = vld [vmem:[%s1 + $0x370] sm:$0xff]
  %v452 = vld [vmem:[%s1 + $0x378] sm:$0xff]
  %v453 = vld [vmem:[%s1 + $0x380] sm:$0xff]
  %v454 = vld [vmem:[%s1 + $0x388] sm:$0xff]
  %v455 = vld [vmem:[%s1 + $0x390] sm:$0xff]
  %v456 = vld [vmem:[%s1 + $0x398] sm:$0xff]
  %v457 = vld [vmem:[%s1 + $0x3a0] sm:$0xff]
  %v458 = vld [vmem:[%s1 + $0x3a8] sm:$0xff]
  %v459 = vld [vmem:[%s1 + $0x3b0] sm:$0xff]
  %v460 = vld [vmem:[%s1 + $0x3b8] sm:$0xff]
  %v461 = vld [vmem:[%s1 + $0x3c0] sm:$0xff]
  %v462 = vld [vmem:[%s1 + $0x3c8] sm:$0xff]
  %v463 = vld [vmem:[%s1 + $0x3d0] sm:$0xff]
  %v464 = vld [vmem:[%s1 + $0x3d8] sm:$0xff]
  %v465 = vld [vmem:[%s1 + $0x3e0] sm:$0xff]
  %v466 = vld [vmem:[%s1 + $0x3e8] sm:$0xff]
  %v467 = vld [vmem:[%s1 + $0x3f0] sm:$0xff]
  %v468 = vld [vmem:[%s1 + $0x3f8] sm:$0xff]
  %v469 = vld [vmem:[%s1 + $0x400] sm:$0xff]
  %v470 = vld [vmem:[%s1 + $0x408] sm:$0xff]
  %v471 = vld [vmem:[%s1 + $0x410] sm:$0xff]
  %v472 = vld [vmem:[%s1 + $0x418] sm:$0xff]
  %v473 = vld [vmem:[%s1 + $0x420] sm:$0xff]
  %v474 = vld [vmem:[%s1 + $0x428] sm:$0xff]
  %v475 = vld [vmem:[%s1 + $0x430] sm:$0xff]
  %v476 = vld [vmem:[%s1 + $0x438] sm:$0xff]
  %v477 = vld [vmem:[%s1 + $0x440] sm:$0xff]
  %v478 = vld [vmem:[%s1 + $0x448] sm:$0xff]
  %v479 = vld [vmem:[%s1 + $0x450] sm:$0xff]
  %v480 = vld [vmem:[%s1 + $0x458] sm:$0xff]
  %v481 = vld [vmem:[%s1 + $0x460] sm:$0xff]
  %v482 = vld [vmem:[%s1 + $0x468] sm:$0xff]
  %v483 = vld [vmem:[%s1 + $0x470] sm:$0xff]
  %v484 = vld [vmem:[%s1 + $0x478] sm:$0xff]
  %485 = vmatprep.subr.mxu0 0.0
  %486 = vmatpush1.msra.mxu0 %v341
  %487 = vmatprep.subr.mxu0 0.0
  %488 = vmatpush1.msra.mxu0 %v342
  %489 = vmatprep.subr.mxu0 0.0
  %490 = vmatpush1.msra.mxu0 %v343
  %491 = vmatprep.subr.mxu0 0.0
  %492 = vmatpush1.msra.mxu0 %v344
  %493 = vmatprep.subr.mxu0 0.0
  %494 = vmatpush1.msra.mxu0 %v345
  %495 = vmatprep.subr.mxu0 0.0
  %496 = vmatpush1.msra.mxu0 %v346
  %497 = vmatprep.subr.mxu0 0.0
  %498 = vmatpush1.msra.mxu0 %v347
  %499 = vmatprep.subr.mxu0 0.0
  %500 = vmatpush1.msra.mxu0 %v348
  %501 = vmatprep.subr.mxu0 0.0
  %502 = vmatpush1.msra.mxu0 %v349
  %503 = vmatprep.subr.mxu0 0.0
  %504 = vmatpush1.msra.mxu0 %v350
  %505 = vmatprep.subr.mxu0 0.0
  %506 = vmatpush1.msra.mxu0 %v351
  %507 = vmatprep.subr.mxu0 0.0
  %508 = vmatpush1.msra.mxu0 %v352
  %509 = vmatprep.subr.mxu0 0.0
  %510 = vmatpush1.msra.mxu0 %v353
  %511 = vmatprep.subr.mxu0 0.0
  %512 = vmatpush1.msra.mxu0 %v354
  %513 = vmatprep.subr.mxu0 0.0
  %514 = vmatpush1.msra.mxu0 %v355
  %515 = vmatprep.subr.mxu0 0.0
  %516 = vmatpush1.msra.mxu0 %v356
  %517 = vmatprep.subr.mxu0 0.0
  %518 = vmatpush1.msra.mxu0 %v357
  %519 = vmatprep.subr.mxu0 0.0
  %520 = vmatpush1.msra.mxu0 %v358
  %521 = vmatprep.subr.mxu0 0.0
  %522 = vmatpush1.msra.mxu0 %v359
  %523 = vmatprep.subr.mxu0 0.0
  %524 = vmatpush1.msra.mxu0 %v360
  %525 = vmatprep.subr.mxu0 0.0
  %526 = vmatpush1.msra.mxu0 %v361
  %527 = vmatprep.subr.mxu0 0.0
  %528 = vmatpush1.msra.mxu0 %v362
  %529 = vmatprep.subr.mxu0 0.0
  %530 = vmatpush1.msra.mxu0 %v363
  %531 = vmatprep.subr.mxu0 0.0
  %532 = vmatpush1.msra.mxu0 %v364
  %533 = vmatprep.subr.mxu0 0.0
  %534 = vmatpush1.msra.mxu0 %v365
  %535 = vmatprep.subr.mxu0 0.0
  %536 = vmatpush1.msra.mxu0 %v366
  %537 = vmatprep.subr.mxu0 0.0
  %538 = vmatpush1.msra.mxu0 %v367
  %539 = vmatprep.subr.mxu0 0.0
  %540 = vmatpush1.msra.mxu0 %v368
  %541 = vmatprep.subr.mxu0 0.0
  %542 = vmatpush1.msra.mxu0 %v369
  %543 = vmatprep.subr.mxu0 0.0
  %544 = vmatpush1.msra.mxu0 %v370
  %545 = vmatprep.subr.mxu0 0.0
  %546 = vmatpush1.msra.mxu0 %v371
  %547 = vmatprep.subr.mxu0 0.0
  %548 = vmatpush1.msra.mxu0 %v372
  %549 = vmatprep.mubr.f32.mxu0 %v18
  %550 = vmatmul.mubr.f32.gmra.mrb[0].mxu0 %v17
  %v551 = vpop.f32.mrb[0].mxu0
  %v552 = vadd.f32 0.0, %v551
  %v553 = vpop.f32.mrb[0].mxu0
  %554 = vmatprep.mubr.f32.mxu0 %v27
  %555 = vmatmul.mubr.f32.gmra.mrb[0].mxu0 %v26
  %v556 = vpop.f32.mrb[0].mxu0
  %v557 = vadd.f32 0.0, %v556
  %v558 = vpop.f32.mrb[0].mxu0
  %559 = vmatprep.mubr.f32.mxu0 %v36
  %560 = vmatmul.mubr.f32.gmra.mrb[0].mxu0 %v35
  %v561 = vpop.f32.mrb[0].mxu0
  %v562 = vadd.f32 0.0, %v561
  %v563 = vpop.f32.mrb[0].mxu0
  %564 = vmatprep.mubr.f32.mxu0 %v45
  %565 = vmatmul.mubr.f32.gmra.mrb[0].mxu0 %v44
  %v566 = vpop.f32.mrb[0].mxu0
  %v567 = vadd.f32 0.0, %v566
  %v568 = vpop.f32.mrb[0].mxu0
  %569 = vmatprep.mubr.f32.mxu0 %v54
  %570 = vmatmul.mubr.f32.gmra.mrb[0].mxu0 %v53
  %v571 = vpop.f32.mrb[0].mxu0
  %v572 = vadd.f32 0.0, %v571
  %v573 = vpop.f32.mrb[0].mxu0
  %574 = vmatprep.mubr.f32.mxu0 %v63
  %575 = vmatmul.mubr.f32.gmra.mrb[0].mxu0 %v62
  %v576 = vpop.f32.mrb[0].mxu0
  %v577 = vadd.f32 0.0, %v576
  %v578 = vpop.f32.mrb[0].mxu0
  %579 = vmatprep.mubr.f32.mxu0 %v72
  %580 = vmatmul.mubr.f32.gmra.mrb[0].mxu0 %v71
  %v581 = vpop.f32.mrb[0].mxu0
  %v582 = vadd.f32 0.0, %v581
  %v583 = vpop.f32.mrb[0].mxu0
  %584 = vmatprep.mubr.f32.mxu0 %v81
  %585 = vmatmul.mubr.f32.gmra.mrb[0].mxu0 %v80
  %v586 = vpop.f32.mrb[0].mxu0
  %v587 = vadd.f32 0.0, %v586
  %v588 = vpop.f32.mrb[0].mxu0
  %589 = vmatprep.mubr.f32.mxu0 %v90
  %590 = vmatmul.mubr.f32.gmra.mrb[0].mxu0 %v89
  %v591 = vpop.f32.mrb[0].mxu0
  %v592 = vadd.f32 0.0, %v591
  %v593 = vpop.f32.mrb[0].mxu0
  %594 = vmatprep.mubr.f32.mxu0 %v99
  %595 = vmatmul.mubr.f32.gmra.mrb[0].mxu0 %v98
  %v596 = vpop.f32.mrb[0].mxu0
  %v597 = vadd.f32 0.0, %v596
  %v598 = vpop.f32.mrb[0].mxu0
  %599 = vmatprep.mubr.f32.mxu0 %v108
  %600 = vmatmul.mubr.f32.gmra.mrb[0].mxu0 %v107
  %v601 = vpop.f32.mrb[0].mxu0
  %v602 = vadd.f32 0.0, %v601
  %v603 = vpop.f32.mrb[0].mxu0
  %604 = vmatprep.mubr.f32.mxu0 %v117
  %605 = vmatmul.mubr.f32.gmra.mrb[0].mxu0 %v116
  %v606 = vpop.f32.mrb[0].mxu0
  %v607 = vadd.f32 0.0, %v606
  %v608 = vpop.f32.mrb[0].mxu0
  %609 = vmatprep.mubr.f32.mxu0 %v126
  %610 = vmatmul.mubr.f32.gmra.mrb[0].mxu0 %v125
  %v611 = vpop.f32.mrb[0].mxu0
  %v612 = vadd.f32 0.0, %v611
  %v613 = vpop.f32.mrb[0].mxu0
  %614 = vmatprep.mubr.f32.mxu0 %v135
  %615 = vmatmul.mubr.f32.gmra.mrb[0].mxu0 %v134
  %v616 = vpop.f32.mrb[0].mxu0
  %v617 = vadd.f32 0.0, %v616
  %v618 = vpop.f32.mrb[0].mxu0
  %619 = vmatprep.mubr.f32.mxu0 %v144
  %620 = vmatmul.mubr.f32.gmra.mrb[0].mxu0 %v143
  %v621 = vpop.f32.mrb[0].mxu0
  %v622 = vadd.f32 0.0, %v621
  %v623 = vpop.f32.mrb[0].mxu0
  %624 = vmatprep.mubr.f32.mxu0 %v153
  %625 = vmatmul.mubr.f32.gmra.mrb[0].mxu0 %v152
  %v626 = vpop.f32.mrb[0].mxu0
  %v627 = vadd.f32 0.0, %v626
  %v628 = vpop.f32.mrb[0].mxu0
  %629 = vmatprep.mubr.f32.mxu0 %v162
  %630 = vmatmul.mubr.f32.gmra.mrb[0].mxu0 %v161
  %v631 = vpop.f32.mrb[0].mxu0
  %v632 = vadd.f32 0.0, %v631
  %v633 = vpop.f32.mrb[0].mxu0
  %634 = vmatprep.mubr.f32.mxu0 %v171
  %635 = vmatmul.mubr.f32.gmra.mrb[0].mxu0 %v170
  %v636 = vpop.f32.mrb[0].mxu0
  %v637 = vadd.f32 0.0, %v636
  %v638 = vpop.f32.mrb[0].mxu0
  %639 = vmatprep.mubr.f32.mxu0 %v180
  %640 = vmatmul.mubr.f32.gmra.mrb[0].mxu0 %v179
  %v641 = vpop.f32.mrb[0].mxu0
  %v642 = vadd.f32 0.0, %v641
  %v643 = vpop.f32.mrb[0].mxu0
  %644 = vmatprep.mubr.f32.mxu0 %v189
  %645 = vmatmul.mubr.f32.gmra.mrb[0].mxu0 %v188
  %v646 = vpop.f32.mrb[0].mxu0
  %v647 = vadd.f32 0.0, %v646
  %v648 = vpop.f32.mrb[0].mxu0
  %649 = vmatprep.mubr.f32.mxu0 %v198
  %650 = vmatmul.mubr.f32.gmra.mrb[0].mxu0 %v197
  %v651 = vpop.f32.mrb[0].mxu0
  %v652 = vadd.f32 0.0, %v651
  %v653 = vpop.f32.mrb[0].mxu0
  %654 = vmatprep.mubr.f32.mxu0 %v207
  %655 = vmatmul.mubr.f32.gmra.mrb[0].mxu0 %v206
  %v656 = vpop.f32.mrb[0].mxu0
  %v657 = vadd.f32 0.0, %v656
  %v658 = vpop.f32.mrb[0].mxu0
  %659 = vmatprep.mubr.f32.mxu0 %v216
  %660 = vmatmul.mubr.f32.gmra.mrb[0].mxu0 %v215
  %v661 = vpop.f32.mrb[0].mxu0
  %v662 = vadd.f32 0.0, %v661
  %v663 = vpop.f32.mrb[0].mxu0
  %664 = vmatprep.mubr.f32.mxu0 %v225
  %665 = vmatmul.mubr.f32.gmra.mrb[0].mxu0 %v224
  %v666 = vpop.f32.mrb[0].mxu0
  %v667 = vadd.f32 0.0, %v666
  %v668 = vpop.f32.mrb[0].mxu0
  %669 = vmatprep.mubr.f32.mxu0 %v234
  %670 = vmatmul.mubr.f32.gmra.mrb[0].mxu0 %v233
  %v671 = vpop.f32.mrb[0].mxu0
  %v672 = vadd.f32 0.0, %v671
  %v673 = vpop.f32.mrb[0].mxu0
  %674 = vmatprep.mubr.f32.mxu0 %v243
  %675 = vmatmul.mubr.f32.gmra.mrb[0].mxu0 %v242
  %v676 = vpop.f32.mrb[0].mxu0
  %v677 = vadd.f32 0.0, %v676
  %v678 = vpop.f32.mrb[0].mxu0
  %679 = vmatprep.mubr.f32.mxu0 %v252
  %680 = vmatmul.mubr.f32.gmra.mrb[0].mxu0 %v251
  %v681 = vpop.f32.mrb[0].mxu0
  %v682 = vadd.f32 0.0, %v681
  %v683 = vpop.f32.mrb[0].mxu0
  %684 = vmatprep.mubr.f32.mxu0 %v261
  %685 = vmatmul.mubr.f32.gmra.mrb[0].mxu0 %v260
  %v686 = vpop.f32.mrb[0].mxu0
  %v687 = vadd.f32 0.0, %v686
  %v688 = vpop.f32.mrb[0].mxu0
  %689 = vmatprep.mubr.f32.mxu0 %v270
  %690 = vmatmul.mubr.f32.gmra.mrb[0].mxu0 %v269
  %v691 = vpop.f32.mrb[0].mxu0
  %v692 = vadd.f32 0.0, %v691
  %v693 = vpop.f32.mrb[0].mxu0
  %694 = vmatprep.mubr.f32.mxu0 %v279
  %695 = vmatmul.mubr.f32.gmra.mrb[0].mxu0 %v278
  %v696 = vpop.f32.mrb[0].mxu0
  %v697 = vadd.f32 0.0, %v696
  %v698 = vpop.f32.mrb[0].mxu0
  %699 = vmatprep.mubr.f32.mxu0 %v288
  %700 = vmatmul.mubr.f32.gmra.mrb[0].mxu0 %v287
  %v701 = vpop.f32.mrb[0].mxu0
  %v702 = vadd.f32 0.0, %v701
  %v703 = vpop.f32.mrb[0].mxu0
  %704 = vmatprep.mubr.f32.mxu0 %v297
  %705 = vmatmul.mubr.f32.gmra.mrb[0].mxu0 %v296
  %v706 = vpop.f32.mrb[0].mxu0
  %v707 = vadd.f32 0.0, %v706
  %v708 = vpop.f32.mrb[0].mxu0
  %709 = vmatprep.mubr.f32.mxu0 %v306
  %710 = vmatmul.mubr.f32.gmra.mrb[0].mxu0 %v305
  %v711 = vpop.f32.mrb[0].mxu0
  %v712 = vadd.f32 0.0, %v711
  %v713 = vpop.f32.mrb[0].mxu0
  %714 = vmatprep.mubr.f32.mxu0 %v315
  %715 = vmatmul.mubr.f32.gmra.mrb[0].mxu0 %v314
  %v716 = vpop.f32.mrb[0].mxu0
  %v717 = vadd.f32 0.0, %v716
  %v718 = vpop.f32.mrb[0].mxu0
  %719 = vmatprep.mubr.f32.mxu0 %v324
  %720 = vmatmul.mubr.f32.gmra.mrb[0].mxu0 %v323
  %v721 = vpop.f32.mrb[0].mxu0
  %v722 = vadd.f32 0.0, %v721
  %v723 = vpop.f32.mrb[0].mxu0
  %724 = vmatprep.mubr.f32.mxu0 %v333
  %725 = vmatmul.mubr.f32.gmra.mrb[0].mxu0 %v332
  %v726 = vpop.f32.mrb[0].mxu0
  %v727 = vadd.f32 0.0, %v726
  %v728 = vpop.f32.mrb[0].mxu0
  %729 = vdwg.mxu0
  %730 = vmatprep.subr.mxu0 0.0
  %731 = vmatpush1.msra.mxu0 %v373
  %732 = vmatprep.subr.mxu0 0.0
  %733 = vmatpush1.msra.mxu0 %v374
  %734 = vmatprep.subr.mxu0 0.0
  %735 = vmatpush1.msra.mxu0 %v375
  %736 = vmatprep.subr.mxu0 0.0
  %737 = vmatpush1.msra.mxu0 %v376
  %738 = vmatprep.subr.mxu0 0.0
  %739 = vmatpush1.msra.mxu0 %v377
  %740 = vmatprep.subr.mxu0 0.0
  %741 = vmatpush1.msra.mxu0 %v378
  %742 = vmatprep.subr.mxu0 0.0
  %743 = vmatpush1.msra.mxu0 %v379
  %744 = vmatprep.subr.mxu0 0.0
  %745 = vmatpush1.msra.mxu0 %v380
  %746 = vmatprep.subr.mxu0 0.0
  %747 = vmatpush1.msra.mxu0 %v381
  %748 = vmatprep.subr.mxu0 0.0
  %749 = vmatpush1.msra.mxu0 %v382
  %750 = vmatprep.subr.mxu0 0.0
  %751 = vmatpush1.msra.mxu0 %v383
  %752 = vmatprep.subr.mxu0 0.0
  %753 = vmatpush1.msra.mxu0 %v384
  %754 = vmatprep.subr.mxu0 0.0
  %755 = vmatpush1.msra.mxu0 %v385
  %756 = vmatprep.subr.mxu0 0.0
  %757 = vmatpush1.msra.mxu0 %v386
  %758 = vmatprep.subr.mxu0 0.0
  %759 = vmatpush1.msra.mxu0 %v387
  %760 = vmatprep.subr.mxu0 0.0
  %761 = vmatpush1.msra.mxu0 %v388
  %762 = vmatprep.subr.mxu0 0.0
  %763 = vmatpush1.msra.mxu0 %v389
  %764 = vmatprep.subr.mxu0 0.0
  %765 = vmatpush1.msra.mxu0 %v390
  %766 = vmatprep.subr.mxu0 0.0
  %767 = vmatpush1.msra.mxu0 %v391
  %768 = vmatprep.subr.mxu0 0.0
  %769 = vmatpush1.msra.mxu0 %v392
  %770 = vmatprep.subr.mxu0 0.0
  %771 = vmatpush1.msra.mxu0 %v393
  %772 = vmatprep.subr.mxu0 0.0
  %773 = vmatpush1.msra.mxu0 %v394
  %774 = vmatprep.subr.mxu0 0.0
  %775 = vmatpush1.msra.mxu0 %v395
  %776 = vmatprep.subr.mxu0 0.0
  %777 = vmatpush1.msra.mxu0 %v396
  %778 = vmatprep.subr.mxu0 0.0
  %779 = vmatpush1.msra.mxu0 %v397
  %780 = vmatprep.subr.mxu0 0.0
  %781 = vmatpush1.msra.mxu0 %v398
  %782 = vmatprep.subr.mxu0 0.0
  %783 = vmatpush1.msra.mxu0 %v399
  %784 = vmatprep.subr.mxu0 0.0
  %785 = vmatpush1.msra.mxu0 %v400
  %786 = vmatprep.subr.mxu0 0.0
  %787 = vmatpush1.msra.mxu0 %v401
  %788 = vmatprep.subr.mxu0 0.0
  %789 = vmatpush1.msra.mxu0 %v402
  %790 = vmatprep.subr.mxu0 0.0
  %791 = vmatpush1.msra.mxu0 %v403
  %792 = vmatprep.subr.mxu0 0.0
  %793 = vmatpush1.msra.mxu0 %v404
  %794 = vmatprep.mubr.f32.mxu0 %v20
  %795 = vmatmul.mubr.f32.gmra.mrb[0].mxu0 %v19
  %v796 = vpop.f32.mrb[0].mxu0
  %v797 = vadd.f32 %v552, %v796
  %v798 = vpop.f32.mrb[0].mxu0
  %799 = vmatprep.mubr.f32.mxu0 %v29
  %800 = vmatmul.mubr.f32.gmra.mrb[0].mxu0 %v28
  %v801 = vpop.f32.mrb[0].mxu0
  %v802 = vadd.f32 %v557, %v801
  %v803 = vpop.f32.mrb[0].mxu0
  %804 = vmatprep.mubr.f32.mxu0 %v38
  %805 = vmatmul.mubr.f32.gmra.mrb[0].mxu0 %v37
  %v806 = vpop.f32.mrb[0].mxu0
  %v807 = vadd.f32 %v562, %v806
  %v808 = vpop.f32.mrb[0].mxu0
  %809 = vmatprep.mubr.f32.mxu0 %v47
  %810 = vmatmul.mubr.f32.gmra.mrb[0].mxu0 %v46
  %v811 = vpop.f32.mrb[0].mxu0
  %v812 = vadd.f32 %v567, %v811
  %v813 = vpop.f32.mrb[0].mxu0
  %814 = vmatprep.mubr.f32.mxu0 %v56
  %815 = vmatmul.mubr.f32.gmra.mrb[0].mxu0 %v55
  %v816 = vpop.f32.mrb[0].mxu0
  %v817 = vadd.f32 %v572, %v816
  %v818 = vpop.f32.mrb[0].mxu0
  %819 = vmatprep.mubr.f32.mxu0 %v65
  %820 = vmatmul.mubr.f32.gmra.mrb[0].mxu0 %v64
  %v821 = vpop.f32.mrb[0].mxu0
  %v822 = vadd.f32 %v577, %v821
  %v823 = vpop.f32.mrb[0].mxu0
  %824 = vmatprep.mubr.f32.mxu0 %v74
  %825 = vmatmul.mubr.f32.gmra.mrb[0].mxu0 %v73
  %v826 = vpop.f32.mrb[0].mxu0
  %v827 = vadd.f32 %v582, %v826
  %v828 = vpop.f32.mrb[0].mxu0
  %829 = vmatprep.mubr.f32.mxu0 %v83
  %830 = vmatmul.mubr.f32.gmra.mrb[0].mxu0 %v82
  %v831 = vpop.f32.mrb[0].mxu0
  %v832 = vadd.f32 %v587, %v831
  %v833 = vpop.f32.mrb[0].mxu0
  %834 = vmatprep.mubr.f32.mxu0 %v92
  %835 = vmatmul.mubr.f32.gmra.mrb[0].mxu0 %v91
  %v836 = vpop.f32.mrb[0].mxu0
  %v837 = vadd.f32 %v592, %v836
  %v838 = vpop.f32.mrb[0].mxu0
  %839 = vmatprep.mubr.f32.mxu0 %v101
  %840 = vmatmul.mubr.f32.gmra.mrb[0].mxu0 %v100
  %v841 = vpop.f32.mrb[0].mxu0
  %v842 = vadd.f32 %v597, %v841
  %v843 = vpop.f32.mrb[0].mxu0
  %844 = vmatprep.mubr.f32.mxu0 %v110
  %845 = vmatmul.mubr.f32.gmra.mrb[0].mxu0 %v109
  %v846 = vpop.f32.mrb[0].mxu0
  %v847 = vadd.f32 %v602, %v846
  %v848 = vpop.f32.mrb[0].mxu0
  %849 = vmatprep.mubr.f32.mxu0 %v119
  %850 = vmatmul.mubr.f32.gmra.mrb[0].mxu0 %v118
  %v851 = vpop.f32.mrb[0].mxu0
  %v852 = vadd.f32 %v607, %v851
  %v853 = vpop.f32.mrb[0].mxu0
  %854 = vmatprep.mubr.f32.mxu0 %v128
  %855 = vmatmul.mubr.f32.gmra.mrb[0].mxu0 %v127
  %v856 = vpop.f32.mrb[0].mxu0
  %v857 = vadd.f32 %v612, %v856
  %v858 = vpop.f32.mrb[0].mxu0
  %859 = vmatprep.mubr.f32.mxu0 %v137
  %860 = vmatmul.mubr.f32.gmra.mrb[0].mxu0 %v136
  %v861 = vpop.f32.mrb[0].mxu0
  %v862 = vadd.f32 %v617, %v861
  %v863 = vpop.f32.mrb[0].mxu0
  %864 = vmatprep.mubr.f32.mxu0 %v146
  %865 = vmatmul.mubr.f32.gmra.mrb[0].mxu0 %v145
  %v866 = vpop.f32.mrb[0].mxu0
  %v867 = vadd.f32 %v622, %v866
  %v868 = vpop.f32.mrb[0].mxu0
  %869 = vmatprep.mubr.f32.mxu0 %v155
  %870 = vmatmul.mubr.f32.gmra.mrb[0].mxu0 %v154
  %v871 = vpop.f32.mrb[0].mxu0
  %v872 = vadd.f32 %v627, %v871
  %v873 = vpop.f32.mrb[0].mxu0
  %874 = vmatprep.mubr.f32.mxu0 %v164
  %875 = vmatmul.mubr.f32.gmra.mrb[0].mxu0 %v163
  %v876 = vpop.f32.mrb[0].mxu0
  %v877 = vadd.f32 %v632, %v876
  %v878 = vpop.f32.mrb[0].mxu0
  %879 = vmatprep.mubr.f32.mxu0 %v173
  %880 = vmatmul.mubr.f32.gmra.mrb[0].mxu0 %v172
  %v881 = vpop.f32.mrb[0].mxu0
  %v882 = vadd.f32 %v637, %v881
  %v883 = vpop.f32.mrb[0].mxu0
  %884 = vmatprep.mubr.f32.mxu0 %v182
  %885 = vmatmul.mubr.f32.gmra.mrb[0].mxu0 %v181
  %v886 = vpop.f32.mrb[0].mxu0
  %v887 = vadd.f32 %v642, %v886
  %v888 = vpop.f32.mrb[0].mxu0
  %889 = vmatprep.mubr.f32.mxu0 %v191
  %890 = vmatmul.mubr.f32.gmra.mrb[0].mxu0 %v190
  %v891 = vpop.f32.mrb[0].mxu0
  %v892 = vadd.f32 %v647, %v891
  %v893 = vpop.f32.mrb[0].mxu0
  %894 = vmatprep.mubr.f32.mxu0 %v200
  %895 = vmatmul.mubr.f32.gmra.mrb[0].mxu0 %v199
  %v896 = vpop.f32.mrb[0].mxu0
  %v897 = vadd.f32 %v652, %v896
  %v898 = vpop.f32.mrb[0].mxu0
  %899 = vmatprep.mubr.f32.mxu0 %v209
  %900 = vmatmul.mubr.f32.gmra.mrb[0].mxu0 %v208
  %v901 = vpop.f32.mrb[0].mxu0
  %v902 = vadd.f32 %v657, %v901
  %v903 = vpop.f32.mrb[0].mxu0
  %904 = vmatprep.mubr.f32.mxu0 %v218
  %905 = vmatmul.mubr.f32.gmra.mrb[0].mxu0 %v217
  %v906 = vpop.f32.mrb[0].mxu0
  %v907 = vadd.f32 %v662, %v906
  %v908 = vpop.f32.mrb[0].mxu0
  %909 = vmatprep.mubr.f32.mxu0 %v227
  %910 = vmatmul.mubr.f32.gmra.mrb[0].mxu0 %v226
  %v911 = vpop.f32.mrb[0].mxu0
  %v912 = vadd.f32 %v667, %v911
  %v913 = vpop.f32.mrb[0].mxu0
  %914 = vmatprep.mubr.f32.mxu0 %v236
  %915 = vmatmul.mubr.f32.gmra.mrb[0].mxu0 %v235
  %v916 = vpop.f32.mrb[0].mxu0
  %v917 = vadd.f32 %v672, %v916
  %v918 = vpop.f32.mrb[0].mxu0
  %919 = vmatprep.mubr.f32.mxu0 %v245
  %920 = vmatmul.mubr.f32.gmra.mrb[0].mxu0 %v244
  %v921 = vpop.f32.mrb[0].mxu0
  %v922 = vadd.f32 %v677, %v921
  %v923 = vpop.f32.mrb[0].mxu0
  %924 = vmatprep.mubr.f32.mxu0 %v254
  %925 = vmatmul.mubr.f32.gmra.mrb[0].mxu0 %v253
  %v926 = vpop.f32.mrb[0].mxu0
  %v927 = vadd.f32 %v682, %v926
  %v928 = vpop.f32.mrb[0].mxu0
  %929 = vmatprep.mubr.f32.mxu0 %v263
  %930 = vmatmul.mubr.f32.gmra.mrb[0].mxu0 %v262
  %v931 = vpop.f32.mrb[0].mxu0
  %v932 = vadd.f32 %v687, %v931
  %v933 = vpop.f32.mrb[0].mxu0
  %934 = vmatprep.mubr.f32.mxu0 %v272
  %935 = vmatmul.mubr.f32.gmra.mrb[0].mxu0 %v271
  %v936 = vpop.f32.mrb[0].mxu0
  %v937 = vadd.f32 %v692, %v936
  %v938 = vpop.f32.mrb[0].mxu0
  %939 = vmatprep.mubr.f32.mxu0 %v281
  %940 = vmatmul.mubr.f32.gmra.mrb[0].mxu0 %v280
  %v941 = vpop.f32.mrb[0].mxu0
  %v942 = vadd.f32 %v697, %v941
  %v943 = vpop.f32.mrb[0].mxu0
  %944 = vmatprep.mubr.f32.mxu0 %v290
  %945 = vmatmul.mubr.f32.gmra.mrb[0].mxu0 %v289
  %v946 = vpop.f32.mrb[0].mxu0
  %v947 = vadd.f32 %v702, %v946
  %v948 = vpop.f32.mrb[0].mxu0
  %949 = vmatprep.mubr.f32.mxu0 %v299
  %950 = vmatmul.mubr.f32.gmra.mrb[0].mxu0 %v298
  %v951 = vpop.f32.mrb[0].mxu0
  %v952 = vadd.f32 %v707, %v951
  %v953 = vpop.f32.mrb[0].mxu0
  %954 = vmatprep.mubr.f32.mxu0 %v308
  %955 = vmatmul.mubr.f32.gmra.mrb[0].mxu0 %v307
  %v956 = vpop.f32.mrb[0].mxu0
  %v957 = vadd.f32 %v712, %v956
  %v958 = vpop.f32.mrb[0].mxu0
  %959 = vmatprep.mubr.f32.mxu0 %v317
  %960 = vmatmul.mubr.f32.gmra.mrb[0].mxu0 %v316
  %v961 = vpop.f32.mrb[0].mxu0
  %v962 = vadd.f32 %v717, %v961
  %v963 = vpop.f32.mrb[0].mxu0
  %964 = vmatprep.mubr.f32.mxu0 %v326
  %965 = vmatmul.mubr.f32.gmra.mrb[0].mxu0 %v325
  %v966 = vpop.f32.mrb[0].mxu0
  %v967 = vadd.f32 %v722, %v966
  %v968 = vpop.f32.mrb[0].mxu0
  %969 = vmatprep.mubr.f32.mxu0 %v335
  %970 = vmatmul.mubr.f32.gmra.mrb[0].mxu0 %v334
  %v971 = vpop.f32.mrb[0].mxu0
  %v972 = vadd.f32 %v727, %v971
  %v973 = vpop.f32.mrb[0].mxu0
  %974 = vdwg.mxu0
  %975 = vmatprep.subr.mxu0 0.0
  %976 = vmatpush1.msra.mxu0 %v405
  %977 = vmatprep.subr.mxu0 0.0
  %978 = vmatpush1.msra.mxu0 %v406
  %979 = vmatprep.subr.mxu0 0.0
  %980 = vmatpush1.msra.mxu0 %v407
  %981 = vmatprep.subr.mxu0 0.0
  %982 = vmatpush1.msra.mxu0 %v408
  %983 = vmatprep.subr.mxu0 0.0
  %984 = vmatpush1.msra.mxu0 %v409
  %985 = vmatprep.subr.mxu0 0.0
  %986 = vmatpush1.msra.mxu0 %v410
  %987 = vmatprep.subr.mxu0 0.0
  %988 = vmatpush1.msra.mxu0 %v411
  %989 = vmatprep.subr.mxu0 0.0
  %990 = vmatpush1.msra.mxu0 %v412
  %991 = vmatprep.subr.mxu0 0.0
  %992 = vmatpush1.msra.mxu0 %v413
  %993 = vmatprep.subr.mxu0 0.0
  %994 = vmatpush1.msra.mxu0 %v414
  %995 = vmatprep.subr.mxu0 0.0
  %996 = vmatpush1.msra.mxu0 %v415
  %997 = vmatprep.subr.mxu0 0.0
  %998 = vmatpush1.msra.mxu0 %v416
  %999 = vmatprep.subr.mxu0 0.0
  %1000 = vmatpush1.msra.mxu0 %v417
  %1001 = vmatprep.subr.mxu0 0.0
  %1002 = vmatpush1.msra.mxu0 %v418
  %1003 = vmatprep.subr.mxu0 0.0
  %1004 = vmatpush1.msra.mxu0 %v419
  %1005 = vmatprep.subr.mxu0 0.0
  %1006 = vmatpush1.msra.mxu0 %v420
  %1007 = vmatprep.subr.mxu0 0.0
  %1008 = vmatpush1.msra.mxu0 %v421
  %1009 = vmatprep.subr.mxu0 0.0
  %1010 = vmatpush1.msra.mxu0 %v422
  %1011 = vmatprep.subr.mxu0 0.0
  %1012 = vmatpush1.msra.mxu0 %v423
  %1013 = vmatprep.subr.mxu0 0.0
  %1014 = vmatpush1.msra.mxu0 %v424
  %1015 = vmatprep.subr.mxu0 0.0
  %1016 = vmatpush1.msra.mxu0 %v425
  %1017 = vmatprep.subr.mxu0 0.0
  %1018 = vmatpush1.msra.mxu0 %v426
  %1019 = vmatprep.subr.mxu0 0.0
  %1020 = vmatpush1.msra.mxu0 %v427
  %1021 = vmatprep.subr.mxu0 0.0
  %1022 = vmatpush1.msra.mxu0 %v428
  %1023 = vmatprep.subr.mxu0 0.0
  %1024 = vmatpush1.msra.mxu0 %v429
  %1025 = vmatprep.subr.mxu0 0.0
  %1026 = vmatpush1.msra.mxu0 %v430
  %1027 = vmatprep.subr.mxu0 0.0
  %1028 = vmatpush1.msra.mxu0 %v431
  %1029 = vmatprep.subr.mxu0 0.0
  %1030 = vmatpush1.msra.mxu0 %v432
  %1031 = vmatprep.subr.mxu0 0.0
  %1032 = vmatpush1.msra.mxu0 %v433
  %1033 = vmatprep.subr.mxu0 0.0
  %1034 = vmatpush1.msra.mxu0 %v434
  %1035 = vmatprep.subr.mxu0 0.0
  %1036 = vmatpush1.msra.mxu0 %v435
  %1037 = vmatprep.subr.mxu0 0.0
  %1038 = vmatpush1.msra.mxu0 %v436
  %1039 = vmatprep.mubr.f32.mxu0 %v22
  %1040 = vmatmul.mubr.f32.gmra.mrb[0].mxu0 %v21
  %v1041 = vpop.f32.mrb[0].mxu0
  %v1042 = vadd.f32 %v797, %v1041
  %v1043 = vpop.f32.mrb[0].mxu0
  %1044 = vmatprep.mubr.f32.mxu0 %v31
  %1045 = vmatmul.mubr.f32.gmra.mrb[0].mxu0 %v30
  %v1046 = vpop.f32.mrb[0].mxu0
  %v1047 = vadd.f32 %v802, %v1046
  %v1048 = vpop.f32.mrb[0].mxu0
  %1049 = vmatprep.mubr.f32.mxu0 %v40
  %1050 = vmatmul.mubr.f32.gmra.mrb[0].mxu0 %v39
  %v1051 = vpop.f32.mrb[0].mxu0
  %v1052 = vadd.f32 %v807, %v1051
  %v1053 = vpop.f32.mrb[0].mxu0
  %1054 = vmatprep.mubr.f32.mxu0 %v49
  %1055 = vmatmul.mubr.f32.gmra.mrb[0].mxu0 %v48
  %v1056 = vpop.f32.mrb[0].mxu0
  %v1057 = vadd.f32 %v812, %v1056
  %v1058 = vpop.f32.mrb[0].mxu0
  %1059 = vmatprep.mubr.f32.mxu0 %v58
  %1060 = vmatmul.mubr.f32.gmra.mrb[0].mxu0 %v57
  %v1061 = vpop.f32.mrb[0].mxu0
  %v1062 = vadd.f32 %v817, %v1061
  %v1063 = vpop.f32.mrb[0].mxu0
  %1064 = vmatprep.mubr.f32.mxu0 %v67
  %1065 = vmatmul.mubr.f32.gmra.mrb[0].mxu0 %v66
  %v1066 = vpop.f32.mrb[0].mxu0
  %v1067 = vadd.f32 %v822, %v1066
  %v1068 = vpop.f32.mrb[0].mxu0
  %1069 = vmatprep.mubr.f32.mxu0 %v76
  %1070 = vmatmul.mubr.f32.gmra.mrb[0].mxu0 %v75
  %v1071 = vpop.f32.mrb[0].mxu0
  %v1072 = vadd.f32 %v827, %v1071
  %v1073 = vpop.f32.mrb[0].mxu0
  %1074 = vmatprep.mubr.f32.mxu0 %v85
  %1075 = vmatmul.mubr.f32.gmra.mrb[0].mxu0 %v84
  %v1076 = vpop.f32.mrb[0].mxu0
  %v1077 = vadd.f32 %v832, %v1076
  %v1078 = vpop.f32.mrb[0].mxu0
  %1079 = vmatprep.mubr.f32.mxu0 %v94
  %1080 = vmatmul.mubr.f32.gmra.mrb[0].mxu0 %v93
  %v1081 = vpop.f32.mrb[0].mxu0
  %v1082 = vadd.f32 %v837, %v1081
  %v1083 = vpop.f32.mrb[0].mxu0
  %1084 = vmatprep.mubr.f32.mxu0 %v103
  %1085 = vmatmul.mubr.f32.gmra.mrb[0].mxu0 %v102
  %v1086 = vpop.f32.mrb[0].mxu0
  %v1087 = vadd.f32 %v842, %v1086
  %v1088 = vpop.f32.mrb[0].mxu0
  %1089 = vmatprep.mubr.f32.mxu0 %v112
  %1090 = vmatmul.mubr.f32.gmra.mrb[0].mxu0 %v111
  %v1091 = vpop.f32.mrb[0].mxu0
  %v1092 = vadd.f32 %v847, %v1091
  %v1093 = vpop.f32.mrb[0].mxu0
  %1094 = vmatprep.mubr.f32.mxu0 %v121
  %1095 = vmatmul.mubr.f32.gmra.mrb[0].mxu0 %v120
  %v1096 = vpop.f32.mrb[0].mxu0
  %v1097 = vadd.f32 %v852, %v1096
  %v1098 = vpop.f32.mrb[0].mxu0
  %1099 = vmatprep.mubr.f32.mxu0 %v130
  %1100 = vmatmul.mubr.f32.gmra.mrb[0].mxu0 %v129
  %v1101 = vpop.f32.mrb[0].mxu0
  %v1102 = vadd.f32 %v857, %v1101
  %v1103 = vpop.f32.mrb[0].mxu0
  %1104 = vmatprep.mubr.f32.mxu0 %v139
  %1105 = vmatmul.mubr.f32.gmra.mrb[0].mxu0 %v138
  %v1106 = vpop.f32.mrb[0].mxu0
  %v1107 = vadd.f32 %v862, %v1106
  %v1108 = vpop.f32.mrb[0].mxu0
  %1109 = vmatprep.mubr.f32.mxu0 %v148
  %1110 = vmatmul.mubr.f32.gmra.mrb[0].mxu0 %v147
  %v1111 = vpop.f32.mrb[0].mxu0
  %v1112 = vadd.f32 %v867, %v1111
  %v1113 = vpop.f32.mrb[0].mxu0
  %1114 = vmatprep.mubr.f32.mxu0 %v157
  %1115 = vmatmul.mubr.f32.gmra.mrb[0].mxu0 %v156
  %v1116 = vpop.f32.mrb[0].mxu0
  %v1117 = vadd.f32 %v872, %v1116
  %v1118 = vpop.f32.mrb[0].mxu0
  %1119 = vmatprep.mubr.f32.mxu0 %v166
  %1120 = vmatmul.mubr.f32.gmra.mrb[0].mxu0 %v165
  %v1121 = vpop.f32.mrb[0].mxu0
  %v1122 = vadd.f32 %v877, %v1121
  %v1123 = vpop.f32.mrb[0].mxu0
  %1124 = vmatprep.mubr.f32.mxu0 %v175
  %1125 = vmatmul.mubr.f32.gmra.mrb[0].mxu0 %v174
  %v1126 = vpop.f32.mrb[0].mxu0
  %v1127 = vadd.f32 %v882, %v1126
  %v1128 = vpop.f32.mrb[0].mxu0
  %1129 = vmatprep.mubr.f32.mxu0 %v184
  %1130 = vmatmul.mubr.f32.gmra.mrb[0].mxu0 %v183
  %v1131 = vpop.f32.mrb[0].mxu0
  %v1132 = vadd.f32 %v887, %v1131
  %v1133 = vpop.f32.mrb[0].mxu0
  %1134 = vmatprep.mubr.f32.mxu0 %v193
  %1135 = vmatmul.mubr.f32.gmra.mrb[0].mxu0 %v192
  %v1136 = vpop.f32.mrb[0].mxu0
  %v1137 = vadd.f32 %v892, %v1136
  %v1138 = vpop.f32.mrb[0].mxu0
  %1139 = vmatprep.mubr.f32.mxu0 %v202
  %1140 = vmatmul.mubr.f32.gmra.mrb[0].mxu0 %v201
  %v1141 = vpop.f32.mrb[0].mxu0
  %v1142 = vadd.f32 %v897, %v1141
  %v1143 = vpop.f32.mrb[0].mxu0
  %1144 = vmatprep.mubr.f32.mxu0 %v211
  %1145 = vmatmul.mubr.f32.gmra.mrb[0].mxu0 %v210
  %v1146 = vpop.f32.mrb[0].mxu0
  %v1147 = vadd.f32 %v902, %v1146
  %v1148 = vpop.f32.mrb[0].mxu0
  %1149 = vmatprep.mubr.f32.mxu0 %v220
  %1150 = vmatmul.mubr.f32.gmra.mrb[0].mxu0 %v219
  %v1151 = vpop.f32.mrb[0].mxu0
  %v1152 = vadd.f32 %v907, %v1151
  %v1153 = vpop.f32.mrb[0].mxu0
  %1154 = vmatprep.mubr.f32.mxu0 %v229
  %1155 = vmatmul.mubr.f32.gmra.mrb[0].mxu0 %v228
  %v1156 = vpop.f32.mrb[0].mxu0
  %v1157 = vadd.f32 %v912, %v1156
  %v1158 = vpop.f32.mrb[0].mxu0
  %1159 = vmatprep.mubr.f32.mxu0 %v238
  %1160 = vmatmul.mubr.f32.gmra.mrb[0].mxu0 %v237
  %v1161 = vpop.f32.mrb[0].mxu0
  %v1162 = vadd.f32 %v917, %v1161
  %v1163 = vpop.f32.mrb[0].mxu0
  %1164 = vmatprep.mubr.f32.mxu0 %v247
  %1165 = vmatmul.mubr.f32.gmra.mrb[0].mxu0 %v246
  %v1166 = vpop.f32.mrb[0].mxu0
  %v1167 = vadd.f32 %v922, %v1166
  %v1168 = vpop.f32.mrb[0].mxu0
  %1169 = vmatprep.mubr.f32.mxu0 %v256
  %1170 = vmatmul.mubr.f32.gmra.mrb[0].mxu0 %v255
  %v1171 = vpop.f32.mrb[0].mxu0
  %v1172 = vadd.f32 %v927, %v1171
  %v1173 = vpop.f32.mrb[0].mxu0
  %1174 = vmatprep.mubr.f32.mxu0 %v265
  %1175 = vmatmul.mubr.f32.gmra.mrb[0].mxu0 %v264
  %v1176 = vpop.f32.mrb[0].mxu0
  %v1177 = vadd.f32 %v932, %v1176
  %v1178 = vpop.f32.mrb[0].mxu0
  %1179 = vmatprep.mubr.f32.mxu0 %v274
  %1180 = vmatmul.mubr.f32.gmra.mrb[0].mxu0 %v273
  %v1181 = vpop.f32.mrb[0].mxu0
  %v1182 = vadd.f32 %v937, %v1181
  %v1183 = vpop.f32.mrb[0].mxu0
  %1184 = vmatprep.mubr.f32.mxu0 %v283
  %1185 = vmatmul.mubr.f32.gmra.mrb[0].mxu0 %v282
  %v1186 = vpop.f32.mrb[0].mxu0
  %v1187 = vadd.f32 %v942, %v1186
  %v1188 = vpop.f32.mrb[0].mxu0
  %1189 = vmatprep.mubr.f32.mxu0 %v292
  %1190 = vmatmul.mubr.f32.gmra.mrb[0].mxu0 %v291
  %v1191 = vpop.f32.mrb[0].mxu0
  %v1192 = vadd.f32 %v947, %v1191
  %v1193 = vpop.f32.mrb[0].mxu0
  %1194 = vmatprep.mubr.f32.mxu0 %v301
  %1195 = vmatmul.mubr.f32.gmra.mrb[0].mxu0 %v300
  %v1196 = vpop.f32.mrb[0].mxu0
  %v1197 = vadd.f32 %v952, %v1196
  %v1198 = vpop.f32.mrb[0].mxu0
  %1199 = vmatprep.mubr.f32.mxu0 %v310
  %1200 = vmatmul.mubr.f32.gmra.mrb[0].mxu0 %v309
  %v1201 = vpop.f32.mrb[0].mxu0
  %v1202 = vadd.f32 %v957, %v1201
  %v1203 = vpop.f32.mrb[0].mxu0
  %1204 = vmatprep.mubr.f32.mxu0 %v319
  %1205 = vmatmul.mubr.f32.gmra.mrb[0].mxu0 %v318
  %v1206 = vpop.f32.mrb[0].mxu0
  %v1207 = vadd.f32 %v962, %v1206
  %v1208 = vpop.f32.mrb[0].mxu0
  %1209 = vmatprep.mubr.f32.mxu0 %v328
  %1210 = vmatmul.mubr.f32.gmra.mrb[0].mxu0 %v327
  %v1211 = vpop.f32.mrb[0].mxu0
  %v1212 = vadd.f32 %v967, %v1211
  %v1213 = vpop.f32.mrb[0].mxu0
  %1214 = vmatprep.mubr.f32.mxu0 %v337
  %1215 = vmatmul.mubr.f32.gmra.mrb[0].mxu0 %v336
  %v1216 = vpop.f32.mrb[0].mxu0
  %v1217 = vadd.f32 %v972, %v1216
  %v1218 = vpop.f32.mrb[0].mxu0
  %1219 = vdwg.mxu0
  %1220 = vmatprep.subr.mxu0 0.0
  %1221 = vmatpush1.msra.mxu0 %v437
  %1222 = vmatprep.subr.mxu0 0.0
  %1223 = vmatpush1.msra.mxu0 %v438
  %1224 = vmatprep.subr.mxu0 0.0
  %1225 = vmatpush1.msra.mxu0 %v439
  %1226 = vmatprep.subr.mxu0 0.0
  %1227 = vmatpush1.msra.mxu0 %v440
  %1228 = vmatprep.subr.mxu0 0.0
  %1229 = vmatpush1.msra.mxu0 %v441
  %1230 = vmatprep.subr.mxu0 0.0
  %1231 = vmatpush1.msra.mxu0 %v442
  %1232 = vmatprep.subr.mxu0 0.0
  %1233 = vmatpush1.msra.mxu0 %v443
  %1234 = vmatprep.subr.mxu0 0.0
  %1235 = vmatpush1.msra.mxu0 %v444
  %1236 = vmatprep.subr.mxu0 0.0
  %1237 = vmatpush1.msra.mxu0 %v445
  %1238 = vmatprep.subr.mxu0 0.0
  %1239 = vmatpush1.msra.mxu0 %v446
  %1240 = vmatprep.subr.mxu0 0.0
  %1241 = vmatpush1.msra.mxu0 %v447
  %1242 = vmatprep.subr.mxu0 0.0
  %1243 = vmatpush1.msra.mxu0 %v448
  %1244 = vmatprep.subr.mxu0 0.0
  %1245 = vmatpush1.msra.mxu0 %v449
  %1246 = vmatprep.subr.mxu0 0.0
  %1247 = vmatpush1.msra.mxu0 %v450
  %1248 = vmatprep.subr.mxu0 0.0
  %1249 = vmatpush1.msra.mxu0 %v451
  %1250 = vmatprep.subr.mxu0 0.0
  %1251 = vmatpush1.msra.mxu0 %v452
  %1252 = vmatprep.subr.mxu0 0.0
  %1253 = vmatpush1.msra.mxu0 %v453
  %1254 = vmatprep.subr.mxu0 0.0
  %1255 = vmatpush1.msra.mxu0 %v454
  %1256 = vmatprep.subr.mxu0 0.0
  %1257 = vmatpush1.msra.mxu0 %v455
  %1258 = vmatprep.subr.mxu0 0.0
  %1259 = vmatpush1.msra.mxu0 %v456
  %1260 = vmatprep.subr.mxu0 0.0
  %1261 = vmatpush1.msra.mxu0 %v457
  %1262 = vmatprep.subr.mxu0 0.0
  %1263 = vmatpush1.msra.mxu0 %v458
  %1264 = vmatprep.subr.mxu0 0.0
  %1265 = vmatpush1.msra.mxu0 %v459
  %1266 = vmatprep.subr.mxu0 0.0
  %1267 = vmatpush1.msra.mxu0 %v460
  %1268 = vmatprep.subr.mxu0 0.0
  %1269 = vmatpush1.msra.mxu0 %v461
  %1270 = vmatprep.subr.mxu0 0.0
  %1271 = vmatpush1.msra.mxu0 %v462
  %1272 = vmatprep.subr.mxu0 0.0
  %1273 = vmatpush1.msra.mxu0 %v463
  %1274 = vmatprep.subr.mxu0 0.0
  %1275 = vmatpush1.msra.mxu0 %v464
  %1276 = vmatprep.subr.mxu0 0.0
  %1277 = vmatpush1.msra.mxu0 %v465
  %1278 = vmatprep.subr.mxu0 0.0
  %1279 = vmatpush1.msra.mxu0 %v466
  %1280 = vmatprep.subr.mxu0 0.0
  %1281 = vmatpush1.msra.mxu0 %v467
  %1282 = vmatprep.subr.mxu0 0.0
  %1283 = vmatpush1.msra.mxu0 %v468
  %1284 = vmatprep.mubr.f32.mxu0 %v24
  %1285 = vmatmul.mubr.f32.gmra.mrb[0].mxu0 %v23
  %v1286 = vpop.f32.mrb[0].mxu0
  %v1287 = vadd.f32 %v1042, %v1286
  %v1288 = vpop.f32.mrb[0].mxu0
  %1289 = vmatprep.mubr.f32.mxu0 %v33
  %1290 = vmatmul.mubr.f32.gmra.mrb[0].mxu0 %v32
  %v1291 = vpop.f32.mrb[0].mxu0
  %v1292 = vadd.f32 %v1047, %v1291
  %v1293 = vpop.f32.mrb[0].mxu0
  %1294 = vmatprep.mubr.f32.mxu0 %v42
  %1295 = vmatmul.mubr.f32.gmra.mrb[0].mxu0 %v41
  %v1296 = vpop.f32.mrb[0].mxu0
  %v1297 = vadd.f32 %v1052, %v1296
  %v1298 = vpop.f32.mrb[0].mxu0
  %1299 = vmatprep.mubr.f32.mxu0 %v51
  %1300 = vmatmul.mubr.f32.gmra.mrb[0].mxu0 %v50
  %v1301 = vpop.f32.mrb[0].mxu0
  %v1302 = vadd.f32 %v1057, %v1301
  %v1303 = vpop.f32.mrb[0].mxu0
  %1304 = vmatprep.mubr.f32.mxu0 %v60
  %1305 = vmatmul.mubr.f32.gmra.mrb[0].mxu0 %v59
  %v1306 = vpop.f32.mrb[0].mxu0
  %v1307 = vadd.f32 %v1062, %v1306
  %v1308 = vpop.f32.mrb[0].mxu0
  %1309 = vmatprep.mubr.f32.mxu0 %v69
  %1310 = vmatmul.mubr.f32.gmra.mrb[0].mxu0 %v68
  %v1311 = vpop.f32.mrb[0].mxu0
  %v1312 = vadd.f32 %v1067, %v1311
  %v1313 = vpop.f32.mrb[0].mxu0
  %1314 = vmatprep.mubr.f32.mxu0 %v78
  %1315 = vmatmul.mubr.f32.gmra.mrb[0].mxu0 %v77
  %v1316 = vpop.f32.mrb[0].mxu0
  %v1317 = vadd.f32 %v1072, %v1316
  %v1318 = vpop.f32.mrb[0].mxu0
  %1319 = vmatprep.mubr.f32.mxu0 %v87
  %1320 = vmatmul.mubr.f32.gmra.mrb[0].mxu0 %v86
  %v1321 = vpop.f32.mrb[0].mxu0
  %v1322 = vadd.f32 %v1077, %v1321
  %v1323 = vpop.f32.mrb[0].mxu0
  %1324 = vmatprep.mubr.f32.mxu0 %v96
  %1325 = vmatmul.mubr.f32.gmra.mrb[0].mxu0 %v95
  %v1326 = vpop.f32.mrb[0].mxu0
  %v1327 = vadd.f32 %v1082, %v1326
  %v1328 = vpop.f32.mrb[0].mxu0
  %1329 = vmatprep.mubr.f32.mxu0 %v105
  %1330 = vmatmul.mubr.f32.gmra.mrb[0].mxu0 %v104
  %v1331 = vpop.f32.mrb[0].mxu0
  %v1332 = vadd.f32 %v1087, %v1331
  %v1333 = vpop.f32.mrb[0].mxu0
  %1334 = vmatprep.mubr.f32.mxu0 %v114
  %1335 = vmatmul.mubr.f32.gmra.mrb[0].mxu0 %v113
  %v1336 = vpop.f32.mrb[0].mxu0
  %v1337 = vadd.f32 %v1092, %v1336
  %v1338 = vpop.f32.mrb[0].mxu0
  %1339 = vmatprep.mubr.f32.mxu0 %v123
  %1340 = vmatmul.mubr.f32.gmra.mrb[0].mxu0 %v122
  %v1341 = vpop.f32.mrb[0].mxu0
  %v1342 = vadd.f32 %v1097, %v1341
  %v1343 = vpop.f32.mrb[0].mxu0
  %1344 = vmatprep.mubr.f32.mxu0 %v132
  %1345 = vmatmul.mubr.f32.gmra.mrb[0].mxu0 %v131
  %v1346 = vpop.f32.mrb[0].mxu0
  %v1347 = vadd.f32 %v1102, %v1346
  %v1348 = vpop.f32.mrb[0].mxu0
  %1349 = vmatprep.mubr.f32.mxu0 %v141
  %1350 = vmatmul.mubr.f32.gmra.mrb[0].mxu0 %v140
  %v1351 = vpop.f32.mrb[0].mxu0
  %v1352 = vadd.f32 %v1107, %v1351
  %v1353 = vpop.f32.mrb[0].mxu0
  %1354 = vmatprep.mubr.f32.mxu0 %v150
  %1355 = vmatmul.mubr.f32.gmra.mrb[0].mxu0 %v149
  %v1356 = vpop.f32.mrb[0].mxu0
  %v1357 = vadd.f32 %v1112, %v1356
  %v1358 = vpop.f32.mrb[0].mxu0
  %1359 = vmatprep.mubr.f32.mxu0 %v159
  %1360 = vmatmul.mubr.f32.gmra.mrb[0].mxu0 %v158
  %v1361 = vpop.f32.mrb[0].mxu0
  %v1362 = vadd.f32 %v1117, %v1361
  %v1363 = vpop.f32.mrb[0].mxu0
  %1364 = vmatprep.mubr.f32.mxu0 %v168
  %1365 = vmatmul.mubr.f32.gmra.mrb[0].mxu0 %v167
  %v1366 = vpop.f32.mrb[0].mxu0
  %v1367 = vadd.f32 %v1122, %v1366
  %v1368 = vpop.f32.mrb[0].mxu0
  %1369 = vmatprep.mubr.f32.mxu0 %v177
  %1370 = vmatmul.mubr.f32.gmra.mrb[0].mxu0 %v176
  %v1371 = vpop.f32.mrb[0].mxu0
  %v1372 = vadd.f32 %v1127, %v1371
  %v1373 = vpop.f32.mrb[0].mxu0
  %1374 = vmatprep.mubr.f32.mxu0 %v186
  %1375 = vmatmul.mubr.f32.gmra.mrb[0].mxu0 %v185
  %v1376 = vpop.f32.mrb[0].mxu0
  %v1377 = vadd.f32 %v1132, %v1376
  %v1378 = vpop.f32.mrb[0].mxu0
  %1379 = vmatprep.mubr.f32.mxu0 %v195
  %1380 = vmatmul.mubr.f32.gmra.mrb[0].mxu0 %v194
  %v1381 = vpop.f32.mrb[0].mxu0
  %v1382 = vadd.f32 %v1137, %v1381
  %v1383 = vpop.f32.mrb[0].mxu0
  %1384 = vmatprep.mubr.f32.mxu0 %v204
  %1385 = vmatmul.mubr.f32.gmra.mrb[0].mxu0 %v203
  %v1386 = vpop.f32.mrb[0].mxu0
  %v1387 = vadd.f32 %v1142, %v1386
  %v1388 = vpop.f32.mrb[0].mxu0
  %1389 = vmatprep.mubr.f32.mxu0 %v213
  %1390 = vmatmul.mubr.f32.gmra.mrb[0].mxu0 %v212
  %v1391 = vpop.f32.mrb[0].mxu0
  %v1392 = vadd.f32 %v1147, %v1391
  %v1393 = vpop.f32.mrb[0].mxu0
  %1394 = vmatprep.mubr.f32.mxu0 %v222
  %1395 = vmatmul.mubr.f32.gmra.mrb[0].mxu0 %v221
  %v1396 = vpop.f32.mrb[0].mxu0
  %v1397 = vadd.f32 %v1152, %v1396
  %v1398 = vpop.f32.mrb[0].mxu0
  %1399 = vmatprep.mubr.f32.mxu0 %v231
  %1400 = vmatmul.mubr.f32.gmra.mrb[0].mxu0 %v230
  %v1401 = vpop.f32.mrb[0].mxu0
  %v1402 = vadd.f32 %v1157, %v1401
  %v1403 = vpop.f32.mrb[0].mxu0
  %1404 = vmatprep.mubr.f32.mxu0 %v240
  %1405 = vmatmul.mubr.f32.gmra.mrb[0].mxu0 %v239
  %v1406 = vpop.f32.mrb[0].mxu0
  %v1407 = vadd.f32 %v1162, %v1406
  %v1408 = vpop.f32.mrb[0].mxu0
  %1409 = vmatprep.mubr.f32.mxu0 %v249
  %1410 = vmatmul.mubr.f32.gmra.mrb[0].mxu0 %v248
  %v1411 = vpop.f32.mrb[0].mxu0
  %v1412 = vadd.f32 %v1167, %v1411
  %v1413 = vpop.f32.mrb[0].mxu0
  %1414 = vmatprep.mubr.f32.mxu0 %v258
  %1415 = vmatmul.mubr.f32.gmra.mrb[0].mxu0 %v257
  %v1416 = vpop.f32.mrb[0].mxu0
  %v1417 = vadd.f32 %v1172, %v1416
  %v1418 = vpop.f32.mrb[0].mxu0
  %1419 = vmatprep.mubr.f32.mxu0 %v267
  %1420 = vmatmul.mubr.f32.gmra.mrb[0].mxu0 %v266
  %v1421 = vpop.f32.mrb[0].mxu0
  %v1422 = vadd.f32 %v1177, %v1421
  %v1423 = vpop.f32.mrb[0].mxu0
  %1424 = vmatprep.mubr.f32.mxu0 %v276
  %1425 = vmatmul.mubr.f32.gmra.mrb[0].mxu0 %v275
  %v1426 = vpop.f32.mrb[0].mxu0
  %v1427 = vadd.f32 %v1182, %v1426
  %v1428 = vpop.f32.mrb[0].mxu0
  %1429 = vmatprep.mubr.f32.mxu0 %v285
  %1430 = vmatmul.mubr.f32.gmra.mrb[0].mxu0 %v284
  %v1431 = vpop.f32.mrb[0].mxu0
  %v1432 = vadd.f32 %v1187, %v1431
  %v1433 = vpop.f32.mrb[0].mxu0
  %1434 = vmatprep.mubr.f32.mxu0 %v294
  %1435 = vmatmul.mubr.f32.gmra.mrb[0].mxu0 %v293
  %v1436 = vpop.f32.mrb[0].mxu0
  %v1437 = vadd.f32 %v1192, %v1436
  %v1438 = vpop.f32.mrb[0].mxu0
  %1439 = vmatprep.mubr.f32.mxu0 %v303
  %1440 = vmatmul.mubr.f32.gmra.mrb[0].mxu0 %v302
  %v1441 = vpop.f32.mrb[0].mxu0
  %v1442 = vadd.f32 %v1197, %v1441
  %v1443 = vpop.f32.mrb[0].mxu0
  %1444 = vmatprep.mubr.f32.mxu0 %v312
  %1445 = vmatmul.mubr.f32.gmra.mrb[0].mxu0 %v311
  %v1446 = vpop.f32.mrb[0].mxu0
  %v1447 = vadd.f32 %v1202, %v1446
  %v1448 = vpop.f32.mrb[0].mxu0
  %1449 = vmatprep.mubr.f32.mxu0 %v321
  %1450 = vmatmul.mubr.f32.gmra.mrb[0].mxu0 %v320
  %v1451 = vpop.f32.mrb[0].mxu0
  %v1452 = vadd.f32 %v1207, %v1451
  %v1453 = vpop.f32.mrb[0].mxu0
  %1454 = vmatprep.mubr.f32.mxu0 %v330
  %1455 = vmatmul.mubr.f32.gmra.mrb[0].mxu0 %v329
  %v1456 = vpop.f32.mrb[0].mxu0
  %v1457 = vadd.f32 %v1212, %v1456
  %v1458 = vpop.f32.mrb[0].mxu0
  %1459 = vmatprep.mubr.f32.mxu0 %v339
  %1460 = vmatmul.mubr.f32.gmra.mrb[0].mxu0 %v338
  %v1461 = vpop.f32.mrb[0].mxu0
  %v1462 = vadd.f32 %v1217, %v1461
  %v1463 = vpop.f32.mrb[0].mxu0
  %1464 = vdwg.mxu0
  %1465 = vmatprep.subr.mxu0 0.0
  %1466 = vmatpush1.msra.mxu0 %v469
  %1467 = vmatprep.subr.mxu0 0.0
  %1468 = vmatpush1.msra.mxu0 %v470
  %1469 = vmatprep.subr.mxu0 0.0
  %1470 = vmatpush1.msra.mxu0 %v471
  %1471 = vmatprep.subr.mxu0 0.0
  %1472 = vmatpush1.msra.mxu0 %v472
  %1473 = vmatprep.subr.mxu0 0.0
  %1474 = vmatpush1.msra.mxu0 %v473
  %1475 = vmatprep.subr.mxu0 0.0
  %1476 = vmatpush1.msra.mxu0 %v474
  %1477 = vmatprep.subr.mxu0 0.0
  %1478 = vmatpush1.msra.mxu0 %v475
  %1479 = vmatprep.subr.mxu0 0.0
  %1480 = vmatpush1.msra.mxu0 %v476
  %1481 = vmatprep.subr.mxu0 0.0
  %1482 = vmatpush1.msra.mxu0 %v477
  %1483 = vmatprep.subr.mxu0 0.0
  %1484 = vmatpush1.msra.mxu0 %v478
  %1485 = vmatprep.subr.mxu0 0.0
  %1486 = vmatpush1.msra.mxu0 %v479
  %1487 = vmatprep.subr.mxu0 0.0
  %1488 = vmatpush1.msra.mxu0 %v480
  %1489 = vmatprep.subr.mxu0 0.0
  %1490 = vmatpush1.msra.mxu0 %v481
  %1491 = vmatprep.subr.mxu0 0.0
  %1492 = vmatpush1.msra.mxu0 %v482
  %1493 = vmatprep.subr.mxu0 0.0
  %1494 = vmatpush1.msra.mxu0 %v483
  %1495 = vmatprep.subr.mxu0 0.0
  %1496 = vmatpush1.msra.mxu0 %v484
  %1497 = vmatprep.subr.mxu0 0.0
  %1498 = vmatpush1.msra.mxu0 0.0
  %1499 = vmatprep.subr.mxu0 0.0
  %1500 = vmatpush1.msra.mxu0 0.0
  %1501 = vmatprep.subr.mxu0 0.0
  %1502 = vmatpush1.msra.mxu0 0.0
  %1503 = vmatprep.subr.mxu0 0.0
  %1504 = vmatpush1.msra.mxu0 0.0
  %1505 = vmatprep.subr.mxu0 0.0
  %1506 = vmatpush1.msra.mxu0 0.0
  %1507 = vmatprep.subr.mxu0 0.0
  %1508 = vmatpush1.msra.mxu0 0.0
  %1509 = vmatprep.subr.mxu0 0.0
  %1510 = vmatpush1.msra.mxu0 0.0
  %1511 = vmatprep.subr.mxu0 0.0
  %1512 = vmatpush1.msra.mxu0 0.0
  %1513 = vmatprep.subr.mxu0 0.0
  %1514 = vmatpush1.msra.mxu0 0.0
  %1515 = vmatprep.subr.mxu0 0.0
  %1516 = vmatpush1.msra.mxu0 0.0
  %1517 = vmatprep.subr.mxu0 0.0
  %1518 = vmatpush1.msra.mxu0 0.0
  %1519 = vmatprep.subr.mxu0 0.0
  %1520 = vmatpush1.msra.mxu0 0.0
  %1521 = vmatprep.subr.mxu0 0.0
  %1522 = vmatpush1.msra.mxu0 0.0
  %1523 = vmatprep.subr.mxu0 0.0
  %1524 = vmatpush1.msra.mxu0 0.0
  %1525 = vmatprep.subr.mxu0 0.0
  %1526 = vmatpush1.msra.mxu0 0.0
  %1527 = vmatprep.subr.mxu0 0.0
  %1528 = vmatpush1.msra.mxu0 0.0
  %1529 = vmatprep.mubr.f32.mxu0 0.0
  %1530 = vmatmul.mubr.f32.gmra.mrb[0].mxu0 %v25
  %v1531 = vpop.f32.mrb[0].mxu0
  %v1532 = vadd.f32 %v1287, %v1531
  %v1533 = vpop.f32.mrb[0].mxu0
  %1534 = vmatprep.mubr.f32.mxu0 0.0
  %1535 = vmatmul.mubr.f32.gmra.mrb[0].mxu0 %v34
  %v1536 = vpop.f32.mrb[0].mxu0
  %v1537 = vadd.f32 %v1292, %v1536
  %v1538 = vpop.f32.mrb[0].mxu0
  %1539 = vmatprep.mubr.f32.mxu0 0.0
  %1540 = vmatmul.mubr.f32.gmra.mrb[0].mxu0 %v43
  %v1541 = vpop.f32.mrb[0].mxu0
  %v1542 = vadd.f32 %v1297, %v1541
  %v1543 = vpop.f32.mrb[0].mxu0
  %1544 = vmatprep.mubr.f32.mxu0 0.0
  %1545 = vmatmul.mubr.f32.gmra.mrb[0].mxu0 %v52
  %v1546 = vpop.f32.mrb[0].mxu0
  %v1547 = vadd.f32 %v1302, %v1546
  %v1548 = vpop.f32.mrb[0].mxu0
  %1549 = vmatprep.mubr.f32.mxu0 0.0
  %1550 = vmatmul.mubr.f32.gmra.mrb[0].mxu0 %v61
  %v1551 = vpop.f32.mrb[0].mxu0
  %v1552 = vadd.f32 %v1307, %v1551
  %v1553 = vpop.f32.mrb[0].mxu0
  %1554 = vmatprep.mubr.f32.mxu0 0.0
  %1555 = vmatmul.mubr.f32.gmra.mrb[0].mxu0 %v70
  %v1556 = vpop.f32.mrb[0].mxu0
  %v1557 = vadd.f32 %v1312, %v1556
  %v1558 = vpop.f32.mrb[0].mxu0
  %1559 = vmatprep.mubr.f32.mxu0 0.0
  %1560 = vmatmul.mubr.f32.gmra.mrb[0].mxu0 %v79
  %v1561 = vpop.f32.mrb[0].mxu0
  %v1562 = vadd.f32 %v1317, %v1561
  %v1563 = vpop.f32.mrb[0].mxu0
  %1564 = vmatprep.mubr.f32.mxu0 0.0
  %1565 = vmatmul.mubr.f32.gmra.mrb[0].mxu0 %v88
  %v1566 = vpop.f32.mrb[0].mxu0
  %v1567 = vadd.f32 %v1322, %v1566
  %v1568 = vpop.f32.mrb[0].mxu0
  %1569 = vmatprep.mubr.f32.mxu0 0.0
  %1570 = vmatmul.mubr.f32.gmra.mrb[0].mxu0 %v97
  %v1571 = vpop.f32.mrb[0].mxu0
  %v1572 = vadd.f32 %v1327, %v1571
  %v1573 = vpop.f32.mrb[0].mxu0
  %1574 = vmatprep.mubr.f32.mxu0 0.0
  %1575 = vmatmul.mubr.f32.gmra.mrb[0].mxu0 %v106
  %v1576 = vpop.f32.mrb[0].mxu0
  %v1577 = vadd.f32 %v1332, %v1576
  %v1578 = vpop.f32.mrb[0].mxu0
  %1579 = vmatprep.mubr.f32.mxu0 0.0
  %1580 = vmatmul.mubr.f32.gmra.mrb[0].mxu0 %v115
  %v1581 = vpop.f32.mrb[0].mxu0
  %v1582 = vadd.f32 %v1337, %v1581
  %v1583 = vpop.f32.mrb[0].mxu0
  %1584 = vmatprep.mubr.f32.mxu0 0.0
  %1585 = vmatmul.mubr.f32.gmra.mrb[0].mxu0 %v124
  %v1586 = vpop.f32.mrb[0].mxu0
  %v1587 = vadd.f32 %v1342, %v1586
  %v1588 = vpop.f32.mrb[0].mxu0
  %1589 = vmatprep.mubr.f32.mxu0 0.0
  %1590 = vmatmul.mubr.f32.gmra.mrb[0].mxu0 %v133
  %v1591 = vpop.f32.mrb[0].mxu0
  %v1592 = vadd.f32 %v1347, %v1591
  %v1593 = vpop.f32.mrb[0].mxu0
  %1594 = vmatprep.mubr.f32.mxu0 0.0
  %1595 = vmatmul.mubr.f32.gmra.mrb[0].mxu0 %v142
  %v1596 = vpop.f32.mrb[0].mxu0
  %v1597 = vadd.f32 %v1352, %v1596
  %v1598 = vpop.f32.mrb[0].mxu0
  %1599 = vmatprep.mubr.f32.mxu0 0.0
  %1600 = vmatmul.mubr.f32.gmra.mrb[0].mxu0 %v151
  %v1601 = vpop.f32.mrb[0].mxu0
  %v1602 = vadd.f32 %v1357, %v1601
  %v1603 = vpop.f32.mrb[0].mxu0
  %1604 = vmatprep.mubr.f32.mxu0 0.0
  %1605 = vmatmul.mubr.f32.gmra.mrb[0].mxu0 %v160
  %v1606 = vpop.f32.mrb[0].mxu0
  %v1607 = vadd.f32 %v1362, %v1606
  %v1608 = vpop.f32.mrb[0].mxu0
  %1609 = vmatprep.mubr.f32.mxu0 0.0
  %1610 = vmatmul.mubr.f32.gmra.mrb[0].mxu0 %v169
  %v1611 = vpop.f32.mrb[0].mxu0
  %v1612 = vadd.f32 %v1367, %v1611
  %v1613 = vpop.f32.mrb[0].mxu0
  %1614 = vmatprep.mubr.f32.mxu0 0.0
  %1615 = vmatmul.mubr.f32.gmra.mrb[0].mxu0 %v178
  %v1616 = vpop.f32.mrb[0].mxu0
  %v1617 = vadd.f32 %v1372, %v1616
  %v1618 = vpop.f32.mrb[0].mxu0
  %1619 = vmatprep.mubr.f32.mxu0 0.0
  %1620 = vmatmul.mubr.f32.gmra.mrb[0].mxu0 %v187
  %v1621 = vpop.f32.mrb[0].mxu0
  %v1622 = vadd.f32 %v1377, %v1621
  %v1623 = vpop.f32.mrb[0].mxu0
  %1624 = vmatprep.mubr.f32.mxu0 0.0
  %1625 = vmatmul.mubr.f32.gmra.mrb[0].mxu0 %v196
  %v1626 = vpop.f32.mrb[0].mxu0
  %v1627 = vadd.f32 %v1382, %v1626
  %v1628 = vpop.f32.mrb[0].mxu0
  %1629 = vmatprep.mubr.f32.mxu0 0.0
  %1630 = vmatmul.mubr.f32.gmra.mrb[0].mxu0 %v205
  %v1631 = vpop.f32.mrb[0].mxu0
  %v1632 = vadd.f32 %v1387, %v1631
  %v1633 = vpop.f32.mrb[0].mxu0
  %1634 = vmatprep.mubr.f32.mxu0 0.0
  %1635 = vmatmul.mubr.f32.gmra.mrb[0].mxu0 %v214
  %v1636 = vpop.f32.mrb[0].mxu0
  %v1637 = vadd.f32 %v1392, %v1636
  %v1638 = vpop.f32.mrb[0].mxu0
  %1639 = vmatprep.mubr.f32.mxu0 0.0
  %1640 = vmatmul.mubr.f32.gmra.mrb[0].mxu0 %v223
  %v1641 = vpop.f32.mrb[0].mxu0
  %v1642 = vadd.f32 %v1397, %v1641
  %v1643 = vpop.f32.mrb[0].mxu0
  %1644 = vmatprep.mubr.f32.mxu0 0.0
  %1645 = vmatmul.mubr.f32.gmra.mrb[0].mxu0 %v232
  %v1646 = vpop.f32.mrb[0].mxu0
  %v1647 = vadd.f32 %v1402, %v1646
  %v1648 = vpop.f32.mrb[0].mxu0
  %1649 = vmatprep.mubr.f32.mxu0 0.0
  %1650 = vmatmul.mubr.f32.gmra.mrb[0].mxu0 %v241
  %v1651 = vpop.f32.mrb[0].mxu0
  %v1652 = vadd.f32 %v1407, %v1651
  %v1653 = vpop.f32.mrb[0].mxu0
  %1654 = vmatprep.mubr.f32.mxu0 0.0
  %1655 = vmatmul.mubr.f32.gmra.mrb[0].mxu0 %v250
  %v1656 = vpop.f32.mrb[0].mxu0
  %v1657 = vadd.f32 %v1412, %v1656
  %v1658 = vpop.f32.mrb[0].mxu0
  %1659 = vmatprep.mubr.f32.mxu0 0.0
  %1660 = vmatmul.mubr.f32.gmra.mrb[0].mxu0 %v259
  %v1661 = vpop.f32.mrb[0].mxu0
  %v1662 = vadd.f32 %v1417, %v1661
  %v1663 = vpop.f32.mrb[0].mxu0
  %1664 = vmatprep.mubr.f32.mxu0 0.0
  %1665 = vmatmul.mubr.f32.gmra.mrb[0].mxu0 %v268
  %v1666 = vpop.f32.mrb[0].mxu0
  %v1667 = vadd.f32 %v1422, %v1666
  %v1668 = vpop.f32.mrb[0].mxu0
  %1669 = vmatprep.mubr.f32.mxu0 0.0
  %1670 = vmatmul.mubr.f32.gmra.mrb[0].mxu0 %v277
  %v1671 = vpop.f32.mrb[0].mxu0
  %v1672 = vadd.f32 %v1427, %v1671
  %v1673 = vpop.f32.mrb[0].mxu0
  %1674 = vmatprep.mubr.f32.mxu0 0.0
  %1675 = vmatmul.mubr.f32.gmra.mrb[0].mxu0 %v286
  %v1676 = vpop.f32.mrb[0].mxu0
  %v1677 = vadd.f32 %v1432, %v1676
  %v1678 = vpop.f32.mrb[0].mxu0
  %1679 = vmatprep.mubr.f32.mxu0 0.0
  %1680 = vmatmul.mubr.f32.gmra.mrb[0].mxu0 %v295
  %v1681 = vpop.f32.mrb[0].mxu0
  %v1682 = vadd.f32 %v1437, %v1681
  %v1683 = vpop.f32.mrb[0].mxu0
  %1684 = vmatprep.mubr.f32.mxu0 0.0
  %1685 = vmatmul.mubr.f32.gmra.mrb[0].mxu0 %v304
  %v1686 = vpop.f32.mrb[0].mxu0
  %v1687 = vadd.f32 %v1442, %v1686
  %v1688 = vpop.f32.mrb[0].mxu0
  %1689 = vmatprep.mubr.f32.mxu0 0.0
  %1690 = vmatmul.mubr.f32.gmra.mrb[0].mxu0 %v313
  %v1691 = vpop.f32.mrb[0].mxu0
  %v1692 = vadd.f32 %v1447, %v1691
  %v1693 = vpop.f32.mrb[0].mxu0
  %1694 = vmatprep.mubr.f32.mxu0 0.0
  %1695 = vmatmul.mubr.f32.gmra.mrb[0].mxu0 %v322
  %v1696 = vpop.f32.mrb[0].mxu0
  %v1697 = vadd.f32 %v1452, %v1696
  %v1698 = vpop.f32.mrb[0].mxu0
  %1699 = vmatprep.mubr.f32.mxu0 0.0
  %1700 = vmatmul.mubr.f32.gmra.mrb[0].mxu0 %v331
  %v1701 = vpop.f32.mrb[0].mxu0
  %v1702 = vadd.f32 %v1457, %v1701
  %v1703 = vpop.f32.mrb[0].mxu0
  %1704 = vmatprep.mubr.f32.mxu0 0.0
  %1705 = vmatmul.mubr.f32.gmra.mrb[0].mxu0 %v340
  %v1706 = vpop.f32.mrb[0].mxu0
  %v1707 = vadd.f32 %v1462, %v1706
  %v1708 = vpop.f32.mrb[0].mxu0
  %1709 = vdwg.mxu0
  %v1710 = vadd.f32 %v1532, %v1537
  %v1711 = vadd.f32 %v1710, %v1542
  %v1712 = vadd.f32 %v1711, %v1547
  %v1713 = vadd.f32 %v1712, %v1552
  %v1714 = vadd.f32 %v1713, %v1557
  %v1715 = vadd.f32 %v1714, %v1562
  %v1716 = vadd.f32 %v1715, %v1567
  %v1717 = vadd.f32 %v1716, %v1572
  %v1718 = vadd.f32 %v1717, %v1577
  %v1719 = vadd.f32 %v1718, %v1582
  %v1720 = vadd.f32 %v1719, %v1587
  %v1721 = vadd.f32 %v1720, %v1592
  %v1722 = vadd.f32 %v1721, %v1597
  %v1723 = vadd.f32 %v1722, %v1602
  %v1724 = vadd.f32 %v1723, %v1607
  %v1725 = vadd.f32 %v1724, %v1612
  %v1726 = vadd.f32 %v1725, %v1617
  %v1727 = vadd.f32 %v1726, %v1622
  %v1728 = vadd.f32 %v1727, %v1627
  %v1729 = vadd.f32 %v1728, %v1632
  %v1730 = vadd.f32 %v1729, %v1637
  %v1731 = vadd.f32 %v1730, %v1642
  %v1732 = vadd.f32 %v1731, %v1647
  %v1733 = vadd.f32 %v1732, %v1652
  %v1734 = vadd.f32 %v1733, %v1657
  %v1735 = vadd.f32 %v1734, %v1662
  %v1736 = vadd.f32 %v1735, %v1667
  %v1737 = vadd.f32 %v1736, %v1672
  %v1738 = vadd.f32 %v1737, %v1677
  %v1739 = vadd.f32 %v1738, %v1682
  %v1740 = vadd.f32 %v1739, %v1687
  %v1741 = vadd.f32 %v1740, %v1692
  %v1742 = vadd.f32 %v1741, %v1697
  %v1743 = vadd.f32 %v1742, %v1702
  %v1744 = vadd.f32 %v1743, %v1707
  %v1745 = vrot.slane %v1744, 4
  %v1746 = vadd.f32 %v1744, %v1745
  %v1747 = vrot.slane %v1746, 2
  %v1748 = vadd.f32 %v1746, %v1747
  %v1749 = vrot.slane %v1748, 1
  %v1750 = vadd.f32 %v1748, %v1749
  %v1751 = vmul.f32 %v1750, 0.0034722222
  %v1752 = vsub.f32 %v1532, %v1751
  %v1753 = vsub.f32 %v1537, %v1751
  %v1754 = vsub.f32 %v1542, %v1751
  %v1755 = vsub.f32 %v1547, %v1751
  %v1756 = vsub.f32 %v1552, %v1751
  %v1757 = vsub.f32 %v1557, %v1751
  %v1758 = vsub.f32 %v1562, %v1751
  %v1759 = vsub.f32 %v1567, %v1751
  %v1760 = vsub.f32 %v1572, %v1751
  %v1761 = vsub.f32 %v1577, %v1751
  %v1762 = vsub.f32 %v1582, %v1751
  %v1763 = vsub.f32 %v1587, %v1751
  %v1764 = vsub.f32 %v1592, %v1751
  %v1765 = vsub.f32 %v1597, %v1751
  %v1766 = vsub.f32 %v1602, %v1751
  %v1767 = vsub.f32 %v1607, %v1751
  %v1768 = vsub.f32 %v1612, %v1751
  %v1769 = vsub.f32 %v1617, %v1751
  %v1770 = vsub.f32 %v1622, %v1751
  %v1771 = vsub.f32 %v1627, %v1751
  %v1772 = vsub.f32 %v1632, %v1751
  %v1773 = vsub.f32 %v1637, %v1751
  %v1774 = vsub.f32 %v1642, %v1751
  %v1775 = vsub.f32 %v1647, %v1751
  %v1776 = vsub.f32 %v1652, %v1751
  %v1777 = vsub.f32 %v1657, %v1751
  %v1778 = vsub.f32 %v1662, %v1751
  %v1779 = vsub.f32 %v1667, %v1751
  %v1780 = vsub.f32 %v1672, %v1751
  %v1781 = vsub.f32 %v1677, %v1751
  %v1782 = vsub.f32 %v1682, %v1751
  %v1783 = vsub.f32 %v1687, %v1751
  %v1784 = vsub.f32 %v1692, %v1751
  %v1785 = vsub.f32 %v1697, %v1751
  %v1786 = vsub.f32 %v1702, %v1751
  %v1787 = vsub.f32 %v1707, %v1751
  %v1788 = vmul.f32 %v1752, %v1752
  %v1789 = vmul.f32 %v1753, %v1753
  %v1790 = vmul.f32 %v1754, %v1754
  %v1791 = vmul.f32 %v1755, %v1755
  %v1792 = vmul.f32 %v1756, %v1756
  %v1793 = vmul.f32 %v1757, %v1757
  %v1794 = vmul.f32 %v1758, %v1758
  %v1795 = vmul.f32 %v1759, %v1759
  %v1796 = vmul.f32 %v1760, %v1760
  %v1797 = vmul.f32 %v1761, %v1761
  %v1798 = vmul.f32 %v1762, %v1762
  %v1799 = vmul.f32 %v1763, %v1763
  %v1800 = vmul.f32 %v1764, %v1764
  %v1801 = vmul.f32 %v1765, %v1765
  %v1802 = vmul.f32 %v1766, %v1766
  %v1803 = vmul.f32 %v1767, %v1767
  %v1804 = vmul.f32 %v1768, %v1768
  %v1805 = vmul.f32 %v1769, %v1769
  %v1806 = vmul.f32 %v1770, %v1770
  %v1807 = vmul.f32 %v1771, %v1771
  %v1808 = vmul.f32 %v1772, %v1772
  %v1809 = vmul.f32 %v1773, %v1773
  %v1810 = vmul.f32 %v1774, %v1774
  %v1811 = vmul.f32 %v1775, %v1775
  %v1812 = vmul.f32 %v1776, %v1776
  %v1813 = vmul.f32 %v1777, %v1777
  %v1814 = vmul.f32 %v1778, %v1778
  %v1815 = vmul.f32 %v1779, %v1779
  %v1816 = vmul.f32 %v1780, %v1780
  %v1817 = vmul.f32 %v1781, %v1781
  %v1818 = vmul.f32 %v1782, %v1782
  %v1819 = vmul.f32 %v1783, %v1783
  %v1820 = vmul.f32 %v1784, %v1784
  %v1821 = vmul.f32 %v1785, %v1785
  %v1822 = vmul.f32 %v1786, %v1786
  %v1823 = vmul.f32 %v1787, %v1787
  %v1824 = vadd.f32 %v1788, %v1789
  %v1825 = vadd.f32 %v1824, %v1790
  %v1826 = vadd.f32 %v1825, %v1791
  %v1827 = vadd.f32 %v1826, %v1792
  %v1828 = vadd.f32 %v1827, %v1793
  %v1829 = vadd.f32 %v1828, %v1794
  %v1830 = vadd.f32 %v1829, %v1795
  %v1831 = vadd.f32 %v1830, %v1796
  %v1832 = vadd.f32 %v1831, %v1797
  %v1833 = vadd.f32 %v1832, %v1798
  %v1834 = vadd.f32 %v1833, %v1799
  %v1835 = vadd.f32 %v1834, %v1800
  %v1836 = vadd.f32 %v1835, %v1801
  %v1837 = vadd.f32 %v1836, %v1802
  %v1838 = vadd.f32 %v1837, %v1803
  %v1839 = vadd.f32 %v1838, %v1804
  %v1840 = vadd.f32 %v1839, %v1805
  %v1841 = vadd.f32 %v1840, %v1806
  %v1842 = vadd.f32 %v1841, %v1807
  %v1843 = vadd.f32 %v1842, %v1808
  %v1844 = vadd.f32 %v1843, %v1809
  %v1845 = vadd.f32 %v1844, %v1810
  %v1846 = vadd.f32 %v1845, %v1811
  %v1847 = vadd.f32 %v1846, %v1812
  %v1848 = vadd.f32 %v1847, %v1813
  %v1849 = vadd.f32 %v1848, %v1814
  %v1850 = vadd.f32 %v1849, %v1815
  %v1851 = vadd.f32 %v1850, %v1816
  %v1852 = vadd.f32 %v1851, %v1817
  %v1853 = vadd.f32 %v1852, %v1818
  %v1854 = vadd.f32 %v1853, %v1819
  %v1855 = vadd.f32 %v1854, %v1820
  %v1856 = vadd.f32 %v1855, %v1821
  %v1857 = vadd.f32 %v1856, %v1822
  %v1858 = vadd.f32 %v1857, %v1823
  %v1859 = vrot.slane %v1858, 4
  %v1860 = vadd.f32 %v1858, %v1859
  %v1861 = vrot.slane %v1860, 2
  %v1862 = vadd.f32 %v1860, %v1861
  %v1863 = vrot.slane %v1862, 1
  %v1864 = vadd.f32 %v1862, %v1863
  %v1865 = vmul.f32 %v1864, 0.0034722222
  %v1866 = vld [vmem:[%s2] sm:$0x1]
  %v1867 = vadd.f32 %v1865, 1e-05
  %v1868 = vrsqrt.pop %v1867
  %v1869 = vmul.f32 %v1866, %v1868
  %v1871 = vlaneseq
  %v1872 = vshrl.u32 %v1871, 7
  %v1873 = vsub.s32 0, %v1872
  %v1874 = vrot.slane %v1869, %v1873
  %v1876 = vmul.f32 %v1752, %v1874
  %v1877 = vmul.f32 %v1753, %v1874
  %v1878 = vmul.f32 %v1754, %v1874
  %v1879 = vmul.f32 %v1755, %v1874
  %v1880 = vmul.f32 %v1756, %v1874
  %v1881 = vmul.f32 %v1757, %v1874
  %v1882 = vmul.f32 %v1758, %v1874
  %v1883 = vmul.f32 %v1759, %v1874
  %v1884 = vmul.f32 %v1760, %v1874
  %v1885 = vmul.f32 %v1761, %v1874
  %v1886 = vmul.f32 %v1762, %v1874
  %v1887 = vmul.f32 %v1763, %v1874
  %v1888 = vmul.f32 %v1764, %v1874
  %v1889 = vmul.f32 %v1765, %v1874
  %v1890 = vmul.f32 %v1766, %v1874
  %v1891 = vmul.f32 %v1767, %v1874
  %v1892 = vmul.f32 %v1768, %v1874
  %v1893 = vmul.f32 %v1769, %v1874
  %v1894 = vmul.f32 %v1770, %v1874
  %v1895 = vmul.f32 %v1771, %v1874
  %v1896 = vmul.f32 %v1772, %v1874
  %v1897 = vmul.f32 %v1773, %v1874
  %v1898 = vmul.f32 %v1774, %v1874
  %v1899 = vmul.f32 %v1775, %v1874
  %v1900 = vmul.f32 %v1776, %v1874
  %v1901 = vmul.f32 %v1777, %v1874
  %v1902 = vmul.f32 %v1778, %v1874
  %v1903 = vmul.f32 %v1779, %v1874
  %v1904 = vmul.f32 %v1780, %v1874
  %v1905 = vmul.f32 %v1781, %v1874
  %v1906 = vmul.f32 %v1782, %v1874
  %v1907 = vmul.f32 %v1783, %v1874
  %v1908 = vmul.f32 %v1784, %v1874
  %v1909 = vmul.f32 %v1785, %v1874
  %v1910 = vmul.f32 %v1786, %v1874
  %v1911 = vmul.f32 %v1787, %v1874
  %v1912 = vld [vmem:[%s3] sm:$0x1]
  %v1914 = vlaneseq
  %v1915 = vshrl.u32 %v1914, 7
  %v1916 = vsub.s32 0, %v1915
  %v1917 = vrot.slane %v1912, %v1916
  %v1919 = vadd.f32 %v1876, %v1917
  %v1920 = vadd.f32 %v1877, %v1917
  %v1921 = vadd.f32 %v1878, %v1917
  %v1922 = vadd.f32 %v1879, %v1917
  %v1923 = vadd.f32 %v1880, %v1917
  %v1924 = vadd.f32 %v1881, %v1917
  %v1925 = vadd.f32 %v1882, %v1917
  %v1926 = vadd.f32 %v1883, %v1917
  %v1927 = vadd.f32 %v1884, %v1917
  %v1928 = vadd.f32 %v1885, %v1917
  %v1929 = vadd.f32 %v1886, %v1917
  %v1930 = vadd.f32 %v1887, %v1917
  %v1931 = vadd.f32 %v1888, %v1917
  %v1932 = vadd.f32 %v1889, %v1917
  %v1933 = vadd.f32 %v1890, %v1917
  %v1934 = vadd.f32 %v1891, %v1917
  %v1935 = vadd.f32 %v1892, %v1917
  %v1936 = vadd.f32 %v1893, %v1917
  %v1937 = vadd.f32 %v1894, %v1917
  %v1938 = vadd.f32 %v1895, %v1917
  %v1939 = vadd.f32 %v1896, %v1917
  %v1940 = vadd.f32 %v1897, %v1917
  %v1941 = vadd.f32 %v1898, %v1917
  %v1942 = vadd.f32 %v1899, %v1917
  %v1943 = vadd.f32 %v1900, %v1917
  %v1944 = vadd.f32 %v1901, %v1917
  %v1945 = vadd.f32 %v1902, %v1917
  %v1946 = vadd.f32 %v1903, %v1917
  %v1947 = vadd.f32 %v1904, %v1917
  %v1948 = vadd.f32 %v1905, %v1917
  %v1949 = vadd.f32 %v1906, %v1917
  %v1950 = vadd.f32 %v1907, %v1917
  %v1951 = vadd.f32 %v1908, %v1917
  %v1952 = vadd.f32 %v1909, %v1917
  %v1953 = vadd.f32 %v1910, %v1917
  %v1954 = vadd.f32 %v1911, %v1917
  %v1955 = vmax.f32 %v1919, 0.0
  %v1956 = vmax.f32 %v1920, 0.0
  %v1957 = vmax.f32 %v1921, 0.0
  %v1958 = vmax.f32 %v1922, 0.0
  %v1959 = vmax.f32 %v1923, 0.0
  %v1960 = vmax.f32 %v1924, 0.0
  %v1961 = vmax.f32 %v1925, 0.0
  %v1962 = vmax.f32 %v1926, 0.0
  %v1963 = vmax.f32 %v1927, 0.0
  %v1964 = vmax.f32 %v1928, 0.0
  %v1965 = vmax.f32 %v1929, 0.0
  %v1966 = vmax.f32 %v1930, 0.0
  %v1967 = vmax.f32 %v1931, 0.0
  %v1968 = vmax.f32 %v1932, 0.0
  %v1969 = vmax.f32 %v1933, 0.0
  %v1970 = vmax.f32 %v1934, 0.0
  %v1971 = vmax.f32 %v1935, 0.0
  %v1972 = vmax.f32 %v1936, 0.0
  %v1973 = vmax.f32 %v1937, 0.0
  %v1974 = vmax.f32 %v1938, 0.0
  %v1975 = vmax.f32 %v1939, 0.0
  %v1976 = vmax.f32 %v1940, 0.0
  %v1977 = vmax.f32 %v1941, 0.0
  %v1978 = vmax.f32 %v1942, 0.0
  %v1979 = vmax.f32 %v1943, 0.0
  %v1980 = vmax.f32 %v1944, 0.0
  %v1981 = vmax.f32 %v1945, 0.0
  %v1982 = vmax.f32 %v1946, 0.0
  %v1983 = vmax.f32 %v1947, 0.0
  %v1984 = vmax.f32 %v1948, 0.0
  %v1985 = vmax.f32 %v1949, 0.0
  %v1986 = vmax.f32 %v1950, 0.0
  %v1987 = vmax.f32 %v1951, 0.0
  %v1988 = vmax.f32 %v1952, 0.0
  %v1989 = vmax.f32 %v1953, 0.0
  %v1990 = vmax.f32 %v1954, 0.0
  %1991 = vst [vmem:[%s4] sm:$0xff] %v1955
  %1992 = vst [vmem:[%s4 + $0x8] sm:$0xff] %v1956
  %1993 = vst [vmem:[%s4 + $0x10] sm:$0xff] %v1957
  %1994 = vst [vmem:[%s4 + $0x18] sm:$0xff] %v1958
  %1995 = vst [vmem:[%s4 + $0x20] sm:$0xff] %v1959
  %1996 = vst [vmem:[%s4 + $0x28] sm:$0xff] %v1960
  %1997 = vst [vmem:[%s4 + $0x30] sm:$0xff] %v1961
  %1998 = vst [vmem:[%s4 + $0x38] sm:$0xff] %v1962
  %1999 = vst [vmem:[%s4 + $0x40] sm:$0xff] %v1963
  %2000 = vst [vmem:[%s4 + $0x48] sm:$0xff] %v1964
  %2001 = vst [vmem:[%s4 + $0x50] sm:$0xff] %v1965
  %2002 = vst [vmem:[%s4 + $0x58] sm:$0xff] %v1966
  %2003 = vst [vmem:[%s4 + $0x60] sm:$0xff] %v1967
  %2004 = vst [vmem:[%s4 + $0x68] sm:$0xff] %v1968
  %2005 = vst [vmem:[%s4 + $0x70] sm:$0xff] %v1969
  %2006 = vst [vmem:[%s4 + $0x78] sm:$0xff] %v1970
  %2007 = vst [vmem:[%s4 + $0x80] sm:$0xff] %v1971
  %2008 = vst [vmem:[%s4 + $0x88] sm:$0xff] %v1972
  %2009 = vst [vmem:[%s4 + $0x90] sm:$0xff] %v1973
  %2010 = vst [vmem:[%s4 + $0x98] sm:$0xff] %v1974
  %2011 = vst [vmem:[%s4 + $0xa0] sm:$0xff] %v1975
  %2012 = vst [vmem:[%s4 + $0xa8] sm:$0xff] %v1976
  %2013 = vst [vmem:[%s4 + $0xb0] sm:$0xff] %v1977
  %2014 = vst [vmem:[%s4 + $0xb8] sm:$0xff] %v1978
  %2015 = vst [vmem:[%s4 + $0xc0] sm:$0xff] %v1979
  %2016 = vst [vmem:[%s4 + $0xc8] sm:$0xff] %v1980
  %2017 = vst [vmem:[%s4 + $0xd0] sm:$0xff] %v1981
  %2018 = vst [vmem:[%s4 + $0xd8] sm:$0xff] %v1982
  %2019 = vst [vmem:[%s4 + $0xe0] sm:$0xff] %v1983
  %2020 = vst [vmem:[%s4 + $0xe8] sm:$0xff] %v1984
  %2021 = vst [vmem:[%s4 + $0xf0] sm:$0xff] %v1985
  %2022 = vst [vmem:[%s4 + $0xf8] sm:$0xff] %v1986
  %2023 = vst [vmem:[%s4 + $0x100] sm:$0xff] %v1987
  %2024 = vst [vmem:[%s4 + $0x108] sm:$0xff] %v1988
  %2025 = vst [vmem:[%s4 + $0x110] sm:$0xff] %v1989
  %2026 = vst [vmem:[%s4 + $0x118] sm:$0xff] %v1990
  // Predicated region
  $region18: #{nano_model_forward.4} parent=0 // pred_check
    _
  $region19: #{nano_model_forward.4} parent=0 // pred_check_branch
    %2028 = sbr.rel (0) target = $region21
  $region20: #{nano_model_forward.4} parent=0 // pred_region
    _
  $region21: #{nano_model_forward.4} parent=0 // pred_fallthru
    _
  // Predicated region
  $region22: #{nano_model_forward.4} parent=0 // pred_check
    _
  $region23: #{nano_model_forward.4} parent=0 // pred_check_branch
    %2030 = sbr.rel (0) target = $region25
  $region24: #{nano_model_forward.4} parent=0 // pred_region
    _
  $region25: #{nano_model_forward.4} parent=0 // pred_fallthru
    _

</llo_original>
